<compile_context>
chip_gen: v7x
topology: tpu7x:2x2x1
jax: 0.10.0
libtpu: 0.0.40
codegen_flags: <defaults>
</compile_context>

<pallas_src>
import numpy as np
import jax
import jax.numpy as jnp
from jax import lax
from jax.experimental import pallas as pl
from jax.experimental.pallas import tpu as pltpu


# ----------------------------------------------------------------------------
# Kernel
# ----------------------------------------------------------------------------
def _make_kernel(Bblk, H, W, C, linearity_flag):
    WC = W * C
    M = Bblk * H

    def kernel(x_ref, wb_ref, b_ref, o_ref, acc_ref):
        zrow = jnp.zeros((Bblk, 1, WC), jnp.bfloat16)    # hoisted, reused by all convs

        def shifted(x, kh):
            # Row needed by tap kh for output row h is input row h + kh - 1
            # (zero outside the image).  W-direction taps/padding are baked
            # into the banded weight, so only the H halo is handled here.
            if kh == 1:
                return x
            if kh == 0:                                   # row h-1
                return jnp.concatenate([zrow, x[:, :H - 1, :]], axis=1)
            return jnp.concatenate([x[:, 1:, :], zrow], axis=1)   # kh == 2: row h+1

        def conv(x_bf16, layer):
            # Bias folded into the accumulator init; lane layout is [w*C + co].
            # Accumulate the 3 kh taps in the f32 VMEM scratch (MXU-chained).
            acc_ref[...] = jnp.broadcast_to(b_ref[layer:layer + 1, :], (M, WC))
            for kh in range(3):
                acc_ref[...] += jnp.dot(shifted(x_bf16, kh).reshape(M, WC),
                                        wb_ref[3 * layer + kh],
                                        preferred_element_type=jnp.float32)
            return acc_ref[...].reshape(Bblk, H, WC)      # f32 snapshot

        x = x_ref[...]                                    # (Bblk, H, W*C) bf16
        out_res = conv(x, 0)                              # conv1 (f32)
        t = jnp.tanh(out_res) if linearity_flag == 1 else out_res
        t = conv(t.astype(jnp.bfloat16), 1)               # conv2
        if linearity_flag == 1:
            t = jnp.tanh(t)
        t = conv(t.astype(jnp.bfloat16), 2)               # conv3
        t = t + out_res                                   # residual add (f32)
        t = conv(t.astype(jnp.bfloat16), 3)               # conv4
        o_ref[...] = t

    return kernel


# ----------------------------------------------------------------------------
# Host-side weight packing (done ONCE in make_p_block_v2, not per forward)
# ----------------------------------------------------------------------------
def _w_band_selector(W):
    """sel[kw, wi, wo] = 1 iff wi == wo + kw - 1 (in range). Bakes W-padding."""
    sel = np.zeros((3, W, W), np.float32)
    for kw in range(3):
        for wo in range(W):
            wi = wo + kw - 1
            if 0 <= wi < W:
                sel[kw, wi, wo] = 1.0
    return jnp.asarray(sel)


def _banded_weight(w_oihw, C, W, sel):
    """(Cout, Cin, 3, 3) torch layout -> (3, W*C, W*C) block-banded matrices.

    big[kh, wi*C + ci, wo*C + co] = w[co, ci, kh, kw] where wi = wo + kw - 1
    (entries outside [0, W) are simply absent == zero padding along W).
    """
    cout, cin = w_oihw.shape[0], w_oihw.shape[1]
    w = jnp.transpose(w_oihw, (2, 3, 1, 0)).astype(jnp.float32)        # (3,3,ci,co)
    w = jnp.pad(w, ((0, 0), (0, 0), (0, C - cin), (0, C - cout)))      # (3,3,C,C)
    big = jnp.einsum('kab,hkio->haibo', sel, w)                        # (3,W,C,W,C)
    return big.reshape(3, W * C, W * C)


def _tiled_bias(b, C, W):
    """Bias in lane layout [w*C + co]: pad to C channels and tile over W."""
    b = jnp.pad(b.astype(jnp.float32), (0, C - b.shape[0]))
    return jnp.tile(b, W)                                              # (W*C,)


def _pick_bblk(B, H, target_m=256):
    """Images per grid step so the matmul M = bblk*H fills ~256 MXU rows.

    Grid may legally be 1 (single-TC v5e/v6e don't care); with larger batches
    the grid grows past 2 automatically, which is what v7x megacore wants.
    """
    per_block = max(1, target_m // max(1, H))
    return max(1, min(B, per_block))


# ----------------------------------------------------------------------------
# Public factory: pack weights once, return a jitted NCHW -> NCHW apply()
# ----------------------------------------------------------------------------
def make_p_block_v2(params, W, linearity_flag=1, bblk=None):
    C = int(params["w1"].shape[0])        # depth_scale * csize
    cin = int(params["w1"].shape[1])      # conv1 in_channels (csize)
    cout = int(params["w4"].shape[0])     # conv4 out_channels (csize)
    WC = W * C

    # ---- one-time packing, device-resident ----
    sel = _w_band_selector(W)
    wb = jnp.concatenate([_banded_weight(params[f"w{i}"], C, W, sel)
                          for i in (1, 2, 3, 4)], axis=0).astype(jnp.bfloat16)
    bias = jnp.stack([_tiled_bias(params[f"b{i}"], C, W)
                      for i in (1, 2, 3, 4)], axis=0)                  # (4, WC) f32
    wb = jax.device_put(wb)
    bias = jax.device_put(bias)

    @jax.jit
    def _apply(x_nchw, wb, bias):
        B, cin_x, H, W_x = x_nchw.shape
        assert cin_x == cin and W_x == W

        blk = _pick_bblk(B, H) if bblk is None else bblk
        n_blocks = -(-B // blk)                  # ceil
        Bpad = n_blocks * blk

        # NCHW -> lane-dense (Bpad, H, W*C) bf16 (channels padded to C,
        # batch zero-padded to a multiple of blk).
        x = jnp.transpose(x_nchw, (0, 2, 3, 1)).astype(jnp.float32)    # (B,H,W,cin)
        x = jnp.pad(x, ((0, Bpad - B), (0, 0), (0, 0), (0, C - cin)))
        x = x.reshape(Bpad, H, WC).astype(jnp.bfloat16)

        kernel = _make_kernel(blk, H, W, C, linearity_flag)

        out = pl.pallas_call(
            kernel,
            out_shape=jax.ShapeDtypeStruct((Bpad, H, WC), jnp.float32),
            grid_spec=pltpu.PrefetchScalarGridSpec(
                num_scalar_prefetch=0,
                grid=(n_blocks,),
                in_specs=[
                    pl.BlockSpec((blk, H, WC), lambda i: (i, 0, 0)),   # activations
                    pl.BlockSpec((12, WC, WC), lambda i: (0, 0, 0)),   # packed bf16 weights
                    pl.BlockSpec((4, WC), lambda i: (0, 0)),           # packed biases (f32)
                ],
                out_specs=pl.BlockSpec((blk, H, WC), lambda i: (i, 0, 0)),
                scratch_shapes=[pltpu.VMEM((blk * H, WC), jnp.float32)],  # f32 accumulator
            ),
            compiler_params=pltpu.CompilerParams(
                dimension_semantics=("parallel",),
                vmem_limit_bytes=32 * 1024 * 1024,   # explicit budget (v7x-safe)
            ),
        )(x, wb, bias)

        # drop batch/channel padding (conv4 cout), back to NCHW
        out = out.reshape(Bpad, H, W, C)[:B, ..., :cout]
        return jnp.transpose(out, (0, 3, 1, 2))

    return lambda x_nchw: _apply(x_nchw, wb, bias)


# ----------------------------------------------------------------------------
# Pure-JAX reference (matches the PyTorch forward, NCHW)
# ----------------------------------------------------------------------------
def p_block_v2_ref(x, params, linearity_flag=1):
    dn = ('NCHW', 'OIHW', 'NCHW')

    def conv(t, w, b):
        y = lax.conv_general_dilated(t, w, (1, 1), 'SAME',
                                     dimension_numbers=dn,
                                     precision=lax.Precision.HIGHEST)
        return y + b.reshape(1, -1, 1, 1)

    out_res = conv(x, params['w1'], params['b1'])
    t = jnp.tanh(out_res) if linearity_flag == 1 else out_res
    t = conv(t, params['w2'], params['b2'])
    if linearity_flag == 1:
        t = jnp.tanh(t)
    t = conv(t, params['w3'], params['b3'])
    t = t + out_res
    t = conv(t, params['w4'], params['b4'])
    return t


if __name__ == "__main__":
    B, H, W = 8, 16, 16
    csize, depth_scale = 1, 16
    C = depth_scale * csize

    key = jax.random.PRNGKey(0)
    keys = jax.random.split(key, 9)

    def init_conv(kw_key, kb_key, cout, cin, ks=3):
        # deterministic PyTorch-style Conv2d init: U(-1/sqrt(fan_in), 1/sqrt(fan_in))
        bound = 1.0 / np.sqrt(cin * ks * ks)
        w = jax.random.uniform(kw_key, (cout, cin, ks, ks), jnp.float32, -bound, bound)
        b = jax.random.uniform(kb_key, (cout,), jnp.float32, -bound, bound)
        return w, b

    w1, b1 = init_conv(keys[0], keys[1], C, csize)
    w2, b2 = init_conv(keys[2], keys[3], C, C)
    w3, b3 = init_conv(keys[4], keys[5], C, C)
    w4, b4 = init_conv(keys[6], keys[7], csize, C)
    params = dict(w1=w1, b1=b1, w2=w2, b2=b2, w3=w3, b3=b3, w4=w4, b4=b4)

    x = jax.random.normal(keys[8], (B, csize, H, W), jnp.float32)

    apply_fn = make_p_block_v2(params, W=W, linearity_flag=1)   # packs weights once
    out = apply_fn(x)
    out = jax.block_until_ready(out)

    ref = p_block_v2_ref(x, params, linearity_flag=1)
    # bf16 MXU operands with f32 accumulation: measured/estimated error is a
    # few 1e-3 absolute at these magnitudes, comfortably inside 1e-2.
    np.testing.assert_allclose(np.asarray(out), np.asarray(ref),
                               rtol=1e-2, atol=1e-2)
    print("KERNEL_OK")
</pallas_src>

<mosaic_0001>
module attributes {stable_mosaic.version = 11 : i64} {
  func.func @kernel(%arg0: i32, %arg1: memref<8x16x256xbf16, #tpu.memory_space<vmem>>, %arg2: memref<12x256x256xbf16, #tpu.memory_space<vmem>>, %arg3: memref<4x256xf32, #tpu.memory_space<vmem>>, %arg4: memref<8x16x256xf32, #tpu.memory_space<vmem>>, %arg5: memref<128x256xf32, #tpu.memory_space<vmem>>) attributes {dimension_semantics = [#tpu.dimension_semantics<parallel>], iteration_bounds = array<i64: 1>, scalar_prefetch = 0 : i64, scratch_operands = 1 : i64, tpu.core_type = #tpu.core_type<tc>, window_params = [{transform_indices = @transform_0, window_bounds = array<i64: 8, 16, 256>}, {pipeline_mode = #tpu.pipeline_mode<synchronous>, transform_indices = @transform_1, window_bounds = array<i64: 12, 256, 256>}, {pipeline_mode = #tpu.pipeline_mode<synchronous>, transform_indices = @transform_2, window_bounds = array<i64: 4, 256>}, {transform_indices = @transform_3, window_bounds = array<i64: 8, 16, 256>}]} {
    %cst = arith.constant 0.000000e+00 : bf16
    %0 = vector.broadcast %cst : bf16 to vector<8x1x256xbf16>
    %c0 = arith.constant 0 : index
    %c0_0 = arith.constant 0 : index
    %c0_1 = arith.constant 0 : index
    %1 = vector.load %arg1[%c0, %c0_0, %c0_1] : memref<8x16x256xbf16, #tpu.memory_space<vmem>>, vector<8x16x256xbf16>
    %c0_2 = arith.constant 0 : index
    %c0_3 = arith.constant 0 : index
    %2 = vector.load %arg3[%c0_2, %c0_3] : memref<4x256xf32, #tpu.memory_space<vmem>>, vector<1x256xf32>
    %3 = vector.shape_cast %2 : vector<1x256xf32> to vector<1x256xf32>
    %4 = vector.broadcast %3 : vector<1x256xf32> to vector<128x256xf32>
    %c0_4 = arith.constant 0 : index
    %c0_5 = arith.constant 0 : index
    %5 = vector.load %arg5[%c0_4, %c0_5] : memref<128x256xf32, #tpu.memory_space<vmem>>, vector<128x256xf32>
    tpu.vector_store %arg5[%c0_4, %c0_5], %4 {strides = array<i32>} : memref<128x256xf32, #tpu.memory_space<vmem>>, vector<128x256xf32>,
    %c0_6 = arith.constant 0 : index
    %c0_7 = arith.constant 0 : index
    %6 = vector.load %arg5[%c0_6, %c0_7] : memref<128x256xf32, #tpu.memory_space<vmem>>, vector<128x256xf32>
    %7 = vector.extract_strided_slice %1 {offsets = [0, 0, 0], sizes = [8, 15, 256], strides = [1, 1, 1]} : vector<8x16x256xbf16> to vector<8x15x256xbf16>
    %8 = tpu.concatenate %0, %7 in 1 : vector<8x1x256xbf16>, vector<8x15x256xbf16> -> vector<8x16x256xbf16>
    %9 = vector.shape_cast %8 : vector<8x16x256xbf16> to vector<128x256xbf16>
    %c0_8 = arith.constant 0 : index
    %c0_9 = arith.constant 0 : index
    %c0_10 = arith.constant 0 : index
    %10 = vector.load %arg2[%c0_8, %c0_9, %c0_10] : memref<12x256x256xbf16, #tpu.memory_space<vmem>>, vector<1x256x256xbf16>
    %11 = vector.shape_cast %10 : vector<1x256x256xbf16> to vector<256x256xbf16>
    %cst_11 = arith.constant dense<0.000000e+00> : vector<128x256xf32>
    %12 = tpu.matmul %9, %11, %cst_11 {dimension_numbers = #tpu.dot_dimension_numbers<[1], [0], [0], [1], [0, 0, 1, 1], [], []>} : vector<128x256xbf16>, vector<256x256xbf16>, vector<128x256xf32> -> vector<128x256xf32>
    %13 = arith.addf %6, %12 : vector<128x256xf32>
    %c0_12 = arith.constant 0 : index
    %c0_13 = arith.constant 0 : index
    %14 = vector.load %arg5[%c0_12, %c0_13] : memref<128x256xf32, #tpu.memory_space<vmem>>, vector<128x256xf32>
    tpu.vector_store %arg5[%c0_12, %c0_13], %13 {strides = array<i32>} : memref<128x256xf32, #tpu.memory_space<vmem>>, vector<128x256xf32>,
    %c0_14 = arith.constant 0 : index
    %c0_15 = arith.constant 0 : index
    %15 = vector.load %arg5[%c0_14, %c0_15] : memref<128x256xf32, #tpu.memory_space<vmem>>, vector<128x256xf32>
    %16 = vector.shape_cast %1 : vector<8x16x256xbf16> to vector<128x256xbf16>
    %c1 = arith.constant 1 : index
    %c0_16 = arith.constant 0 : index
    %c0_17 = arith.constant 0 : index
    %17 = vector.load %arg2[%c1, %c0_16, %c0_17] : memref<12x256x256xbf16, #tpu.memory_space<vmem>>, vector<1x256x256xbf16>
    %18 = vector.shape_cast %17 : vector<1x256x256xbf16> to vector<256x256xbf16>
    %cst_18 = arith.constant dense<0.000000e+00> : vector<128x256xf32>
    %19 = tpu.matmul %16, %18, %cst_18 {dimension_numbers = #tpu.dot_dimension_numbers<[1], [0], [0], [1], [0, 0, 1, 1], [], []>} : vector<128x256xbf16>, vector<256x256xbf16>, vector<128x256xf32> -> vector<128x256xf32>
    %20 = arith.addf %15, %19 : vector<128x256xf32>
    %c0_19 = arith.constant 0 : index
    %c0_20 = arith.constant 0 : index
    %21 = vector.load %arg5[%c0_19, %c0_20] : memref<128x256xf32, #tpu.memory_space<vmem>>, vector<128x256xf32>
    tpu.vector_store %arg5[%c0_19, %c0_20], %20 {strides = array<i32>} : memref<128x256xf32, #tpu.memory_space<vmem>>, vector<128x256xf32>,
    %c0_21 = arith.constant 0 : index
    %c0_22 = arith.constant 0 : index
    %22 = vector.load %arg5[%c0_21, %c0_22] : memref<128x256xf32, #tpu.memory_space<vmem>>, vector<128x256xf32>
    %23 = vector.extract_strided_slice %1 {offsets = [0, 1, 0], sizes = [8, 15, 256], strides = [1, 1, 1]} : vector<8x16x256xbf16> to vector<8x15x256xbf16>
    %24 = tpu.concatenate %23, %0 in 1 : vector<8x15x256xbf16>, vector<8x1x256xbf16> -> vector<8x16x256xbf16>
    %25 = vector.shape_cast %24 : vector<8x16x256xbf16> to vector<128x256xbf16>
    %c2 = arith.constant 2 : index
    %c0_23 = arith.constant 0 : index
    %c0_24 = arith.constant 0 : index
    %26 = vector.load %arg2[%c2, %c0_23, %c0_24] : memref<12x256x256xbf16, #tpu.memory_space<vmem>>, vector<1x256x256xbf16>
    %27 = vector.shape_cast %26 : vector<1x256x256xbf16> to vector<256x256xbf16>
    %cst_25 = arith.constant dense<0.000000e+00> : vector<128x256xf32>
    %28 = tpu.matmul %25, %27, %cst_25 {dimension_numbers = #tpu.dot_dimension_numbers<[1], [0], [0], [1], [0, 0, 1, 1], [], []>} : vector<128x256xbf16>, vector<256x256xbf16>, vector<128x256xf32> -> vector<128x256xf32>
    %29 = arith.addf %22, %28 : vector<128x256xf32>
    %c0_26 = arith.constant 0 : index
    %c0_27 = arith.constant 0 : index
    %30 = vector.load %arg5[%c0_26, %c0_27] : memref<128x256xf32, #tpu.memory_space<vmem>>, vector<128x256xf32>
    tpu.vector_store %arg5[%c0_26, %c0_27], %29 {strides = array<i32>} : memref<128x256xf32, #tpu.memory_space<vmem>>, vector<128x256xf32>,
    %c0_28 = arith.constant 0 : index
    %c0_29 = arith.constant 0 : index
    %31 = vector.load %arg5[%c0_28, %c0_29] : memref<128x256xf32, #tpu.memory_space<vmem>>, vector<128x256xf32>
    %32 = vector.shape_cast %31 : vector<128x256xf32> to vector<8x16x256xf32>
    %33 = math.tanh %32 : vector<8x16x256xf32>
    %34 = arith.truncf %33 : vector<8x16x256xf32> to vector<8x16x256xbf16>
    %c1_30 = arith.constant 1 : index
    %c0_31 = arith.constant 0 : index
    %35 = vector.load %arg3[%c1_30, %c0_31] : memref<4x256xf32, #tpu.memory_space<vmem>>, vector<1x256xf32>
    %36 = vector.shape_cast %35 : vector<1x256xf32> to vector<1x256xf32>
    %37 = vector.broadcast %36 : vector<1x256xf32> to vector<128x256xf32>
    %c0_32 = arith.constant 0 : index
    %c0_33 = arith.constant 0 : index
    %38 = vector.load %arg5[%c0_32, %c0_33] : memref<128x256xf32, #tpu.memory_space<vmem>>, vector<128x256xf32>
    tpu.vector_store %arg5[%c0_32, %c0_33], %37 {strides = array<i32>} : memref<128x256xf32, #tpu.memory_space<vmem>>, vector<128x256xf32>,
    %c0_34 = arith.constant 0 : index
    %c0_35 = arith.constant 0 : index
    %39 = vector.load %arg5[%c0_34, %c0_35] : memref<128x256xf32, #tpu.memory_space<vmem>>, vector<128x256xf32>
    %40 = vector.extract_strided_slice %34 {offsets = [0, 0, 0], sizes = [8, 15, 256], strides = [1, 1, 1]} : vector<8x16x256xbf16> to vector<8x15x256xbf16>
    %41 = tpu.concatenate %0, %40 in 1 : vector<8x1x256xbf16>, vector<8x15x256xbf16> -> vector<8x16x256xbf16>
    %42 = vector.shape_cast %41 : vector<8x16x256xbf16> to vector<128x256xbf16>
    %c3 = arith.constant 3 : index
    %c0_36 = arith.constant 0 : index
    %c0_37 = arith.constant 0 : index
    %43 = vector.load %arg2[%c3, %c0_36, %c0_37] : memref<12x256x256xbf16, #tpu.memory_space<vmem>>, vector<1x256x256xbf16>
    %44 = vector.shape_cast %43 : vector<1x256x256xbf16> to vector<256x256xbf16>
    %cst_38 = arith.constant dense<0.000000e+00> : vector<128x256xf32>
    %45 = tpu.matmul %42, %44, %cst_38 {dimension_numbers = #tpu.dot_dimension_numbers<[1], [0], [0], [1], [0, 0, 1, 1], [], []>} : vector<128x256xbf16>, vector<256x256xbf16>, vector<128x256xf32> -> vector<128x256xf32>
    %46 = arith.addf %39, %45 : vector<128x256xf32>
    %c0_39 = arith.constant 0 : index
    %c0_40 = arith.constant 0 : index
    %47 = vector.load %arg5[%c0_39, %c0_40] : memref<128x256xf32, #tpu.memory_space<vmem>>, vector<128x256xf32>
    tpu.vector_store %arg5[%c0_39, %c0_40], %46 {strides = array<i32>} : memref<128x256xf32, #tpu.memory_space<vmem>>, vector<128x256xf32>,
    %c0_41 = arith.constant 0 : index
    %c0_42 = arith.constant 0 : index
    %48 = vector.load %arg5[%c0_41, %c0_42] : memref<128x256xf32, #tpu.memory_space<vmem>>, vector<128x256xf32>
    %49 = vector.shape_cast %34 : vector<8x16x256xbf16> to vector<128x256xbf16>
    %c4 = arith.constant 4 : index
    %c0_43 = arith.constant 0 : index
    %c0_44 = arith.constant 0 : index
    %50 = vector.load %arg2[%c4, %c0_43, %c0_44] : memref<12x256x256xbf16, #tpu.memory_space<vmem>>, vector<1x256x256xbf16>
    %51 = vector.shape_cast %50 : vector<1x256x256xbf16> to vector<256x256xbf16>
    %cst_45 = arith.constant dense<0.000000e+00> : vector<128x256xf32>
    %52 = tpu.matmul %49, %51, %cst_45 {dimension_numbers = #tpu.dot_dimension_numbers<[1], [0], [0], [1], [0, 0, 1, 1], [], []>} : vector<128x256xbf16>, vector<256x256xbf16>, vector<128x256xf32> -> vector<128x256xf32>
    %53 = arith.addf %48, %52 : vector<128x256xf32>
    %c0_46 = arith.constant 0 : index
    %c0_47 = arith.constant 0 : index
    %54 = vector.load %arg5[%c0_46, %c0_47] : memref<128x256xf32, #tpu.memory_space<vmem>>, vector<128x256xf32>
    tpu.vector_store %arg5[%c0_46, %c0_47], %53 {strides = array<i32>} : memref<128x256xf32, #tpu.memory_space<vmem>>, vector<128x256xf32>,
    %c0_48 = arith.constant 0 : index
    %c0_49 = arith.constant 0 : index
    %55 = vector.load %arg5[%c0_48, %c0_49] : memref<128x256xf32, #tpu.memory_space<vmem>>, vector<128x256xf32>
    %56 = vector.extract_strided_slice %34 {offsets = [0, 1, 0], sizes = [8, 15, 256], strides = [1, 1, 1]} : vector<8x16x256xbf16> to vector<8x15x256xbf16>
    %57 = tpu.concatenate %56, %0 in 1 : vector<8x15x256xbf16>, vector<8x1x256xbf16> -> vector<8x16x256xbf16>
    %58 = vector.shape_cast %57 : vector<8x16x256xbf16> to vector<128x256xbf16>
    %c5 = arith.constant 5 : index
    %c0_50 = arith.constant 0 : index
    %c0_51 = arith.constant 0 : index
    %59 = vector.load %arg2[%c5, %c0_50, %c0_51] : memref<12x256x256xbf16, #tpu.memory_space<vmem>>, vector<1x256x256xbf16>
    %60 = vector.shape_cast %59 : vector<1x256x256xbf16> to vector<256x256xbf16>
    %cst_52 = arith.constant dense<0.000000e+00> : vector<128x256xf32>
    %61 = tpu.matmul %58, %60, %cst_52 {dimension_numbers = #tpu.dot_dimension_numbers<[1], [0], [0], [1], [0, 0, 1, 1], [], []>} : vector<128x256xbf16>, vector<256x256xbf16>, vector<128x256xf32> -> vector<128x256xf32>
    %62 = arith.addf %55, %61 : vector<128x256xf32>
    %c0_53 = arith.constant 0 : index
    %c0_54 = arith.constant 0 : index
    %63 = vector.load %arg5[%c0_53, %c0_54] : memref<128x256xf32, #tpu.memory_space<vmem>>, vector<128x256xf32>
    tpu.vector_store %arg5[%c0_53, %c0_54], %62 {strides = array<i32>} : memref<128x256xf32, #tpu.memory_space<vmem>>, vector<128x256xf32>,
    %c0_55 = arith.constant 0 : index
    %c0_56 = arith.constant 0 : index
    %64 = vector.load %arg5[%c0_55, %c0_56] : memref<128x256xf32, #tpu.memory_space<vmem>>, vector<128x256xf32>
    %65 = vector.shape_cast %64 : vector<128x256xf32> to vector<8x16x256xf32>
    %66 = math.tanh %65 : vector<8x16x256xf32>
    %67 = arith.truncf %66 : vector<8x16x256xf32> to vector<8x16x256xbf16>
    %c2_57 = arith.constant 2 : index
    %c0_58 = arith.constant 0 : index
    %68 = vector.load %arg3[%c2_57, %c0_58] : memref<4x256xf32, #tpu.memory_space<vmem>>, vector<1x256xf32>
    %69 = vector.shape_cast %68 : vector<1x256xf32> to vector<1x256xf32>
    %70 = vector.broadcast %69 : vector<1x256xf32> to vector<128x256xf32>
    %c0_59 = arith.constant 0 : index
    %c0_60 = arith.constant 0 : index
    %71 = vector.load %arg5[%c0_59, %c0_60] : memref<128x256xf32, #tpu.memory_space<vmem>>, vector<128x256xf32>
    tpu.vector_store %arg5[%c0_59, %c0_60], %70 {strides = array<i32>} : memref<128x256xf32, #tpu.memory_space<vmem>>, vector<128x256xf32>,
    %c0_61 = arith.constant 0 : index
    %c0_62 = arith.constant 0 : index
    %72 = vector.load %arg5[%c0_61, %c0_62] : memref<128x256xf32, #tpu.memory_space<vmem>>, vector<128x256xf32>
    %73 = vector.extract_strided_slice %67 {offsets = [0, 0, 0], sizes = [8, 15, 256], strides = [1, 1, 1]} : vector<8x16x256xbf16> to vector<8x15x256xbf16>
    %74 = tpu.concatenate %0, %73 in 1 : vector<8x1x256xbf16>, vector<8x15x256xbf16> -> vector<8x16x256xbf16>
    %75 = vector.shape_cast %74 : vector<8x16x256xbf16> to vector<128x256xbf16>
    %c6 = arith.constant 6 : index
    %c0_63 = arith.constant 0 : index
    %c0_64 = arith.constant 0 : index
    %76 = vector.load %arg2[%c6, %c0_63, %c0_64] : memref<12x256x256xbf16, #tpu.memory_space<vmem>>, vector<1x256x256xbf16>
    %77 = vector.shape_cast %76 : vector<1x256x256xbf16> to vector<256x256xbf16>
    %cst_65 = arith.constant dense<0.000000e+00> : vector<128x256xf32>
    %78 = tpu.matmul %75, %77, %cst_65 {dimension_numbers = #tpu.dot_dimension_numbers<[1], [0], [0], [1], [0, 0, 1, 1], [], []>} : vector<128x256xbf16>, vector<256x256xbf16>, vector<128x256xf32> -> vector<128x256xf32>
    %79 = arith.addf %72, %78 : vector<128x256xf32>
    %c0_66 = arith.constant 0 : index
    %c0_67 = arith.constant 0 : index
    %80 = vector.load %arg5[%c0_66, %c0_67] : memref<128x256xf32, #tpu.memory_space<vmem>>, vector<128x256xf32>
    tpu.vector_store %arg5[%c0_66, %c0_67], %79 {strides = array<i32>} : memref<128x256xf32, #tpu.memory_space<vmem>>, vector<128x256xf32>,
    %c0_68 = arith.constant 0 : index
    %c0_69 = arith.constant 0 : index
    %81 = vector.load %arg5[%c0_68, %c0_69] : memref<128x256xf32, #tpu.memory_space<vmem>>, vector<128x256xf32>
    %82 = vector.shape_cast %67 : vector<8x16x256xbf16> to vector<128x256xbf16>
    %c7 = arith.constant 7 : index
    %c0_70 = arith.constant 0 : index
    %c0_71 = arith.constant 0 : index
    %83 = vector.load %arg2[%c7, %c0_70, %c0_71] : memref<12x256x256xbf16, #tpu.memory_space<vmem>>, vector<1x256x256xbf16>
    %84 = vector.shape_cast %83 : vector<1x256x256xbf16> to vector<256x256xbf16>
    %cst_72 = arith.constant dense<0.000000e+00> : vector<128x256xf32>
    %85 = tpu.matmul %82, %84, %cst_72 {dimension_numbers = #tpu.dot_dimension_numbers<[1], [0], [0], [1], [0, 0, 1, 1], [], []>} : vector<128x256xbf16>, vector<256x256xbf16>, vector<128x256xf32> -> vector<128x256xf32>
    %86 = arith.addf %81, %85 : vector<128x256xf32>
    %c0_73 = arith.constant 0 : index
    %c0_74 = arith.constant 0 : index
    %87 = vector.load %arg5[%c0_73, %c0_74] : memref<128x256xf32, #tpu.memory_space<vmem>>, vector<128x256xf32>
    tpu.vector_store %arg5[%c0_73, %c0_74], %86 {strides = array<i32>} : memref<128x256xf32, #tpu.memory_space<vmem>>, vector<128x256xf32>,
    %c0_75 = arith.constant 0 : index
    %c0_76 = arith.constant 0 : index
    %88 = vector.load %arg5[%c0_75, %c0_76] : memref<128x256xf32, #tpu.memory_space<vmem>>, vector<128x256xf32>
    %89 = vector.extract_strided_slice %67 {offsets = [0, 1, 0], sizes = [8, 15, 256], strides = [1, 1, 1]} : vector<8x16x256xbf16> to vector<8x15x256xbf16>
    %90 = tpu.concatenate %89, %0 in 1 : vector<8x15x256xbf16>, vector<8x1x256xbf16> -> vector<8x16x256xbf16>
    %91 = vector.shape_cast %90 : vector<8x16x256xbf16> to vector<128x256xbf16>
    %c8 = arith.constant 8 : index
    %c0_77 = arith.constant 0 : index
    %c0_78 = arith.constant 0 : index
    %92 = vector.load %arg2[%c8, %c0_77, %c0_78] : memref<12x256x256xbf16, #tpu.memory_space<vmem>>, vector<1x256x256xbf16>
    %93 = vector.shape_cast %92 : vector<1x256x256xbf16> to vector<256x256xbf16>
    %cst_79 = arith.constant dense<0.000000e+00> : vector<128x256xf32>
    %94 = tpu.matmul %91, %93, %cst_79 {dimension_numbers = #tpu.dot_dimension_numbers<[1], [0], [0], [1], [0, 0, 1, 1], [], []>} : vector<128x256xbf16>, vector<256x256xbf16>, vector<128x256xf32> -> vector<128x256xf32>
    %95 = arith.addf %88, %94 : vector<128x256xf32>
    %c0_80 = arith.constant 0 : index
    %c0_81 = arith.constant 0 : index
    %96 = vector.load %arg5[%c0_80, %c0_81] : memref<128x256xf32, #tpu.memory_space<vmem>>, vector<128x256xf32>
    tpu.vector_store %arg5[%c0_80, %c0_81], %95 {strides = array<i32>} : memref<128x256xf32, #tpu.memory_space<vmem>>, vector<128x256xf32>,
    %c0_82 = arith.constant 0 : index
    %c0_83 = arith.constant 0 : index
    %97 = vector.load %arg5[%c0_82, %c0_83] : memref<128x256xf32, #tpu.memory_space<vmem>>, vector<128x256xf32>
    %98 = vector.shape_cast %97 : vector<128x256xf32> to vector<8x16x256xf32>
    %99 = arith.addf %98, %32 : vector<8x16x256xf32>
    %100 = arith.truncf %99 : vector<8x16x256xf32> to vector<8x16x256xbf16>
    %c3_84 = arith.constant 3 : index
    %c0_85 = arith.constant 0 : index
    %101 = vector.load %arg3[%c3_84, %c0_85] : memref<4x256xf32, #tpu.memory_space<vmem>>, vector<1x256xf32>
    %102 = vector.shape_cast %101 : vector<1x256xf32> to vector<1x256xf32>
    %103 = vector.broadcast %102 : vector<1x256xf32> to vector<128x256xf32>
    %c0_86 = arith.constant 0 : index
    %c0_87 = arith.constant 0 : index
    %104 = vector.load %arg5[%c0_86, %c0_87] : memref<128x256xf32, #tpu.memory_space<vmem>>, vector<128x256xf32>
    tpu.vector_store %arg5[%c0_86, %c0_87], %103 {strides = array<i32>} : memref<128x256xf32, #tpu.memory_space<vmem>>, vector<128x256xf32>,
    %c0_88 = arith.constant 0 : index
    %c0_89 = arith.constant 0 : index
    %105 = vector.load %arg5[%c0_88, %c0_89] : memref<128x256xf32, #tpu.memory_space<vmem>>, vector<128x256xf32>
    %106 = vector.extract_strided_slice %100 {offsets = [0, 0, 0], sizes = [8, 15, 256], strides = [1, 1, 1]} : vector<8x16x256xbf16> to vector<8x15x256xbf16>
    %107 = tpu.concatenate %0, %106 in 1 : vector<8x1x256xbf16>, vector<8x15x256xbf16> -> vector<8x16x256xbf16>
    %108 = vector.shape_cast %107 : vector<8x16x256xbf16> to vector<128x256xbf16>
    %c9 = arith.constant 9 : index
    %c0_90 = arith.constant 0 : index
    %c0_91 = arith.constant 0 : index
    %109 = vector.load %arg2[%c9, %c0_90, %c0_91] : memref<12x256x256xbf16, #tpu.memory_space<vmem>>, vector<1x256x256xbf16>
    %110 = vector.shape_cast %109 : vector<1x256x256xbf16> to vector<256x256xbf16>
    %cst_92 = arith.constant dense<0.000000e+00> : vector<128x256xf32>
    %111 = tpu.matmul %108, %110, %cst_92 {dimension_numbers = #tpu.dot_dimension_numbers<[1], [0], [0], [1], [0, 0, 1, 1], [], []>} : vector<128x256xbf16>, vector<256x256xbf16>, vector<128x256xf32> -> vector<128x256xf32>
    %112 = arith.addf %105, %111 : vector<128x256xf32>
    %c0_93 = arith.constant 0 : index
    %c0_94 = arith.constant 0 : index
    %113 = vector.load %arg5[%c0_93, %c0_94] : memref<128x256xf32, #tpu.memory_space<vmem>>, vector<128x256xf32>
    tpu.vector_store %arg5[%c0_93, %c0_94], %112 {strides = array<i32>} : memref<128x256xf32, #tpu.memory_space<vmem>>, vector<128x256xf32>,
    %c0_95 = arith.constant 0 : index
    %c0_96 = arith.constant 0 : index
    %114 = vector.load %arg5[%c0_95, %c0_96] : memref<128x256xf32, #tpu.memory_space<vmem>>, vector<128x256xf32>
    %115 = vector.shape_cast %100 : vector<8x16x256xbf16> to vector<128x256xbf16>
    %c10 = arith.constant 10 : index
    %c0_97 = arith.constant 0 : index
    %c0_98 = arith.constant 0 : index
    %116 = vector.load %arg2[%c10, %c0_97, %c0_98] : memref<12x256x256xbf16, #tpu.memory_space<vmem>>, vector<1x256x256xbf16>
    %117 = vector.shape_cast %116 : vector<1x256x256xbf16> to vector<256x256xbf16>
    %cst_99 = arith.constant dense<0.000000e+00> : vector<128x256xf32>
    %118 = tpu.matmul %115, %117, %cst_99 {dimension_numbers = #tpu.dot_dimension_numbers<[1], [0], [0], [1], [0, 0, 1, 1], [], []>} : vector<128x256xbf16>, vector<256x256xbf16>, vector<128x256xf32> -> vector<128x256xf32>
    %119 = arith.addf %114, %118 : vector<128x256xf32>
    %c0_100 = arith.constant 0 : index
    %c0_101 = arith.constant 0 : index
    %120 = vector.load %arg5[%c0_100, %c0_101] : memref<128x256xf32, #tpu.memory_space<vmem>>, vector<128x256xf32>
    tpu.vector_store %arg5[%c0_100, %c0_101], %119 {strides = array<i32>} : memref<128x256xf32, #tpu.memory_space<vmem>>, vector<128x256xf32>,
    %c0_102 = arith.constant 0 : index
    %c0_103 = arith.constant 0 : index
    %121 = vector.load %arg5[%c0_102, %c0_103] : memref<128x256xf32, #tpu.memory_space<vmem>>, vector<128x256xf32>
    %122 = vector.extract_strided_slice %100 {offsets = [0, 1, 0], sizes = [8, 15, 256], strides = [1, 1, 1]} : vector<8x16x256xbf16> to vector<8x15x256xbf16>
    %123 = tpu.concatenate %122, %0 in 1 : vector<8x15x256xbf16>, vector<8x1x256xbf16> -> vector<8x16x256xbf16>
    %124 = vector.shape_cast %123 : vector<8x16x256xbf16> to vector<128x256xbf16>
    %c11 = arith.constant 11 : index
    %c0_104 = arith.constant 0 : index
    %c0_105 = arith.constant 0 : index
    %125 = vector.load %arg2[%c11, %c0_104, %c0_105] : memref<12x256x256xbf16, #tpu.memory_space<vmem>>, vector<1x256x256xbf16>
    %126 = vector.shape_cast %125 : vector<1x256x256xbf16> to vector<256x256xbf16>
    %cst_106 = arith.constant dense<0.000000e+00> : vector<128x256xf32>
    %127 = tpu.matmul %124, %126, %cst_106 {dimension_numbers = #tpu.dot_dimension_numbers<[1], [0], [0], [1], [0, 0, 1, 1], [], []>} : vector<128x256xbf16>, vector<256x256xbf16>, vector<128x256xf32> -> vector<128x256xf32>
    %128 = arith.addf %121, %127 : vector<128x256xf32>
    %c0_107 = arith.constant 0 : index
    %c0_108 = arith.constant 0 : index
    %129 = vector.load %arg5[%c0_107, %c0_108] : memref<128x256xf32, #tpu.memory_space<vmem>>, vector<128x256xf32>
    tpu.vector_store %arg5[%c0_107, %c0_108], %128 {strides = array<i32>} : memref<128x256xf32, #tpu.memory_space<vmem>>, vector<128x256xf32>,
    %c0_109 = arith.constant 0 : index
    %c0_110 = arith.constant 0 : index
    %130 = vector.load %arg5[%c0_109, %c0_110] : memref<128x256xf32, #tpu.memory_space<vmem>>, vector<128x256xf32>
    %131 = vector.shape_cast %130 : vector<128x256xf32> to vector<8x16x256xf32>
    %c0_111 = arith.constant 0 : index
    %c0_112 = arith.constant 0 : index
    %c0_113 = arith.constant 0 : index
    %132 = vector.load %arg4[%c0_111, %c0_112, %c0_113] : memref<8x16x256xf32, #tpu.memory_space<vmem>>, vector<8x16x256xf32>
    tpu.vector_store %arg4[%c0_111, %c0_112, %c0_113], %131 {strides = array<i32>} : memref<8x16x256xf32, #tpu.memory_space<vmem>>, vector<8x16x256xf32>,
    return
  }
  func.func @transform_0(%arg0: i32) -> (i32, i32, i32) {
    %c0_i32 = arith.constant 0 : i32
    %c0_i32_0 = arith.constant 0 : i32
    %c0_i32_1 = arith.constant 0 : i32
    return %arg0, %c0_i32, %c0_i32_0 : i32, i32, i32
  }
  func.func @transform_1(%arg0: i32) -> (i32, i32, i32) {
    %c0_i32 = arith.constant 0 : i32
    %c0_i32_0 = arith.constant 0 : i32
    %c0_i32_1 = arith.constant 0 : i32
    %c0_i32_2 = arith.constant 0 : i32
    return %c0_i32, %c0_i32_0, %c0_i32_1 : i32, i32, i32
  }
  func.func @transform_2(%arg0: i32) -> (i32, i32) {
    %c0_i32 = arith.constant 0 : i32
    %c0_i32_0 = arith.constant 0 : i32
    %c0_i32_1 = arith.constant 0 : i32
    return %c0_i32, %c0_i32_0 : i32, i32
  }
  func.func @transform_3(%arg0: i32) -> (i32, i32, i32) {
    %c0_i32 = arith.constant 0 : i32
    %c0_i32_0 = arith.constant 0 : i32
    %c0_i32_1 = arith.constant 0 : i32
    return %arg0, %c0_i32, %c0_i32_0 : i32, i32, i32
  }
}

</mosaic_0001>

<llo_original>
// kernel: _apply.1
$region0: #{_apply.1}
  #allocation0 [shape = 'u32[]', space=smem, size = 0x4, offset = 0x4, fixed_abs, tag = 'smem constant byte address 0x4 - core index']
  #allocation1 [shape = 'u32[144,128]{1,0:T(1,128)}', space=vmem, size = 0x12000, scoped, tag = 'internal scratch']
  #allocation2 [shape = 'f32[128,256]{1,0:T(8,128)}', space=vmem, size = 0x20000, scoped, tag = 'scratch operand']
  %s0 = inlined_call_operand.vmem [shape: bf16[8,16,256], index: 0, kind: input, shape index: {}]
  %s1 = inlined_call_operand.vmem [shape: bf16[12,256,256], index: 1, kind: input, shape index: {}]
  %s2 = inlined_call_operand.vmem [shape: f32[4,256], index: 2, kind: input, shape index: {}]
  %s3 = inlined_call_operand.vmem [shape: f32[8,16,256], index: 3, kind: output, shape index: {}]
  %s4 = sld [smem:[#allocation0]]
  $region22: #{_apply.1} parent=0
    _
  %s6 = ssub.s32 1, %s4
  %s7 = scalar_select 0, %s6, %s4
  // Predicated region
  $region2: #{_apply.1} parent=0 // pred_check
    _
  $region3: #{_apply.1} parent=0 // pred_check_branch
    %9 = sbr.rel (0) target = $region5
  $region4: #{_apply.1} parent=0 // pred_region
    _
  $region5: #{_apply.1} parent=0 // pred_fallthru
    _
  // Predicated region
  $region6: #{_apply.1} parent=0 // pred_check
    _
  $region7: #{_apply.1} parent=0 // pred_check_branch
    %11 = sbr.rel (0) target = $region9
  $region8: #{_apply.1} parent=0 // pred_region
    _
  $region9: #{_apply.1} parent=0 // pred_fallthru
    _
  // Predicated region
  $region10: #{_apply.1} parent=0 // pred_check
    _
  $region11: #{_apply.1} parent=0 // pred_check_branch
    %13 = sbr.rel (0) target = $region13
  $region12: #{_apply.1} parent=0 // pred_region
    _
  $region13: #{_apply.1} parent=0 // pred_fallthru
    _
  %v15 = vld [vmem:[%s0] sm:$0xff]
  %v16 = vld [vmem:[%s0 + $0x8] sm:$0xff]
  %v17 = vld [vmem:[%s0 + $0x10] sm:$0xff]
  %v18 = vld [vmem:[%s0 + $0x18] sm:$0xff]
  %v19 = vld [vmem:[%s0 + $0x20] sm:$0xff]
  %v20 = vld [vmem:[%s0 + $0x28] sm:$0xff]
  %v21 = vld [vmem:[%s0 + $0x30] sm:$0xff]
  %v22 = vld [vmem:[%s0 + $0x38] sm:$0xff]
  %v23 = vld [vmem:[%s0 + $0x40] sm:$0xff]
  %v24 = vld [vmem:[%s0 + $0x48] sm:$0xff]
  %v25 = vld [vmem:[%s0 + $0x50] sm:$0xff]
  %v26 = vld [vmem:[%s0 + $0x58] sm:$0xff]
  %v27 = vld [vmem:[%s0 + $0x60] sm:$0xff]
  %v28 = vld [vmem:[%s0 + $0x68] sm:$0xff]
  %v29 = vld [vmem:[%s0 + $0x70] sm:$0xff]
  %v30 = vld [vmem:[%s0 + $0x78] sm:$0xff]
  %v31 = vld [vmem:[%s2] ss:$4 sm:$0x3]
  %v33 = vlaneseq
  %v34 = vshrl.u32 %v33, 7
  %v35 = vsub.s32 0, %v34
  %v36 = vrot.slane %v31, %v35
  %v37 = vlaneseq
  %v38 = vshrl.u32 %v37, 7
  %v39 = vsub.s32 1, %v38
  %v40 = vrot.slane %v31, %v39
  %43 = vst [vmem:[#allocation2] sm:$0xff] %v36
  %44 = vst [vmem:[#allocation2 + $0x8] sm:$0xff] %v40
  %45 = vst [vmem:[#allocation2 + $0x10] sm:$0xff] %v36
  %46 = vst [vmem:[#allocation2 + $0x18] sm:$0xff] %v40
  %47 = vst [vmem:[#allocation2 + $0x20] sm:$0xff] %v36
  %48 = vst [vmem:[#allocation2 + $0x28] sm:$0xff] %v40
  %49 = vst [vmem:[#allocation2 + $0x30] sm:$0xff] %v36
  %50 = vst [vmem:[#allocation2 + $0x38] sm:$0xff] %v40
  %51 = vst [vmem:[#allocation2 + $0x40] sm:$0xff] %v36
  %52 = vst [vmem:[#allocation2 + $0x48] sm:$0xff] %v40
  %53 = vst [vmem:[#allocation2 + $0x50] sm:$0xff] %v36
  %54 = vst [vmem:[#allocation2 + $0x58] sm:$0xff] %v40
  %55 = vst [vmem:[#allocation2 + $0x60] sm:$0xff] %v36
  %56 = vst [vmem:[#allocation2 + $0x68] sm:$0xff] %v40
  %57 = vst [vmem:[#allocation2 + $0x70] sm:$0xff] %v36
  %58 = vst [vmem:[#allocation2 + $0x78] sm:$0xff] %v40
  %59 = vst [vmem:[#allocation2 + $0x80] sm:$0xff] %v36
  %60 = vst [vmem:[#allocation2 + $0x88] sm:$0xff] %v40
  %61 = vst [vmem:[#allocation2 + $0x90] sm:$0xff] %v36
  %62 = vst [vmem:[#allocation2 + $0x98] sm:$0xff] %v40
  %63 = vst [vmem:[#allocation2 + $0xa0] sm:$0xff] %v36
  %64 = vst [vmem:[#allocation2 + $0xa8] sm:$0xff] %v40
  %65 = vst [vmem:[#allocation2 + $0xb0] sm:$0xff] %v36
  %66 = vst [vmem:[#allocation2 + $0xb8] sm:$0xff] %v40
  %67 = vst [vmem:[#allocation2 + $0xc0] sm:$0xff] %v36
  %68 = vst [vmem:[#allocation2 + $0xc8] sm:$0xff] %v40
  %69 = vst [vmem:[#allocation2 + $0xd0] sm:$0xff] %v36
  %70 = vst [vmem:[#allocation2 + $0xd8] sm:$0xff] %v40
  %71 = vst [vmem:[#allocation2 + $0xe0] sm:$0xff] %v36
  %72 = vst [vmem:[#allocation2 + $0xe8] sm:$0xff] %v40
  %73 = vst [vmem:[#allocation2 + $0xf0] sm:$0xff] %v36
  %74 = vst [vmem:[#allocation2 + $0xf8] sm:$0xff] %v40
  %v75 = vld [vmem:[#allocation2] sm:$0xff]
  %v76 = vld [vmem:[#allocation2 + $0x8] sm:$0xff]
  %v77 = vld [vmem:[#allocation2 + $0x10] sm:$0xff]
  %v78 = vld [vmem:[#allocation2 + $0x18] sm:$0xff]
  %v79 = vld [vmem:[#allocation2 + $0x20] sm:$0xff]
  %v80 = vld [vmem:[#allocation2 + $0x28] sm:$0xff]
  %v81 = vld [vmem:[#allocation2 + $0x30] sm:$0xff]
  %v82 = vld [vmem:[#allocation2 + $0x38] sm:$0xff]
  %v83 = vld [vmem:[#allocation2 + $0x40] sm:$0xff]
  %v84 = vld [vmem:[#allocation2 + $0x48] sm:$0xff]
  %v85 = vld [vmem:[#allocation2 + $0x50] sm:$0xff]
  %v86 = vld [vmem:[#allocation2 + $0x58] sm:$0xff]
  %v87 = vld [vmem:[#allocation2 + $0x60] sm:$0xff]
  %v88 = vld [vmem:[#allocation2 + $0x68] sm:$0xff]
  %v89 = vld [vmem:[#allocation2 + $0x70] sm:$0xff]
  %v90 = vld [vmem:[#allocation2 + $0x78] sm:$0xff]
  %v91 = vld [vmem:[#allocation2 + $0x80] sm:$0xff]
  %v92 = vld [vmem:[#allocation2 + $0x88] sm:$0xff]
  %v93 = vld [vmem:[#allocation2 + $0x90] sm:$0xff]
  %v94 = vld [vmem:[#allocation2 + $0x98] sm:$0xff]
  %v95 = vld [vmem:[#allocation2 + $0xa0] sm:$0xff]
  %v96 = vld [vmem:[#allocation2 + $0xa8] sm:$0xff]
  %v97 = vld [vmem:[#allocation2 + $0xb0] sm:$0xff]
  %v98 = vld [vmem:[#allocation2 + $0xb8] sm:$0xff]
  %v99 = vld [vmem:[#allocation2 + $0xc0] sm:$0xff]
  %v100 = vld [vmem:[#allocation2 + $0xc8] sm:$0xff]
  %v101 = vld [vmem:[#allocation2 + $0xd0] sm:$0xff]
  %v102 = vld [vmem:[#allocation2 + $0xd8] sm:$0xff]
  %v103 = vld [vmem:[#allocation2 + $0xe0] sm:$0xff]
  %v104 = vld [vmem:[#allocation2 + $0xe8] sm:$0xff]
  %v105 = vld [vmem:[#allocation2 + $0xf0] sm:$0xff]
  %v106 = vld [vmem:[#allocation2 + $0xf8] sm:$0xff]
  %v123 = vunpack.c.l.b16 %v15
  %v124 = vunpack.c.h.b16 %v15
  %v125 = vunpack.c.l.b16 %v16
  %v126 = vunpack.c.h.b16 %v16
  %v127 = vunpack.c.l.b16 %v17
  %v128 = vunpack.c.h.b16 %v17
  %v129 = vunpack.c.l.b16 %v18
  %v130 = vunpack.c.h.b16 %v18
  %v131 = vunpack.c.l.b16 %v19
  %v132 = vunpack.c.h.b16 %v19
  %v133 = vunpack.c.l.b16 %v20
  %v134 = vunpack.c.h.b16 %v20
  %v135 = vunpack.c.l.b16 %v21
  %v136 = vunpack.c.h.b16 %v21
  %v137 = vunpack.c.l.b16 %v22
  %v138 = vunpack.c.h.b16 %v22
  %v139 = vunpack.c.l.b16 %v23
  %v140 = vunpack.c.h.b16 %v23
  %v141 = vunpack.c.l.b16 %v24
  %v142 = vunpack.c.h.b16 %v24
  %v143 = vunpack.c.l.b16 %v25
  %v144 = vunpack.c.h.b16 %v25
  %v145 = vunpack.c.l.b16 %v26
  %v146 = vunpack.c.h.b16 %v26
  %v147 = vunpack.c.l.b16 %v27
  %v148 = vunpack.c.h.b16 %v27
  %v149 = vunpack.c.l.b16 %v28
  %v150 = vunpack.c.h.b16 %v28
  %v151 = vunpack.c.l.b16 %v29
  %v152 = vunpack.c.h.b16 %v29
  %v153 = vunpack.c.l.b16 %v30
  %v154 = vunpack.c.h.b16 %v30
  %v155 = vpack.c.b16 %v125, %v123
  %v156 = vpack.c.b16 %v126, %v124
  %v157 = vpack.c.b16 %v129, %v127
  %v158 = vpack.c.b16 %v130, %v128
  %v159 = vpack.c.b16 %v133, %v131
  %v160 = vpack.c.b16 %v134, %v132
  %v161 = vpack.c.b16 %v137, %v135
  %v162 = vpack.c.b16 %v138, %v136
  %v163 = vpack.c.b16 %v141, %v139
  %v164 = vpack.c.b16 %v142, %v140
  %v165 = vpack.c.b16 %v145, %v143
  %v166 = vpack.c.b16 %v146, %v144
  %v167 = vpack.c.b16 %v149, %v147
  %v168 = vpack.c.b16 %v150, %v148
  %v169 = vpack.c.b16 %v153, %v151
  %v170 = vpack.c.b16 %v154, %v152
  %v172 = vshrl.u32 %v155, 16
  %v174 = vrot.slane %v172, 7
  %v175 = vshll.u32 %v155, 16
  %v177 = vor.u32 %v174, %v175
  %v179 = vshrl.u32 %v156, 16
  %v181 = vrot.slane %v179, 7
  %v182 = vshll.u32 %v156, 16
  %v184 = vor.u32 %v181, %v182
  %v186 = vshrl.u32 %v157, 16
  %v188 = vrot.slane %v186, 7
  %v189 = vshll.u32 %v157, 16
  %v191 = vor.u32 %v188, %v189
  %v193 = vshrl.u32 %v158, 16
  %v195 = vrot.slane %v193, 7
  %v196 = vshll.u32 %v158, 16
  %v198 = vor.u32 %v195, %v196
  %v200 = vshrl.u32 %v159, 16
  %v202 = vrot.slane %v200, 7
  %v203 = vshll.u32 %v159, 16
  %v205 = vor.u32 %v202, %v203
  %v207 = vshrl.u32 %v160, 16
  %v209 = vrot.slane %v207, 7
  %v210 = vshll.u32 %v160, 16
  %v212 = vor.u32 %v209, %v210
  %v214 = vshrl.u32 %v161, 16
  %v216 = vrot.slane %v214, 7
  %v217 = vshll.u32 %v161, 16
  %v219 = vor.u32 %v216, %v217
  %v221 = vshrl.u32 %v162, 16
  %v223 = vrot.slane %v221, 7
  %v224 = vshll.u32 %v162, 16
  %v226 = vor.u32 %v223, %v224
  %v228 = vshrl.u32 %v163, 16
  %v230 = vrot.slane %v228, 7
  %v231 = vshll.u32 %v163, 16
  %v233 = vor.u32 %v230, %v231
  %v235 = vshrl.u32 %v164, 16
  %v237 = vrot.slane %v235, 7
  %v238 = vshll.u32 %v164, 16
  %v240 = vor.u32 %v237, %v238
  %v242 = vshrl.u32 %v165, 16
  %v244 = vrot.slane %v242, 7
  %v245 = vshll.u32 %v165, 16
  %v247 = vor.u32 %v244, %v245
  %v249 = vshrl.u32 %v166, 16
  %v251 = vrot.slane %v249, 7
  %v252 = vshll.u32 %v166, 16
  %v254 = vor.u32 %v251, %v252
  %v256 = vshrl.u32 %v167, 16
  %v258 = vrot.slane %v256, 7
  %v259 = vshll.u32 %v167, 16
  %v261 = vor.u32 %v258, %v259
  %v263 = vshrl.u32 %v168, 16
  %v265 = vrot.slane %v263, 7
  %v266 = vshll.u32 %v168, 16
  %v268 = vor.u32 %v265, %v266
  %v270 = vshrl.u32 %v169, 16
  %v272 = vrot.slane %v270, 7
  %v273 = vshll.u32 %v169, 16
  %v275 = vor.u32 %v272, %v273
  %v277 = vshrl.u32 %v170, 16
  %v279 = vrot.slane %v277, 7
  %v280 = vshll.u32 %v170, 16
  %v282 = vor.u32 %v279, %v280
  %vm299 = vcmask 1040384
  %vm300 = vsmask.f32 256
  %vm301 = vmand %vm299, %vm300
  %v302 = vsel %vm301, 0, %v177
  %v303 = vsel %vm301, 0, %v184
  %v304 = vsel %vm301, 0, %v191
  %v305 = vsel %vm301, 0, %v198
  %v306 = vsel %vm301, 0, %v205
  %v307 = vsel %vm301, 0, %v212
  %v308 = vsel %vm301, 0, %v219
  %v309 = vsel %vm301, 0, %v226
  %v310 = vsel %vm301, 0, %v233
  %v311 = vsel %vm301, 0, %v240
  %v312 = vsel %vm301, 0, %v247
  %v313 = vsel %vm301, 0, %v254
  %v314 = vsel %vm301, 0, %v261
  %v315 = vsel %vm301, 0, %v268
  %v316 = vsel %vm301, 0, %v275
  %v317 = vsel %vm301, 0, %v282
  %v318 = vld [vmem:[%s1] sm:$0xff]
  %v319 = vld [vmem:[%s1 + $0x8] sm:$0xff]
  %v320 = vld [vmem:[%s1 + $0x10] sm:$0xff]
  %v321 = vld [vmem:[%s1 + $0x18] sm:$0xff]
  %v322 = vld [vmem:[%s1 + $0x20] sm:$0xff]
  %v323 = vld [vmem:[%s1 + $0x28] sm:$0xff]
  %v324 = vld [vmem:[%s1 + $0x30] sm:$0xff]
  %v325 = vld [vmem:[%s1 + $0x38] sm:$0xff]
  %v326 = vld [vmem:[%s1 + $0x40] sm:$0xff]
  %v327 = vld [vmem:[%s1 + $0x48] sm:$0xff]
  %v328 = vld [vmem:[%s1 + $0x50] sm:$0xff]
  %v329 = vld [vmem:[%s1 + $0x58] sm:$0xff]
  %v330 = vld [vmem:[%s1 + $0x60] sm:$0xff]
  %v331 = vld [vmem:[%s1 + $0x68] sm:$0xff]
  %v332 = vld [vmem:[%s1 + $0x70] sm:$0xff]
  %v333 = vld [vmem:[%s1 + $0x78] sm:$0xff]
  %v334 = vld [vmem:[%s1 + $0x80] sm:$0xff]
  %v335 = vld [vmem:[%s1 + $0x88] sm:$0xff]
  %v336 = vld [vmem:[%s1 + $0x90] sm:$0xff]
  %v337 = vld [vmem:[%s1 + $0x98] sm:$0xff]
  %v338 = vld [vmem:[%s1 + $0xa0] sm:$0xff]
  %v339 = vld [vmem:[%s1 + $0xa8] sm:$0xff]
  %v340 = vld [vmem:[%s1 + $0xb0] sm:$0xff]
  %v341 = vld [vmem:[%s1 + $0xb8] sm:$0xff]
  %v342 = vld [vmem:[%s1 + $0xc0] sm:$0xff]
  %v343 = vld [vmem:[%s1 + $0xc8] sm:$0xff]
  %v344 = vld [vmem:[%s1 + $0xd0] sm:$0xff]
  %v345 = vld [vmem:[%s1 + $0xd8] sm:$0xff]
  %v346 = vld [vmem:[%s1 + $0xe0] sm:$0xff]
  %v347 = vld [vmem:[%s1 + $0xe8] sm:$0xff]
  %v348 = vld [vmem:[%s1 + $0xf0] sm:$0xff]
  %v349 = vld [vmem:[%s1 + $0xf8] sm:$0xff]
  %v382 = vunpack.c.l.b16 %v318
  %v383 = vunpack.c.h.b16 %v318
  %v384 = vunpack.c.l.b16 %v319
  %v385 = vunpack.c.h.b16 %v319
  %v386 = vunpack.c.l.b16 %v320
  %v387 = vunpack.c.h.b16 %v320
  %v388 = vunpack.c.l.b16 %v321
  %v389 = vunpack.c.h.b16 %v321
  %v390 = vunpack.c.l.b16 %v322
  %v391 = vunpack.c.h.b16 %v322
  %v392 = vunpack.c.l.b16 %v323
  %v393 = vunpack.c.h.b16 %v323
  %v394 = vunpack.c.l.b16 %v324
  %v395 = vunpack.c.h.b16 %v324
  %v396 = vunpack.c.l.b16 %v325
  %v397 = vunpack.c.h.b16 %v325
  %v398 = vunpack.c.l.b16 %v326
  %v399 = vunpack.c.h.b16 %v326
  %v400 = vunpack.c.l.b16 %v327
  %v401 = vunpack.c.h.b16 %v327
  %v402 = vunpack.c.l.b16 %v328
  %v403 = vunpack.c.h.b16 %v328
  %v404 = vunpack.c.l.b16 %v329
  %v405 = vunpack.c.h.b16 %v329
  %v406 = vunpack.c.l.b16 %v330
  %v407 = vunpack.c.h.b16 %v330
  %v408 = vunpack.c.l.b16 %v331
  %v409 = vunpack.c.h.b16 %v331
  %v410 = vunpack.c.l.b16 %v332
  %v411 = vunpack.c.h.b16 %v332
  %v412 = vunpack.c.l.b16 %v333
  %v413 = vunpack.c.h.b16 %v333
  %v414 = vunpack.c.l.b16 %v334
  %v415 = vunpack.c.h.b16 %v334
  %v416 = vunpack.c.l.b16 %v335
  %v417 = vunpack.c.h.b16 %v335
  %v418 = vunpack.c.l.b16 %v336
  %v419 = vunpack.c.h.b16 %v336
  %v420 = vunpack.c.l.b16 %v337
  %v421 = vunpack.c.h.b16 %v337
  %v422 = vunpack.c.l.b16 %v338
  %v423 = vunpack.c.h.b16 %v338
  %v424 = vunpack.c.l.b16 %v339
  %v425 = vunpack.c.h.b16 %v339
  %v426 = vunpack.c.l.b16 %v340
  %v427 = vunpack.c.h.b16 %v340
  %v428 = vunpack.c.l.b16 %v341
  %v429 = vunpack.c.h.b16 %v341
  %v430 = vunpack.c.l.b16 %v342
  %v431 = vunpack.c.h.b16 %v342
  %v432 = vunpack.c.l.b16 %v343
  %v433 = vunpack.c.h.b16 %v343
  %v434 = vunpack.c.l.b16 %v344
  %v435 = vunpack.c.h.b16 %v344
  %v436 = vunpack.c.l.b16 %v345
  %v437 = vunpack.c.h.b16 %v345
  %v438 = vunpack.c.l.b16 %v346
  %v439 = vunpack.c.h.b16 %v346
  %v440 = vunpack.c.l.b16 %v347
  %v441 = vunpack.c.h.b16 %v347
  %v442 = vunpack.c.l.b16 %v348
  %v443 = vunpack.c.h.b16 %v348
  %v444 = vunpack.c.l.b16 %v349
  %v445 = vunpack.c.h.b16 %v349
  %v446 = vpack.c.b16 %v384, %v382
  %v447 = vpack.c.b16 %v385, %v383
  %v448 = vpack.c.b16 %v388, %v386
  %v449 = vpack.c.b16 %v389, %v387
  %v450 = vpack.c.b16 %v392, %v390
  %v451 = vpack.c.b16 %v393, %v391
  %v452 = vpack.c.b16 %v396, %v394
  %v453 = vpack.c.b16 %v397, %v395
  %v454 = vpack.c.b16 %v400, %v398
  %v455 = vpack.c.b16 %v401, %v399
  %v456 = vpack.c.b16 %v404, %v402
  %v457 = vpack.c.b16 %v405, %v403
  %v458 = vpack.c.b16 %v408, %v406
  %v459 = vpack.c.b16 %v409, %v407
  %v460 = vpack.c.b16 %v412, %v410
  %v461 = vpack.c.b16 %v413, %v411
  %v462 = vpack.c.b16 %v416, %v414
  %v463 = vpack.c.b16 %v417, %v415
  %v464 = vpack.c.b16 %v420, %v418
  %v465 = vpack.c.b16 %v421, %v419
  %v466 = vpack.c.b16 %v424, %v422
  %v467 = vpack.c.b16 %v425, %v423
  %v468 = vpack.c.b16 %v428, %v426
  %v469 = vpack.c.b16 %v429, %v427
  %v470 = vpack.c.b16 %v432, %v430
  %v471 = vpack.c.b16 %v433, %v431
  %v472 = vpack.c.b16 %v436, %v434
  %v473 = vpack.c.b16 %v437, %v435
  %v474 = vpack.c.b16 %v440, %v438
  %v475 = vpack.c.b16 %v441, %v439
  %v476 = vpack.c.b16 %v444, %v442
  %v477 = vpack.c.b16 %v445, %v443
  %510 = vmatprep.subr.bf16.mxu0 %v447
  %511 = vmatpush1.bf16.msra.mxu0 %v446
  %512 = vmatprep.subr.bf16.mxu0 %v449
  %513 = vmatpush1.bf16.msra.mxu0 %v448
  %514 = vmatprep.subr.bf16.mxu0 %v451
  %515 = vmatpush1.bf16.msra.mxu0 %v450
  %516 = vmatprep.subr.bf16.mxu0 %v453
  %517 = vmatpush1.bf16.msra.mxu0 %v452
  %518 = vmatprep.subr.bf16.mxu0 %v455
  %519 = vmatpush1.bf16.msra.mxu0 %v454
  %520 = vmatprep.subr.bf16.mxu0 %v457
  %521 = vmatpush1.bf16.msra.mxu0 %v456
  %522 = vmatprep.subr.bf16.mxu0 %v459
  %523 = vmatpush1.bf16.msra.mxu0 %v458
  %524 = vmatprep.subr.bf16.mxu0 %v461
  %525 = vmatpush1.bf16.msra.mxu0 %v460
  %526 = vmatprep.subr.bf16.mxu0 %v463
  %527 = vmatpush1.bf16.msra.mxu0 %v462
  %528 = vmatprep.subr.bf16.mxu0 %v465
  %529 = vmatpush1.bf16.msra.mxu0 %v464
  %530 = vmatprep.subr.bf16.mxu0 %v467
  %531 = vmatpush1.bf16.msra.mxu0 %v466
  %532 = vmatprep.subr.bf16.mxu0 %v469
  %533 = vmatpush1.bf16.msra.mxu0 %v468
  %534 = vmatprep.subr.bf16.mxu0 %v471
  %535 = vmatpush1.bf16.msra.mxu0 %v470
  %536 = vmatprep.subr.bf16.mxu0 %v473
  %537 = vmatpush1.bf16.msra.mxu0 %v472
  %538 = vmatprep.subr.bf16.mxu0 %v475
  %539 = vmatpush1.bf16.msra.mxu0 %v474
  %540 = vmatprep.subr.bf16.mxu0 %v477
  %541 = vmatpush1.bf16.msra.mxu0 %v476
  %542 = vmatprep.mubr.bf16.mxu0 %v303
  %543 = vmatmul.mubr.bf16.gmra.mrb[0].mxu0 %v302
  %v544 = vpop.f32.mrb[0].mxu0
  %v545 = vadd.f32 0.0, %v544
  %v546 = vpop.f32.mrb[0].mxu0
  %v547 = vadd.f32 0.0, %v546
  %v548 = vpop.f32.mrb[0].mxu0
  %v549 = vadd.f32 0.0, %v548
  %v550 = vpop.f32.mrb[0].mxu0
  %v551 = vadd.f32 0.0, %v550
  %552 = vmatprep.mubr.bf16.mxu0 %v305
  %553 = vmatmul.mubr.bf16.gmra.mrb[0].mxu0 %v304
  %v554 = vpop.f32.mrb[0].mxu0
  %v555 = vadd.f32 0.0, %v554
  %v556 = vpop.f32.mrb[0].mxu0
  %v557 = vadd.f32 0.0, %v556
  %v558 = vpop.f32.mrb[0].mxu0
  %v559 = vadd.f32 0.0, %v558
  %v560 = vpop.f32.mrb[0].mxu0
  %v561 = vadd.f32 0.0, %v560
  %562 = vmatprep.mubr.bf16.mxu0 %v307
  %563 = vmatmul.mubr.bf16.gmra.mrb[0].mxu0 %v306
  %v564 = vpop.f32.mrb[0].mxu0
  %v565 = vadd.f32 0.0, %v564
  %v566 = vpop.f32.mrb[0].mxu0
  %v567 = vadd.f32 0.0, %v566
  %v568 = vpop.f32.mrb[0].mxu0
  %v569 = vadd.f32 0.0, %v568
  %v570 = vpop.f32.mrb[0].mxu0
  %v571 = vadd.f32 0.0, %v570
  %572 = vmatprep.mubr.bf16.mxu0 %v309
  %573 = vmatmul.mubr.bf16.gmra.mrb[0].mxu0 %v308
  %v574 = vpop.f32.mrb[0].mxu0
  %v575 = vadd.f32 0.0, %v574
  %v576 = vpop.f32.mrb[0].mxu0
  %v577 = vadd.f32 0.0, %v576
  %v578 = vpop.f32.mrb[0].mxu0
  %v579 = vadd.f32 0.0, %v578
  %v580 = vpop.f32.mrb[0].mxu0
  %v581 = vadd.f32 0.0, %v580
  %582 = vmatprep.mubr.bf16.mxu0 %v311
  %583 = vmatmul.mubr.bf16.gmra.mrb[0].mxu0 %v310
  %v584 = vpop.f32.mrb[0].mxu0
  %v585 = vadd.f32 0.0, %v584
  %v586 = vpop.f32.mrb[0].mxu0
  %v587 = vadd.f32 0.0, %v586
  %v588 = vpop.f32.mrb[0].mxu0
  %v589 = vadd.f32 0.0, %v588
  %v590 = vpop.f32.mrb[0].mxu0
  %v591 = vadd.f32 0.0, %v590
  %592 = vmatprep.mubr.bf16.mxu0 %v313
  %593 = vmatmul.mubr.bf16.gmra.mrb[0].mxu0 %v312
  %v594 = vpop.f32.mrb[0].mxu0
  %v595 = vadd.f32 0.0, %v594
  %v596 = vpop.f32.mrb[0].mxu0
  %v597 = vadd.f32 0.0, %v596
  %v598 = vpop.f32.mrb[0].mxu0
  %v599 = vadd.f32 0.0, %v598
  %v600 = vpop.f32.mrb[0].mxu0
  %v601 = vadd.f32 0.0, %v600
  %602 = vmatprep.mubr.bf16.mxu0 %v315
  %603 = vmatmul.mubr.bf16.gmra.mrb[0].mxu0 %v314
  %v604 = vpop.f32.mrb[0].mxu0
  %v605 = vadd.f32 0.0, %v604
  %v606 = vpop.f32.mrb[0].mxu0
  %v607 = vadd.f32 0.0, %v606
  %v608 = vpop.f32.mrb[0].mxu0
  %v609 = vadd.f32 0.0, %v608
  %v610 = vpop.f32.mrb[0].mxu0
  %v611 = vadd.f32 0.0, %v610
  %612 = vmatprep.mubr.bf16.mxu0 %v317
  %613 = vmatmul.mubr.bf16.gmra.mrb[0].mxu0 %v316
  %v614 = vpop.f32.mrb[0].mxu0
  %v615 = vadd.f32 0.0, %v614
  %v616 = vpop.f32.mrb[0].mxu0
  %v617 = vadd.f32 0.0, %v616
  %v618 = vpop.f32.mrb[0].mxu0
  %v619 = vadd.f32 0.0, %v618
  %v620 = vpop.f32.mrb[0].mxu0
  %v621 = vadd.f32 0.0, %v620
  %622 = vdwg.mxu0
  %v623 = vadd.f32 %v75, %v545
  %v624 = vadd.f32 %v76, %v547
  %v625 = vadd.f32 %v77, %v549
  %v626 = vadd.f32 %v78, %v551
  %v627 = vadd.f32 %v79, %v555
  %v628 = vadd.f32 %v80, %v557
  %v629 = vadd.f32 %v81, %v559
  %v630 = vadd.f32 %v82, %v561
  %v631 = vadd.f32 %v83, %v565
  %v632 = vadd.f32 %v84, %v567
  %v633 = vadd.f32 %v85, %v569
  %v634 = vadd.f32 %v86, %v571
  %v635 = vadd.f32 %v87, %v575
  %v636 = vadd.f32 %v88, %v577
  %v637 = vadd.f32 %v89, %v579
  %v638 = vadd.f32 %v90, %v581
  %v639 = vadd.f32 %v91, %v585
  %v640 = vadd.f32 %v92, %v587
  %v641 = vadd.f32 %v93, %v589
  %v642 = vadd.f32 %v94, %v591
  %v643 = vadd.f32 %v95, %v595
  %v644 = vadd.f32 %v96, %v597
  %v645 = vadd.f32 %v97, %v599
  %v646 = vadd.f32 %v98, %v601
  %v647 = vadd.f32 %v99, %v605
  %v648 = vadd.f32 %v100, %v607
  %v649 = vadd.f32 %v101, %v609
  %v650 = vadd.f32 %v102, %v611
  %v651 = vadd.f32 %v103, %v615
  %v652 = vadd.f32 %v104, %v617
  %v653 = vadd.f32 %v105, %v619
  %v654 = vadd.f32 %v106, %v621
  %655 = vst [vmem:[#allocation2] sm:$0xff] %v623
  %656 = vst [vmem:[#allocation2 + $0x8] sm:$0xff] %v624
  %657 = vst [vmem:[#allocation2 + $0x10] sm:$0xff] %v625
  %658 = vst [vmem:[#allocation2 + $0x18] sm:$0xff] %v626
  %659 = vst [vmem:[#allocation2 + $0x20] sm:$0xff] %v627
  %660 = vst [vmem:[#allocation2 + $0x28] sm:$0xff] %v628
  %661 = vst [vmem:[#allocation2 + $0x30] sm:$0xff] %v629
  %662 = vst [vmem:[#allocation2 + $0x38] sm:$0xff] %v630
  %663 = vst [vmem:[#allocation2 + $0x40] sm:$0xff] %v631
  %664 = vst [vmem:[#allocation2 + $0x48] sm:$0xff] %v632
  %665 = vst [vmem:[#allocation2 + $0x50] sm:$0xff] %v633
  %666 = vst [vmem:[#allocation2 + $0x58] sm:$0xff] %v634
  %667 = vst [vmem:[#allocation2 + $0x60] sm:$0xff] %v635
  %668 = vst [vmem:[#allocation2 + $0x68] sm:$0xff] %v636
  %669 = vst [vmem:[#allocation2 + $0x70] sm:$0xff] %v637
  %670 = vst [vmem:[#allocation2 + $0x78] sm:$0xff] %v638
  %671 = vst [vmem:[#allocation2 + $0x80] sm:$0xff] %v639
  %672 = vst [vmem:[#allocation2 + $0x88] sm:$0xff] %v640
  %673 = vst [vmem:[#allocation2 + $0x90] sm:$0xff] %v641
  %674 = vst [vmem:[#allocation2 + $0x98] sm:$0xff] %v642
  %675 = vst [vmem:[#allocation2 + $0xa0] sm:$0xff] %v643
  %676 = vst [vmem:[#allocation2 + $0xa8] sm:$0xff] %v644
  %677 = vst [vmem:[#allocation2 + $0xb0] sm:$0xff] %v645
  %678 = vst [vmem:[#allocation2 + $0xb8] sm:$0xff] %v646
  %679 = vst [vmem:[#allocation2 + $0xc0] sm:$0xff] %v647
  %680 = vst [vmem:[#allocation2 + $0xc8] sm:$0xff] %v648
  %681 = vst [vmem:[#allocation2 + $0xd0] sm:$0xff] %v649
  %682 = vst [vmem:[#allocation2 + $0xd8] sm:$0xff] %v650
  %683 = vst [vmem:[#allocation2 + $0xe0] sm:$0xff] %v651
  %684 = vst [vmem:[#allocation2 + $0xe8] sm:$0xff] %v652
  %685 = vst [vmem:[#allocation2 + $0xf0] sm:$0xff] %v653
  %686 = vst [vmem:[#allocation2 + $0xf8] sm:$0xff] %v654
  %v687 = vld [vmem:[#allocation2] sm:$0xff]
  %v688 = vld [vmem:[#allocation2 + $0x8] sm:$0xff]
  %v689 = vld [vmem:[#allocation2 + $0x10] sm:$0xff]
  %v690 = vld [vmem:[#allocation2 + $0x18] sm:$0xff]
  %v691 = vld [vmem:[#allocation2 + $0x20] sm:$0xff]
  %v692 = vld [vmem:[#allocation2 + $0x28] sm:$0xff]
  %v693 = vld [vmem:[#allocation2 + $0x30] sm:$0xff]
  %v694 = vld [vmem:[#allocation2 + $0x38] sm:$0xff]
  %v695 = vld [vmem:[#allocation2 + $0x40] sm:$0xff]
  %v696 = vld [vmem:[#allocation2 + $0x48] sm:$0xff]
  %v697 = vld [vmem:[#allocation2 + $0x50] sm:$0xff]
  %v698 = vld [vmem:[#allocation2 + $0x58] sm:$0xff]
  %v699 = vld [vmem:[#allocation2 + $0x60] sm:$0xff]
  %v700 = vld [vmem:[#allocation2 + $0x68] sm:$0xff]
  %v701 = vld [vmem:[#allocation2 + $0x70] sm:$0xff]
  %v702 = vld [vmem:[#allocation2 + $0x78] sm:$0xff]
  %v703 = vld [vmem:[#allocation2 + $0x80] sm:$0xff]
  %v704 = vld [vmem:[#allocation2 + $0x88] sm:$0xff]
  %v705 = vld [vmem:[#allocation2 + $0x90] sm:$0xff]
  %v706 = vld [vmem:[#allocation2 + $0x98] sm:$0xff]
  %v707 = vld [vmem:[#allocation2 + $0xa0] sm:$0xff]
  %v708 = vld [vmem:[#allocation2 + $0xa8] sm:$0xff]
  %v709 = vld [vmem:[#allocation2 + $0xb0] sm:$0xff]
  %v710 = vld [vmem:[#allocation2 + $0xb8] sm:$0xff]
  %v711 = vld [vmem:[#allocation2 + $0xc0] sm:$0xff]
  %v712 = vld [vmem:[#allocation2 + $0xc8] sm:$0xff]
  %v713 = vld [vmem:[#allocation2 + $0xd0] sm:$0xff]
  %v714 = vld [vmem:[#allocation2 + $0xd8] sm:$0xff]
  %v715 = vld [vmem:[#allocation2 + $0xe0] sm:$0xff]
  %v716 = vld [vmem:[#allocation2 + $0xe8] sm:$0xff]
  %v717 = vld [vmem:[#allocation2 + $0xf0] sm:$0xff]
  %v718 = vld [vmem:[#allocation2 + $0xf8] sm:$0xff]
  %s719 = scalar_lea.vmem %s1, 256
  %v720 = vld [vmem:[%s719] sm:$0xff]
  %v721 = vld [vmem:[%s719 + $0x8] sm:$0xff]
  %v722 = vld [vmem:[%s719 + $0x10] sm:$0xff]
  %v723 = vld [vmem:[%s719 + $0x18] sm:$0xff]
  %v724 = vld [vmem:[%s719 + $0x20] sm:$0xff]
  %v725 = vld [vmem:[%s719 + $0x28] sm:$0xff]
  %v726 = vld [vmem:[%s719 + $0x30] sm:$0xff]
  %v727 = vld [vmem:[%s719 + $0x38] sm:$0xff]
  %v728 = vld [vmem:[%s719 + $0x40] sm:$0xff]
  %v729 = vld [vmem:[%s719 + $0x48] sm:$0xff]
  %v730 = vld [vmem:[%s719 + $0x50] sm:$0xff]
  %v731 = vld [vmem:[%s719 + $0x58] sm:$0xff]
  %v732 = vld [vmem:[%s719 + $0x60] sm:$0xff]
  %v733 = vld [vmem:[%s719 + $0x68] sm:$0xff]
  %v734 = vld [vmem:[%s719 + $0x70] sm:$0xff]
  %v735 = vld [vmem:[%s719 + $0x78] sm:$0xff]
  %v736 = vld [vmem:[%s719 + $0x80] sm:$0xff]
  %v737 = vld [vmem:[%s719 + $0x88] sm:$0xff]
  %v738 = vld [vmem:[%s719 + $0x90] sm:$0xff]
  %v739 = vld [vmem:[%s719 + $0x98] sm:$0xff]
  %v740 = vld [vmem:[%s719 + $0xa0] sm:$0xff]
  %v741 = vld [vmem:[%s719 + $0xa8] sm:$0xff]
  %v742 = vld [vmem:[%s719 + $0xb0] sm:$0xff]
  %v743 = vld [vmem:[%s719 + $0xb8] sm:$0xff]
  %v744 = vld [vmem:[%s719 + $0xc0] sm:$0xff]
  %v745 = vld [vmem:[%s719 + $0xc8] sm:$0xff]
  %v746 = vld [vmem:[%s719 + $0xd0] sm:$0xff]
  %v747 = vld [vmem:[%s719 + $0xd8] sm:$0xff]
  %v748 = vld [vmem:[%s719 + $0xe0] sm:$0xff]
  %v749 = vld [vmem:[%s719 + $0xe8] sm:$0xff]
  %v750 = vld [vmem:[%s719 + $0xf0] sm:$0xff]
  %v751 = vld [vmem:[%s719 + $0xf8] sm:$0xff]
  %v800 = vunpack.c.l.b16 %v720
  %v801 = vunpack.c.h.b16 %v720
  %v802 = vunpack.c.l.b16 %v721
  %v803 = vunpack.c.h.b16 %v721
  %v804 = vunpack.c.l.b16 %v722
  %v805 = vunpack.c.h.b16 %v722
  %v806 = vunpack.c.l.b16 %v723
  %v807 = vunpack.c.h.b16 %v723
  %v808 = vunpack.c.l.b16 %v724
  %v809 = vunpack.c.h.b16 %v724
  %v810 = vunpack.c.l.b16 %v725
  %v811 = vunpack.c.h.b16 %v725
  %v812 = vunpack.c.l.b16 %v726
  %v813 = vunpack.c.h.b16 %v726
  %v814 = vunpack.c.l.b16 %v727
  %v815 = vunpack.c.h.b16 %v727
  %v816 = vunpack.c.l.b16 %v728
  %v817 = vunpack.c.h.b16 %v728
  %v818 = vunpack.c.l.b16 %v729
  %v819 = vunpack.c.h.b16 %v729
  %v820 = vunpack.c.l.b16 %v730
  %v821 = vunpack.c.h.b16 %v730
  %v822 = vunpack.c.l.b16 %v731
  %v823 = vunpack.c.h.b16 %v731
  %v824 = vunpack.c.l.b16 %v732
  %v825 = vunpack.c.h.b16 %v732
  %v826 = vunpack.c.l.b16 %v733
  %v827 = vunpack.c.h.b16 %v733
  %v828 = vunpack.c.l.b16 %v734
  %v829 = vunpack.c.h.b16 %v734
  %v830 = vunpack.c.l.b16 %v735
  %v831 = vunpack.c.h.b16 %v735
  %v832 = vunpack.c.l.b16 %v736
  %v833 = vunpack.c.h.b16 %v736
  %v834 = vunpack.c.l.b16 %v737
  %v835 = vunpack.c.h.b16 %v737
  %v836 = vunpack.c.l.b16 %v738
  %v837 = vunpack.c.h.b16 %v738
  %v838 = vunpack.c.l.b16 %v739
  %v839 = vunpack.c.h.b16 %v739
  %v840 = vunpack.c.l.b16 %v740
  %v841 = vunpack.c.h.b16 %v740
  %v842 = vunpack.c.l.b16 %v741
  %v843 = vunpack.c.h.b16 %v741
  %v844 = vunpack.c.l.b16 %v742
  %v845 = vunpack.c.h.b16 %v742
  %v846 = vunpack.c.l.b16 %v743
  %v847 = vunpack.c.h.b16 %v743
  %v848 = vunpack.c.l.b16 %v744
  %v849 = vunpack.c.h.b16 %v744
  %v850 = vunpack.c.l.b16 %v745
  %v851 = vunpack.c.h.b16 %v745
  %v852 = vunpack.c.l.b16 %v746
  %v853 = vunpack.c.h.b16 %v746
  %v854 = vunpack.c.l.b16 %v747
  %v855 = vunpack.c.h.b16 %v747
  %v856 = vunpack.c.l.b16 %v748
  %v857 = vunpack.c.h.b16 %v748
  %v858 = vunpack.c.l.b16 %v749
  %v859 = vunpack.c.h.b16 %v749
  %v860 = vunpack.c.l.b16 %v750
  %v861 = vunpack.c.h.b16 %v750
  %v862 = vunpack.c.l.b16 %v751
  %v863 = vunpack.c.h.b16 %v751
  %v864 = vpack.c.b16 %v802, %v800
  %v865 = vpack.c.b16 %v803, %v801
  %v866 = vpack.c.b16 %v806, %v804
  %v867 = vpack.c.b16 %v807, %v805
  %v868 = vpack.c.b16 %v810, %v808
  %v869 = vpack.c.b16 %v811, %v809
  %v870 = vpack.c.b16 %v814, %v812
  %v871 = vpack.c.b16 %v815, %v813
  %v872 = vpack.c.b16 %v818, %v816
  %v873 = vpack.c.b16 %v819, %v817
  %v874 = vpack.c.b16 %v822, %v820
  %v875 = vpack.c.b16 %v823, %v821
  %v876 = vpack.c.b16 %v826, %v824
  %v877 = vpack.c.b16 %v827, %v825
  %v878 = vpack.c.b16 %v830, %v828
  %v879 = vpack.c.b16 %v831, %v829
  %v880 = vpack.c.b16 %v834, %v832
  %v881 = vpack.c.b16 %v835, %v833
  %v882 = vpack.c.b16 %v838, %v836
  %v883 = vpack.c.b16 %v839, %v837
  %v884 = vpack.c.b16 %v842, %v840
  %v885 = vpack.c.b16 %v843, %v841
  %v886 = vpack.c.b16 %v846, %v844
  %v887 = vpack.c.b16 %v847, %v845
  %v888 = vpack.c.b16 %v850, %v848
  %v889 = vpack.c.b16 %v851, %v849
  %v890 = vpack.c.b16 %v854, %v852
  %v891 = vpack.c.b16 %v855, %v853
  %v892 = vpack.c.b16 %v858, %v856
  %v893 = vpack.c.b16 %v859, %v857
  %v894 = vpack.c.b16 %v862, %v860
  %v895 = vpack.c.b16 %v863, %v861
  %928 = vmatprep.subr.bf16.mxu0 %v865
  %929 = vmatpush1.bf16.msra.mxu0 %v864
  %930 = vmatprep.subr.bf16.mxu0 %v867
  %931 = vmatpush1.bf16.msra.mxu0 %v866
  %932 = vmatprep.subr.bf16.mxu0 %v869
  %933 = vmatpush1.bf16.msra.mxu0 %v868
  %934 = vmatprep.subr.bf16.mxu0 %v871
  %935 = vmatpush1.bf16.msra.mxu0 %v870
  %936 = vmatprep.subr.bf16.mxu0 %v873
  %937 = vmatpush1.bf16.msra.mxu0 %v872
  %938 = vmatprep.subr.bf16.mxu0 %v875
  %939 = vmatpush1.bf16.msra.mxu0 %v874
  %940 = vmatprep.subr.bf16.mxu0 %v877
  %941 = vmatpush1.bf16.msra.mxu0 %v876
  %942 = vmatprep.subr.bf16.mxu0 %v879
  %943 = vmatpush1.bf16.msra.mxu0 %v878
  %944 = vmatprep.subr.bf16.mxu0 %v881
  %945 = vmatpush1.bf16.msra.mxu0 %v880
  %946 = vmatprep.subr.bf16.mxu0 %v883
  %947 = vmatpush1.bf16.msra.mxu0 %v882
  %948 = vmatprep.subr.bf16.mxu0 %v885
  %949 = vmatpush1.bf16.msra.mxu0 %v884
  %950 = vmatprep.subr.bf16.mxu0 %v887
  %951 = vmatpush1.bf16.msra.mxu0 %v886
  %952 = vmatprep.subr.bf16.mxu0 %v889
  %953 = vmatpush1.bf16.msra.mxu0 %v888
  %954 = vmatprep.subr.bf16.mxu0 %v891
  %955 = vmatpush1.bf16.msra.mxu0 %v890
  %956 = vmatprep.subr.bf16.mxu0 %v893
  %957 = vmatpush1.bf16.msra.mxu0 %v892
  %958 = vmatprep.subr.bf16.mxu0 %v895
  %959 = vmatpush1.bf16.msra.mxu0 %v894
  %960 = vmatprep.mubr.bf16.mxu0 %v156
  %961 = vmatmul.mubr.bf16.gmra.mrb[0].mxu0 %v155
  %v962 = vpop.f32.mrb[0].mxu0
  %v963 = vadd.f32 0.0, %v962
  %v964 = vpop.f32.mrb[0].mxu0
  %v965 = vadd.f32 0.0, %v964
  %v966 = vpop.f32.mrb[0].mxu0
  %v967 = vadd.f32 0.0, %v966
  %v968 = vpop.f32.mrb[0].mxu0
  %v969 = vadd.f32 0.0, %v968
  %970 = vmatprep.mubr.bf16.mxu0 %v158
  %971 = vmatmul.mubr.bf16.gmra.mrb[0].mxu0 %v157
  %v972 = vpop.f32.mrb[0].mxu0
  %v973 = vadd.f32 0.0, %v972
  %v974 = vpop.f32.mrb[0].mxu0
  %v975 = vadd.f32 0.0, %v974
  %v976 = vpop.f32.mrb[0].mxu0
  %v977 = vadd.f32 0.0, %v976
  %v978 = vpop.f32.mrb[0].mxu0
  %v979 = vadd.f32 0.0, %v978
  %980 = vmatprep.mubr.bf16.mxu0 %v160
  %981 = vmatmul.mubr.bf16.gmra.mrb[0].mxu0 %v159
  %v982 = vpop.f32.mrb[0].mxu0
  %v983 = vadd.f32 0.0, %v982
  %v984 = vpop.f32.mrb[0].mxu0
  %v985 = vadd.f32 0.0, %v984
  %v986 = vpop.f32.mrb[0].mxu0
  %v987 = vadd.f32 0.0, %v986
  %v988 = vpop.f32.mrb[0].mxu0
  %v989 = vadd.f32 0.0, %v988
  %990 = vmatprep.mubr.bf16.mxu0 %v162
  %991 = vmatmul.mubr.bf16.gmra.mrb[0].mxu0 %v161
  %v992 = vpop.f32.mrb[0].mxu0
  %v993 = vadd.f32 0.0, %v992
  %v994 = vpop.f32.mrb[0].mxu0
  %v995 = vadd.f32 0.0, %v994
  %v996 = vpop.f32.mrb[0].mxu0
  %v997 = vadd.f32 0.0, %v996
  %v998 = vpop.f32.mrb[0].mxu0
  %v999 = vadd.f32 0.0, %v998
  %1000 = vmatprep.mubr.bf16.mxu0 %v164
  %1001 = vmatmul.mubr.bf16.gmra.mrb[0].mxu0 %v163
  %v1002 = vpop.f32.mrb[0].mxu0
  %v1003 = vadd.f32 0.0, %v1002
  %v1004 = vpop.f32.mrb[0].mxu0
  %v1005 = vadd.f32 0.0, %v1004
  %v1006 = vpop.f32.mrb[0].mxu0
  %v1007 = vadd.f32 0.0, %v1006
  %v1008 = vpop.f32.mrb[0].mxu0
  %v1009 = vadd.f32 0.0, %v1008
  %1010 = vmatprep.mubr.bf16.mxu0 %v166
  %1011 = vmatmul.mubr.bf16.gmra.mrb[0].mxu0 %v165
  %v1012 = vpop.f32.mrb[0].mxu0
  %v1013 = vadd.f32 0.0, %v1012
  %v1014 = vpop.f32.mrb[0].mxu0
  %v1015 = vadd.f32 0.0, %v1014
  %v1016 = vpop.f32.mrb[0].mxu0
  %v1017 = vadd.f32 0.0, %v1016
  %v1018 = vpop.f32.mrb[0].mxu0
  %v1019 = vadd.f32 0.0, %v1018
  %1020 = vmatprep.mubr.bf16.mxu0 %v168
  %1021 = vmatmul.mubr.bf16.gmra.mrb[0].mxu0 %v167
  %v1022 = vpop.f32.mrb[0].mxu0
  %v1023 = vadd.f32 0.0, %v1022
  %v1024 = vpop.f32.mrb[0].mxu0
  %v1025 = vadd.f32 0.0, %v1024
  %v1026 = vpop.f32.mrb[0].mxu0
  %v1027 = vadd.f32 0.0, %v1026
  %v1028 = vpop.f32.mrb[0].mxu0
  %v1029 = vadd.f32 0.0, %v1028
  %1030 = vmatprep.mubr.bf16.mxu0 %v170
  %1031 = vmatmul.mubr.bf16.gmra.mrb[0].mxu0 %v169
  %v1032 = vpop.f32.mrb[0].mxu0
  %v1033 = vadd.f32 0.0, %v1032
  %v1034 = vpop.f32.mrb[0].mxu0
  %v1035 = vadd.f32 0.0, %v1034
  %v1036 = vpop.f32.mrb[0].mxu0
  %v1037 = vadd.f32 0.0, %v1036
  %v1038 = vpop.f32.mrb[0].mxu0
  %v1039 = vadd.f32 0.0, %v1038
  %1040 = vdwg.mxu0
  %v1041 = vadd.f32 %v687, %v963
  %v1042 = vadd.f32 %v688, %v965
  %v1043 = vadd.f32 %v689, %v967
  %v1044 = vadd.f32 %v690, %v969
  %v1045 = vadd.f32 %v691, %v973
  %v1046 = vadd.f32 %v692, %v975
  %v1047 = vadd.f32 %v693, %v977
  %v1048 = vadd.f32 %v694, %v979
  %v1049 = vadd.f32 %v695, %v983
  %v1050 = vadd.f32 %v696, %v985
  %v1051 = vadd.f32 %v697, %v987
  %v1052 = vadd.f32 %v698, %v989
  %v1053 = vadd.f32 %v699, %v993
  %v1054 = vadd.f32 %v700, %v995
  %v1055 = vadd.f32 %v701, %v997
  %v1056 = vadd.f32 %v702, %v999
  %v1057 = vadd.f32 %v703, %v1003
  %v1058 = vadd.f32 %v704, %v1005
  %v1059 = vadd.f32 %v705, %v1007
  %v1060 = vadd.f32 %v706, %v1009
  %v1061 = vadd.f32 %v707, %v1013
  %v1062 = vadd.f32 %v708, %v1015
  %v1063 = vadd.f32 %v709, %v1017
  %v1064 = vadd.f32 %v710, %v1019
  %v1065 = vadd.f32 %v711, %v1023
  %v1066 = vadd.f32 %v712, %v1025
  %v1067 = vadd.f32 %v713, %v1027
  %v1068 = vadd.f32 %v714, %v1029
  %v1069 = vadd.f32 %v715, %v1033
  %v1070 = vadd.f32 %v716, %v1035
  %v1071 = vadd.f32 %v717, %v1037
  %v1072 = vadd.f32 %v718, %v1039
  %1073 = vst [vmem:[#allocation2] sm:$0xff] %v1041
  %1074 = vst [vmem:[#allocation2 + $0x8] sm:$0xff] %v1042
  %1075 = vst [vmem:[#allocation2 + $0x10] sm:$0xff] %v1043
  %1076 = vst [vmem:[#allocation2 + $0x18] sm:$0xff] %v1044
  %1077 = vst [vmem:[#allocation2 + $0x20] sm:$0xff] %v1045
  %1078 = vst [vmem:[#allocation2 + $0x28] sm:$0xff] %v1046
  %1079 = vst [vmem:[#allocation2 + $0x30] sm:$0xff] %v1047
  %1080 = vst [vmem:[#allocation2 + $0x38] sm:$0xff] %v1048
  %1081 = vst [vmem:[#allocation2 + $0x40] sm:$0xff] %v1049
  %1082 = vst [vmem:[#allocation2 + $0x48] sm:$0xff] %v1050
  %1083 = vst [vmem:[#allocation2 + $0x50] sm:$0xff] %v1051
  %1084 = vst [vmem:[#allocation2 + $0x58] sm:$0xff] %v1052
  %1085 = vst [vmem:[#allocation2 + $0x60] sm:$0xff] %v1053
  %1086 = vst [vmem:[#allocation2 + $0x68] sm:$0xff] %v1054
  %1087 = vst [vmem:[#allocation2 + $0x70] sm:$0xff] %v1055
  %1088 = vst [vmem:[#allocation2 + $0x78] sm:$0xff] %v1056
  %1089 = vst [vmem:[#allocation2 + $0x80] sm:$0xff] %v1057
  %1090 = vst [vmem:[#allocation2 + $0x88] sm:$0xff] %v1058
  %1091 = vst [vmem:[#allocation2 + $0x90] sm:$0xff] %v1059
  %1092 = vst [vmem:[#allocation2 + $0x98] sm:$0xff] %v1060
  %1093 = vst [vmem:[#allocation2 + $0xa0] sm:$0xff] %v1061
  %1094 = vst [vmem:[#allocation2 + $0xa8] sm:$0xff] %v1062
  %1095 = vst [vmem:[#allocation2 + $0xb0] sm:$0xff] %v1063
  %1096 = vst [vmem:[#allocation2 + $0xb8] sm:$0xff] %v1064
  %1097 = vst [vmem:[#allocation2 + $0xc0] sm:$0xff] %v1065
  %1098 = vst [vmem:[#allocation2 + $0xc8] sm:$0xff] %v1066
  %1099 = vst [vmem:[#allocation2 + $0xd0] sm:$0xff] %v1067
  %1100 = vst [vmem:[#allocation2 + $0xd8] sm:$0xff] %v1068
  %1101 = vst [vmem:[#allocation2 + $0xe0] sm:$0xff] %v1069
  %1102 = vst [vmem:[#allocation2 + $0xe8] sm:$0xff] %v1070
  %1103 = vst [vmem:[#allocation2 + $0xf0] sm:$0xff] %v1071
  %1104 = vst [vmem:[#allocation2 + $0xf8] sm:$0xff] %v1072
  %v1105 = vld [vmem:[#allocation2] sm:$0xff]
  %v1106 = vld [vmem:[#allocation2 + $0x8] sm:$0xff]
  %v1107 = vld [vmem:[#allocation2 + $0x10] sm:$0xff]
  %v1108 = vld [vmem:[#allocation2 + $0x18] sm:$0xff]
  %v1109 = vld [vmem:[#allocation2 + $0x20] sm:$0xff]
  %v1110 = vld [vmem:[#allocation2 + $0x28] sm:$0xff]
  %v1111 = vld [vmem:[#allocation2 + $0x30] sm:$0xff]
  %v1112 = vld [vmem:[#allocation2 + $0x38] sm:$0xff]
  %v1113 = vld [vmem:[#allocation2 + $0x40] sm:$0xff]
  %v1114 = vld [vmem:[#allocation2 + $0x48] sm:$0xff]
  %v1115 = vld [vmem:[#allocation2 + $0x50] sm:$0xff]
  %v1116 = vld [vmem:[#allocation2 + $0x58] sm:$0xff]
  %v1117 = vld [vmem:[#allocation2 + $0x60] sm:$0xff]
  %v1118 = vld [vmem:[#allocation2 + $0x68] sm:$0xff]
  %v1119 = vld [vmem:[#allocation2 + $0x70] sm:$0xff]
  %v1120 = vld [vmem:[#allocation2 + $0x78] sm:$0xff]
  %v1121 = vld [vmem:[#allocation2 + $0x80] sm:$0xff]
  %v1122 = vld [vmem:[#allocation2 + $0x88] sm:$0xff]
  %v1123 = vld [vmem:[#allocation2 + $0x90] sm:$0xff]
  %v1124 = vld [vmem:[#allocation2 + $0x98] sm:$0xff]
  %v1125 = vld [vmem:[#allocation2 + $0xa0] sm:$0xff]
  %v1126 = vld [vmem:[#allocation2 + $0xa8] sm:$0xff]
  %v1127 = vld [vmem:[#allocation2 + $0xb0] sm:$0xff]
  %v1128 = vld [vmem:[#allocation2 + $0xb8] sm:$0xff]
  %v1129 = vld [vmem:[#allocation2 + $0xc0] sm:$0xff]
  %v1130 = vld [vmem:[#allocation2 + $0xc8] sm:$0xff]
  %v1131 = vld [vmem:[#allocation2 + $0xd0] sm:$0xff]
  %v1132 = vld [vmem:[#allocation2 + $0xd8] sm:$0xff]
  %v1133 = vld [vmem:[#allocation2 + $0xe0] sm:$0xff]
  %v1134 = vld [vmem:[#allocation2 + $0xe8] sm:$0xff]
  %v1135 = vld [vmem:[#allocation2 + $0xf0] sm:$0xff]
  %v1136 = vld [vmem:[#allocation2 + $0xf8] sm:$0xff]
  %v1137 = vrot.slane %v175, 1
  %v1138 = vor.u32 %v172, %v1137
  %v1139 = vrot.slane %v182, 1
  %v1140 = vor.u32 %v179, %v1139
  %v1141 = vrot.slane %v189, 1
  %v1142 = vor.u32 %v186, %v1141
  %v1143 = vrot.slane %v196, 1
  %v1144 = vor.u32 %v193, %v1143
  %v1145 = vrot.slane %v203, 1
  %v1146 = vor.u32 %v200, %v1145
  %v1147 = vrot.slane %v210, 1
  %v1148 = vor.u32 %v207, %v1147
  %v1149 = vrot.slane %v217, 1
  %v1150 = vor.u32 %v214, %v1149
  %v1151 = vrot.slane %v224, 1
  %v1152 = vor.u32 %v221, %v1151
  %v1153 = vrot.slane %v231, 1
  %v1154 = vor.u32 %v228, %v1153
  %v1155 = vrot.slane %v238, 1
  %v1156 = vor.u32 %v235, %v1155
  %v1157 = vrot.slane %v245, 1
  %v1158 = vor.u32 %v242, %v1157
  %v1159 = vrot.slane %v252, 1
  %v1160 = vor.u32 %v249, %v1159
  %v1161 = vrot.slane %v259, 1
  %v1162 = vor.u32 %v256, %v1161
  %v1163 = vrot.slane %v266, 1
  %v1164 = vor.u32 %v263, %v1163
  %v1165 = vrot.slane %v273, 1
  %v1166 = vor.u32 %v270, %v1165
  %v1167 = vrot.slane %v280, 1
  %v1168 = vor.u32 %v277, %v1167
  %vm1185 = vcmask 1047552
  %vm1186 = vsmask.f32 7424
  %vm1187 = vmand %vm1185, %vm1186
  %v1188 = vsel %vm1187, %v1138, 0
  %v1189 = vsel %vm1187, %v1140, 0
  %v1190 = vsel %vm1187, %v1142, 0
  %v1191 = vsel %vm1187, %v1144, 0
  %v1192 = vsel %vm1187, %v1146, 0
  %v1193 = vsel %vm1187, %v1148, 0
  %v1194 = vsel %vm1187, %v1150, 0
  %v1195 = vsel %vm1187, %v1152, 0
  %v1196 = vsel %vm1187, %v1154, 0
  %v1197 = vsel %vm1187, %v1156, 0
  %v1198 = vsel %vm1187, %v1158, 0
  %v1199 = vsel %vm1187, %v1160, 0
  %v1200 = vsel %vm1187, %v1162, 0
  %v1201 = vsel %vm1187, %v1164, 0
  %v1202 = vsel %vm1187, %v1166, 0
  %v1203 = vsel %vm1187, %v1168, 0
  %s1204 = scalar_lea.vmem %s1, 512
  %v1205 = vld [vmem:[%s1204] sm:$0xff]
  %v1206 = vld [vmem:[%s1204 + $0x8] sm:$0xff]
  %v1207 = vld [vmem:[%s1204 + $0x10] sm:$0xff]
  %v1208 = vld [vmem:[%s1204 + $0x18] sm:$0xff]
  %v1209 = vld [vmem:[%s1204 + $0x20] sm:$0xff]
  %v1210 = vld [vmem:[%s1204 + $0x28] sm:$0xff]
  %v1211 = vld [vmem:[%s1204 + $0x30] sm:$0xff]
  %v1212 = vld [vmem:[%s1204 + $0x38] sm:$0xff]
  %v1213 = vld [vmem:[%s1204 + $0x40] sm:$0xff]
  %v1214 = vld [vmem:[%s1204 + $0x48] sm:$0xff]
  %v1215 = vld [vmem:[%s1204 + $0x50] sm:$0xff]
  %v1216 = vld [vmem:[%s1204 + $0x58] sm:$0xff]
  %v1217 = vld [vmem:[%s1204 + $0x60] sm:$0xff]
  %v1218 = vld [vmem:[%s1204 + $0x68] sm:$0xff]
  %v1219 = vld [vmem:[%s1204 + $0x70] sm:$0xff]
  %v1220 = vld [vmem:[%s1204 + $0x78] sm:$0xff]
  %v1221 = vld [vmem:[%s1204 + $0x80] sm:$0xff]
  %v1222 = vld [vmem:[%s1204 + $0x88] sm:$0xff]
  %v1223 = vld [vmem:[%s1204 + $0x90] sm:$0xff]
  %v1224 = vld [vmem:[%s1204 + $0x98] sm:$0xff]
  %v1225 = vld [vmem:[%s1204 + $0xa0] sm:$0xff]
  %v1226 = vld [vmem:[%s1204 + $0xa8] sm:$0xff]
  %v1227 = vld [vmem:[%s1204 + $0xb0] sm:$0xff]
  %v1228 = vld [vmem:[%s1204 + $0xb8] sm:$0xff]
  %v1229 = vld [vmem:[%s1204 + $0xc0] sm:$0xff]
  %v1230 = vld [vmem:[%s1204 + $0xc8] sm:$0xff]
  %v1231 = vld [vmem:[%s1204 + $0xd0] sm:$0xff]
  %v1232 = vld [vmem:[%s1204 + $0xd8] sm:$0xff]
  %v1233 = vld [vmem:[%s1204 + $0xe0] sm:$0xff]
  %v1234 = vld [vmem:[%s1204 + $0xe8] sm:$0xff]
  %v1235 = vld [vmem:[%s1204 + $0xf0] sm:$0xff]
  %v1236 = vld [vmem:[%s1204 + $0xf8] sm:$0xff]
  %v1269 = vunpack.c.l.b16 %v1205
  %v1270 = vunpack.c.h.b16 %v1205
  %v1271 = vunpack.c.l.b16 %v1206
  %v1272 = vunpack.c.h.b16 %v1206
  %v1273 = vunpack.c.l.b16 %v1207
  %v1274 = vunpack.c.h.b16 %v1207
  %v1275 = vunpack.c.l.b16 %v1208
  %v1276 = vunpack.c.h.b16 %v1208
  %v1277 = vunpack.c.l.b16 %v1209
  %v1278 = vunpack.c.h.b16 %v1209
  %v1279 = vunpack.c.l.b16 %v1210
  %v1280 = vunpack.c.h.b16 %v1210
  %v1281 = vunpack.c.l.b16 %v1211
  %v1282 = vunpack.c.h.b16 %v1211
  %v1283 = vunpack.c.l.b16 %v1212
  %v1284 = vunpack.c.h.b16 %v1212
  %v1285 = vunpack.c.l.b16 %v1213
  %v1286 = vunpack.c.h.b16 %v1213
  %v1287 = vunpack.c.l.b16 %v1214
  %v1288 = vunpack.c.h.b16 %v1214
  %v1289 = vunpack.c.l.b16 %v1215
  %v1290 = vunpack.c.h.b16 %v1215
  %v1291 = vunpack.c.l.b16 %v1216
  %v1292 = vunpack.c.h.b16 %v1216
  %v1293 = vunpack.c.l.b16 %v1217
  %v1294 = vunpack.c.h.b16 %v1217
  %v1295 = vunpack.c.l.b16 %v1218
  %v1296 = vunpack.c.h.b16 %v1218
  %v1297 = vunpack.c.l.b16 %v1219
  %v1298 = vunpack.c.h.b16 %v1219
  %v1299 = vunpack.c.l.b16 %v1220
  %v1300 = vunpack.c.h.b16 %v1220
  %v1301 = vunpack.c.l.b16 %v1221
  %v1302 = vunpack.c.h.b16 %v1221
  %v1303 = vunpack.c.l.b16 %v1222
  %v1304 = vunpack.c.h.b16 %v1222
  %v1305 = vunpack.c.l.b16 %v1223
  %v1306 = vunpack.c.h.b16 %v1223
  %v1307 = vunpack.c.l.b16 %v1224
  %v1308 = vunpack.c.h.b16 %v1224
  %v1309 = vunpack.c.l.b16 %v1225
  %v1310 = vunpack.c.h.b16 %v1225
  %v1311 = vunpack.c.l.b16 %v1226
  %v1312 = vunpack.c.h.b16 %v1226
  %v1313 = vunpack.c.l.b16 %v1227
  %v1314 = vunpack.c.h.b16 %v1227
  %v1315 = vunpack.c.l.b16 %v1228
  %v1316 = vunpack.c.h.b16 %v1228
  %v1317 = vunpack.c.l.b16 %v1229
  %v1318 = vunpack.c.h.b16 %v1229
  %v1319 = vunpack.c.l.b16 %v1230
  %v1320 = vunpack.c.h.b16 %v1230
  %v1321 = vunpack.c.l.b16 %v1231
  %v1322 = vunpack.c.h.b16 %v1231
  %v1323 = vunpack.c.l.b16 %v1232
  %v1324 = vunpack.c.h.b16 %v1232
  %v1325 = vunpack.c.l.b16 %v1233
  %v1326 = vunpack.c.h.b16 %v1233
  %v1327 = vunpack.c.l.b16 %v1234
  %v1328 = vunpack.c.h.b16 %v1234
  %v1329 = vunpack.c.l.b16 %v1235
  %v1330 = vunpack.c.h.b16 %v1235
  %v1331 = vunpack.c.l.b16 %v1236
  %v1332 = vunpack.c.h.b16 %v1236
  %v1333 = vpack.c.b16 %v1271, %v1269
  %v1334 = vpack.c.b16 %v1272, %v1270
  %v1335 = vpack.c.b16 %v1275, %v1273
  %v1336 = vpack.c.b16 %v1276, %v1274
  %v1337 = vpack.c.b16 %v1279, %v1277
  %v1338 = vpack.c.b16 %v1280, %v1278
  %v1339 = vpack.c.b16 %v1283, %v1281
  %v1340 = vpack.c.b16 %v1284, %v1282
  %v1341 = vpack.c.b16 %v1287, %v1285
  %v1342 = vpack.c.b16 %v1288, %v1286
  %v1343 = vpack.c.b16 %v1291, %v1289
  %v1344 = vpack.c.b16 %v1292, %v1290
  %v1345 = vpack.c.b16 %v1295, %v1293
  %v1346 = vpack.c.b16 %v1296, %v1294
  %v1347 = vpack.c.b16 %v1299, %v1297
  %v1348 = vpack.c.b16 %v1300, %v1298
  %v1349 = vpack.c.b16 %v1303, %v1301
  %v1350 = vpack.c.b16 %v1304, %v1302
  %v1351 = vpack.c.b16 %v1307, %v1305
  %v1352 = vpack.c.b16 %v1308, %v1306
  %v1353 = vpack.c.b16 %v1311, %v1309
  %v1354 = vpack.c.b16 %v1312, %v1310
  %v1355 = vpack.c.b16 %v1315, %v1313
  %v1356 = vpack.c.b16 %v1316, %v1314
  %v1357 = vpack.c.b16 %v1319, %v1317
  %v1358 = vpack.c.b16 %v1320, %v1318
  %v1359 = vpack.c.b16 %v1323, %v1321
  %v1360 = vpack.c.b16 %v1324, %v1322
  %v1361 = vpack.c.b16 %v1327, %v1325
  %v1362 = vpack.c.b16 %v1328, %v1326
  %v1363 = vpack.c.b16 %v1331, %v1329
  %v1364 = vpack.c.b16 %v1332, %v1330
  %1397 = vmatprep.subr.bf16.mxu0 %v1334
  %1398 = vmatpush1.bf16.msra.mxu0 %v1333
  %1399 = vmatprep.subr.bf16.mxu0 %v1336
  %1400 = vmatpush1.bf16.msra.mxu0 %v1335
  %1401 = vmatprep.subr.bf16.mxu0 %v1338
  %1402 = vmatpush1.bf16.msra.mxu0 %v1337
  %1403 = vmatprep.subr.bf16.mxu0 %v1340
  %1404 = vmatpush1.bf16.msra.mxu0 %v1339
  %1405 = vmatprep.subr.bf16.mxu0 %v1342
  %1406 = vmatpush1.bf16.msra.mxu0 %v1341
  %1407 = vmatprep.subr.bf16.mxu0 %v1344
  %1408 = vmatpush1.bf16.msra.mxu0 %v1343
  %1409 = vmatprep.subr.bf16.mxu0 %v1346
  %1410 = vmatpush1.bf16.msra.mxu0 %v1345
  %1411 = vmatprep.subr.bf16.mxu0 %v1348
  %1412 = vmatpush1.bf16.msra.mxu0 %v1347
  %1413 = vmatprep.subr.bf16.mxu0 %v1350
  %1414 = vmatpush1.bf16.msra.mxu0 %v1349
  %1415 = vmatprep.subr.bf16.mxu0 %v1352
  %1416 = vmatpush1.bf16.msra.mxu0 %v1351
  %1417 = vmatprep.subr.bf16.mxu0 %v1354
  %1418 = vmatpush1.bf16.msra.mxu0 %v1353
  %1419 = vmatprep.subr.bf16.mxu0 %v1356
  %1420 = vmatpush1.bf16.msra.mxu0 %v1355
  %1421 = vmatprep.subr.bf16.mxu0 %v1358
  %1422 = vmatpush1.bf16.msra.mxu0 %v1357
  %1423 = vmatprep.subr.bf16.mxu0 %v1360
  %1424 = vmatpush1.bf16.msra.mxu0 %v1359
  %1425 = vmatprep.subr.bf16.mxu0 %v1362
  %1426 = vmatpush1.bf16.msra.mxu0 %v1361
  %1427 = vmatprep.subr.bf16.mxu0 %v1364
  %1428 = vmatpush1.bf16.msra.mxu0 %v1363
  %1429 = vmatprep.mubr.bf16.mxu0 %v1189
  %1430 = vmatmul.mubr.bf16.gmra.mrb[0].mxu0 %v1188
  %v1431 = vpop.f32.mrb[0].mxu0
  %v1432 = vadd.f32 0.0, %v1431
  %v1433 = vpop.f32.mrb[0].mxu0
  %v1434 = vadd.f32 0.0, %v1433
  %v1435 = vpop.f32.mrb[0].mxu0
  %v1436 = vadd.f32 0.0, %v1435
  %v1437 = vpop.f32.mrb[0].mxu0
  %v1438 = vadd.f32 0.0, %v1437
  %1439 = vmatprep.mubr.bf16.mxu0 %v1191
  %1440 = vmatmul.mubr.bf16.gmra.mrb[0].mxu0 %v1190
  %v1441 = vpop.f32.mrb[0].mxu0
  %v1442 = vadd.f32 0.0, %v1441
  %v1443 = vpop.f32.mrb[0].mxu0
  %v1444 = vadd.f32 0.0, %v1443
  %v1445 = vpop.f32.mrb[0].mxu0
  %v1446 = vadd.f32 0.0, %v1445
  %v1447 = vpop.f32.mrb[0].mxu0
  %v1448 = vadd.f32 0.0, %v1447
  %1449 = vmatprep.mubr.bf16.mxu0 %v1193
  %1450 = vmatmul.mubr.bf16.gmra.mrb[0].mxu0 %v1192
  %v1451 = vpop.f32.mrb[0].mxu0
  %v1452 = vadd.f32 0.0, %v1451
  %v1453 = vpop.f32.mrb[0].mxu0
  %v1454 = vadd.f32 0.0, %v1453
  %v1455 = vpop.f32.mrb[0].mxu0
  %v1456 = vadd.f32 0.0, %v1455
  %v1457 = vpop.f32.mrb[0].mxu0
  %v1458 = vadd.f32 0.0, %v1457
  %1459 = vmatprep.mubr.bf16.mxu0 %v1195
  %1460 = vmatmul.mubr.bf16.gmra.mrb[0].mxu0 %v1194
  %v1461 = vpop.f32.mrb[0].mxu0
  %v1462 = vadd.f32 0.0, %v1461
  %v1463 = vpop.f32.mrb[0].mxu0
  %v1464 = vadd.f32 0.0, %v1463
  %v1465 = vpop.f32.mrb[0].mxu0
  %v1466 = vadd.f32 0.0, %v1465
  %v1467 = vpop.f32.mrb[0].mxu0
  %v1468 = vadd.f32 0.0, %v1467
  %1469 = vmatprep.mubr.bf16.mxu0 %v1197
  %1470 = vmatmul.mubr.bf16.gmra.mrb[0].mxu0 %v1196
  %v1471 = vpop.f32.mrb[0].mxu0
  %v1472 = vadd.f32 0.0, %v1471
  %v1473 = vpop.f32.mrb[0].mxu0
  %v1474 = vadd.f32 0.0, %v1473
  %v1475 = vpop.f32.mrb[0].mxu0
  %v1476 = vadd.f32 0.0, %v1475
  %v1477 = vpop.f32.mrb[0].mxu0
  %v1478 = vadd.f32 0.0, %v1477
  %1479 = vmatprep.mubr.bf16.mxu0 %v1199
  %1480 = vmatmul.mubr.bf16.gmra.mrb[0].mxu0 %v1198
  %v1481 = vpop.f32.mrb[0].mxu0
  %v1482 = vadd.f32 0.0, %v1481
  %v1483 = vpop.f32.mrb[0].mxu0
  %v1484 = vadd.f32 0.0, %v1483
  %v1485 = vpop.f32.mrb[0].mxu0
  %v1486 = vadd.f32 0.0, %v1485
  %v1487 = vpop.f32.mrb[0].mxu0
  %v1488 = vadd.f32 0.0, %v1487
  %1489 = vmatprep.mubr.bf16.mxu0 %v1201
  %1490 = vmatmul.mubr.bf16.gmra.mrb[0].mxu0 %v1200
  %v1491 = vpop.f32.mrb[0].mxu0
  %v1492 = vadd.f32 0.0, %v1491
  %v1493 = vpop.f32.mrb[0].mxu0
  %v1494 = vadd.f32 0.0, %v1493
  %v1495 = vpop.f32.mrb[0].mxu0
  %v1496 = vadd.f32 0.0, %v1495
  %v1497 = vpop.f32.mrb[0].mxu0
  %v1498 = vadd.f32 0.0, %v1497
  %1499 = vmatprep.mubr.bf16.mxu0 %v1203
  %1500 = vmatmul.mubr.bf16.gmra.mrb[0].mxu0 %v1202
  %v1501 = vpop.f32.mrb[0].mxu0
  %v1502 = vadd.f32 0.0, %v1501
  %v1503 = vpop.f32.mrb[0].mxu0
  %v1504 = vadd.f32 0.0, %v1503
  %v1505 = vpop.f32.mrb[0].mxu0
  %v1506 = vadd.f32 0.0, %v1505
  %v1507 = vpop.f32.mrb[0].mxu0
  %v1508 = vadd.f32 0.0, %v1507
  %1509 = vdwg.mxu0
  %v1510 = vadd.f32 %v1105, %v1432
  %v1511 = vadd.f32 %v1106, %v1434
  %v1512 = vadd.f32 %v1107, %v1436
  %v1513 = vadd.f32 %v1108, %v1438
  %v1514 = vadd.f32 %v1109, %v1442
  %v1515 = vadd.f32 %v1110, %v1444
  %v1516 = vadd.f32 %v1111, %v1446
  %v1517 = vadd.f32 %v1112, %v1448
  %v1518 = vadd.f32 %v1113, %v1452
  %v1519 = vadd.f32 %v1114, %v1454
  %v1520 = vadd.f32 %v1115, %v1456
  %v1521 = vadd.f32 %v1116, %v1458
  %v1522 = vadd.f32 %v1117, %v1462
  %v1523 = vadd.f32 %v1118, %v1464
  %v1524 = vadd.f32 %v1119, %v1466
  %v1525 = vadd.f32 %v1120, %v1468
  %v1526 = vadd.f32 %v1121, %v1472
  %v1527 = vadd.f32 %v1122, %v1474
  %v1528 = vadd.f32 %v1123, %v1476
  %v1529 = vadd.f32 %v1124, %v1478
  %v1530 = vadd.f32 %v1125, %v1482
  %v1531 = vadd.f32 %v1126, %v1484
  %v1532 = vadd.f32 %v1127, %v1486
  %v1533 = vadd.f32 %v1128, %v1488
  %v1534 = vadd.f32 %v1129, %v1492
  %v1535 = vadd.f32 %v1130, %v1494
  %v1536 = vadd.f32 %v1131, %v1496
  %v1537 = vadd.f32 %v1132, %v1498
  %v1538 = vadd.f32 %v1133, %v1502
  %v1539 = vadd.f32 %v1134, %v1504
  %v1540 = vadd.f32 %v1135, %v1506
  %v1541 = vadd.f32 %v1136, %v1508
  %1542 = vst [vmem:[#allocation2] sm:$0xff] %v1510
  %1543 = vst [vmem:[#allocation2 + $0x8] sm:$0xff] %v1511
  %1544 = vst [vmem:[#allocation2 + $0x10] sm:$0xff] %v1512
  %1545 = vst [vmem:[#allocation2 + $0x18] sm:$0xff] %v1513
  %1546 = vst [vmem:[#allocation2 + $0x20] sm:$0xff] %v1514
  %1547 = vst [vmem:[#allocation2 + $0x28] sm:$0xff] %v1515
  %1548 = vst [vmem:[#allocation2 + $0x30] sm:$0xff] %v1516
  %1549 = vst [vmem:[#allocation2 + $0x38] sm:$0xff] %v1517
  %1550 = vst [vmem:[#allocation2 + $0x40] sm:$0xff] %v1518
  %1551 = vst [vmem:[#allocation2 + $0x48] sm:$0xff] %v1519
  %1552 = vst [vmem:[#allocation2 + $0x50] sm:$0xff] %v1520
  %1553 = vst [vmem:[#allocation2 + $0x58] sm:$0xff] %v1521
  %1554 = vst [vmem:[#allocation2 + $0x60] sm:$0xff] %v1522
  %1555 = vst [vmem:[#allocation2 + $0x68] sm:$0xff] %v1523
  %1556 = vst [vmem:[#allocation2 + $0x70] sm:$0xff] %v1524
  %1557 = vst [vmem:[#allocation2 + $0x78] sm:$0xff] %v1525
  %1558 = vst [vmem:[#allocation2 + $0x80] sm:$0xff] %v1526
  %1559 = vst [vmem:[#allocation2 + $0x88] sm:$0xff] %v1527
  %1560 = vst [vmem:[#allocation2 + $0x90] sm:$0xff] %v1528
  %1561 = vst [vmem:[#allocation2 + $0x98] sm:$0xff] %v1529
  %1562 = vst [vmem:[#allocation2 + $0xa0] sm:$0xff] %v1530
  %1563 = vst [vmem:[#allocation2 + $0xa8] sm:$0xff] %v1531
  %1564 = vst [vmem:[#allocation2 + $0xb0] sm:$0xff] %v1532
  %1565 = vst [vmem:[#allocation2 + $0xb8] sm:$0xff] %v1533
  %1566 = vst [vmem:[#allocation2 + $0xc0] sm:$0xff] %v1534
  %1567 = vst [vmem:[#allocation2 + $0xc8] sm:$0xff] %v1535
  %1568 = vst [vmem:[#allocation2 + $0xd0] sm:$0xff] %v1536
  %1569 = vst [vmem:[#allocation2 + $0xd8] sm:$0xff] %v1537
  %1570 = vst [vmem:[#allocation2 + $0xe0] sm:$0xff] %v1538
  %1571 = vst [vmem:[#allocation2 + $0xe8] sm:$0xff] %v1539
  %1572 = vst [vmem:[#allocation2 + $0xf0] sm:$0xff] %v1540
  %1573 = vst [vmem:[#allocation2 + $0xf8] sm:$0xff] %v1541
  %v1574 = vld [vmem:[#allocation2] sm:$0xff]
  %v1575 = vld [vmem:[#allocation2 + $0x8] sm:$0xff]
  %v1576 = vld [vmem:[#allocation2 + $0x10] sm:$0xff]
  %v1577 = vld [vmem:[#allocation2 + $0x18] sm:$0xff]
  %v1578 = vld [vmem:[#allocation2 + $0x20] sm:$0xff]
  %v1579 = vld [vmem:[#allocation2 + $0x28] sm:$0xff]
  %v1580 = vld [vmem:[#allocation2 + $0x30] sm:$0xff]
  %v1581 = vld [vmem:[#allocation2 + $0x38] sm:$0xff]
  %v1582 = vld [vmem:[#allocation2 + $0x40] sm:$0xff]
  %v1583 = vld [vmem:[#allocation2 + $0x48] sm:$0xff]
  %v1584 = vld [vmem:[#allocation2 + $0x50] sm:$0xff]
  %v1585 = vld [vmem:[#allocation2 + $0x58] sm:$0xff]
  %v1586 = vld [vmem:[#allocation2 + $0x60] sm:$0xff]
  %v1587 = vld [vmem:[#allocation2 + $0x68] sm:$0xff]
  %v1588 = vld [vmem:[#allocation2 + $0x70] sm:$0xff]
  %v1589 = vld [vmem:[#allocation2 + $0x78] sm:$0xff]
  %v1590 = vld [vmem:[#allocation2 + $0x80] sm:$0xff]
  %v1591 = vld [vmem:[#allocation2 + $0x88] sm:$0xff]
  %v1592 = vld [vmem:[#allocation2 + $0x90] sm:$0xff]
  %v1593 = vld [vmem:[#allocation2 + $0x98] sm:$0xff]
  %v1594 = vld [vmem:[#allocation2 + $0xa0] sm:$0xff]
  %v1595 = vld [vmem:[#allocation2 + $0xa8] sm:$0xff]
  %v1596 = vld [vmem:[#allocation2 + $0xb0] sm:$0xff]
  %v1597 = vld [vmem:[#allocation2 + $0xb8] sm:$0xff]
  %v1598 = vld [vmem:[#allocation2 + $0xc0] sm:$0xff]
  %v1599 = vld [vmem:[#allocation2 + $0xc8] sm:$0xff]
  %v1600 = vld [vmem:[#allocation2 + $0xd0] sm:$0xff]
  %v1601 = vld [vmem:[#allocation2 + $0xd8] sm:$0xff]
  %v1602 = vld [vmem:[#allocation2 + $0xe0] sm:$0xff]
  %v1603 = vld [vmem:[#allocation2 + $0xe8] sm:$0xff]
  %v1604 = vld [vmem:[#allocation2 + $0xf0] sm:$0xff]
  %v1605 = vld [vmem:[#allocation2 + $0xf8] sm:$0xff]
  %v1606 = vtanh.pop %v1574
  %v1607 = vtanh.pop %v1575
  %v1608 = vtanh.pop %v1576
  %v1609 = vtanh.pop %v1577
  %v1610 = vtanh.pop %v1578
  %v1611 = vtanh.pop %v1579
  %v1612 = vtanh.pop %v1580
  %v1613 = vtanh.pop %v1581
  %v1614 = vtanh.pop %v1582
  %v1615 = vtanh.pop %v1583
  %v1616 = vtanh.pop %v1584
  %v1617 = vtanh.pop %v1585
  %v1618 = vtanh.pop %v1586
  %v1619 = vtanh.pop %v1587
  %v1620 = vtanh.pop %v1588
  %v1621 = vtanh.pop %v1589
  %v1622 = vtanh.pop %v1590
  %v1623 = vtanh.pop %v1591
  %v1624 = vtanh.pop %v1592
  %v1625 = vtanh.pop %v1593
  %v1626 = vtanh.pop %v1594
  %v1627 = vtanh.pop %v1595
  %v1628 = vtanh.pop %v1596
  %v1629 = vtanh.pop %v1597
  %v1630 = vtanh.pop %v1598
  %v1631 = vtanh.pop %v1599
  %v1632 = vtanh.pop %v1600
  %v1633 = vtanh.pop %v1601
  %v1634 = vtanh.pop %v1602
  %v1635 = vtanh.pop %v1603
  %v1636 = vtanh.pop %v1604
  %v1637 = vtanh.pop %v1605
  %v1638 = vpack.c.bf16 %v1608, %v1606
  %v1639 = vpack.c.bf16 %v1609, %v1607
  %v1640 = vpack.c.bf16 %v1612, %v1610
  %v1641 = vpack.c.bf16 %v1613, %v1611
  %v1642 = vpack.c.bf16 %v1616, %v1614
  %v1643 = vpack.c.bf16 %v1617, %v1615
  %v1644 = vpack.c.bf16 %v1620, %v1618
  %v1645 = vpack.c.bf16 %v1621, %v1619
  %v1646 = vpack.c.bf16 %v1624, %v1622
  %v1647 = vpack.c.bf16 %v1625, %v1623
  %v1648 = vpack.c.bf16 %v1628, %v1626
  %v1649 = vpack.c.bf16 %v1629, %v1627
  %v1650 = vpack.c.bf16 %v1632, %v1630
  %v1651 = vpack.c.bf16 %v1633, %v1631
  %v1652 = vpack.c.bf16 %v1636, %v1634
  %v1653 = vpack.c.bf16 %v1637, %v1635
  %s1654 = scalar_lea.vmem %s2, 1
  %v1655 = vld [vmem:[%s1654] ss:$4 sm:$0x3]
  %v1657 = vlaneseq
  %v1658 = vshrl.u32 %v1657, 7
  %v1659 = vsub.s32 0, %v1658
  %v1660 = vrot.slane %v1655, %v1659
  %v1661 = vlaneseq
  %v1662 = vshrl.u32 %v1661, 7
  %v1663 = vsub.s32 1, %v1662
  %v1664 = vrot.slane %v1655, %v1663
  %1667 = vst [vmem:[#allocation2] sm:$0xff] %v1660
  %1668 = vst [vmem:[#allocation2 + $0x8] sm:$0xff] %v1664
  %1669 = vst [vmem:[#allocation2 + $0x10] sm:$0xff] %v1660
  %1670 = vst [vmem:[#allocation2 + $0x18] sm:$0xff] %v1664
  %1671 = vst [vmem:[#allocation2 + $0x20] sm:$0xff] %v1660
  %1672 = vst [vmem:[#allocation2 + $0x28] sm:$0xff] %v1664
  %1673 = vst [vmem:[#allocation2 + $0x30] sm:$0xff] %v1660
  %1674 = vst [vmem:[#allocation2 + $0x38] sm:$0xff] %v1664
  %1675 = vst [vmem:[#allocation2 + $0x40] sm:$0xff] %v1660
  %1676 = vst [vmem:[#allocation2 + $0x48] sm:$0xff] %v1664
  %1677 = vst [vmem:[#allocation2 + $0x50] sm:$0xff] %v1660
  %1678 = vst [vmem:[#allocation2 + $0x58] sm:$0xff] %v1664
  %1679 = vst [vmem:[#allocation2 + $0x60] sm:$0xff] %v1660
  %1680 = vst [vmem:[#allocation2 + $0x68] sm:$0xff] %v1664
  %1681 = vst [vmem:[#allocation2 + $0x70] sm:$0xff] %v1660
  %1682 = vst [vmem:[#allocation2 + $0x78] sm:$0xff] %v1664
  %1683 = vst [vmem:[#allocation2 + $0x80] sm:$0xff] %v1660
  %1684 = vst [vmem:[#allocation2 + $0x88] sm:$0xff] %v1664
  %1685 = vst [vmem:[#allocation2 + $0x90] sm:$0xff] %v1660
  %1686 = vst [vmem:[#allocation2 + $0x98] sm:$0xff] %v1664
  %1687 = vst [vmem:[#allocation2 + $0xa0] sm:$0xff] %v1660
  %1688 = vst [vmem:[#allocation2 + $0xa8] sm:$0xff] %v1664
  %1689 = vst [vmem:[#allocation2 + $0xb0] sm:$0xff] %v1660
  %1690 = vst [vmem:[#allocation2 + $0xb8] sm:$0xff] %v1664
  %1691 = vst [vmem:[#allocation2 + $0xc0] sm:$0xff] %v1660
  %1692 = vst [vmem:[#allocation2 + $0xc8] sm:$0xff] %v1664
  %1693 = vst [vmem:[#allocation2 + $0xd0] sm:$0xff] %v1660
  %1694 = vst [vmem:[#allocation2 + $0xd8] sm:$0xff] %v1664
  %1695 = vst [vmem:[#allocation2 + $0xe0] sm:$0xff] %v1660
  %1696 = vst [vmem:[#allocation2 + $0xe8] sm:$0xff] %v1664
  %1697 = vst [vmem:[#allocation2 + $0xf0] sm:$0xff] %v1660
  %1698 = vst [vmem:[#allocation2 + $0xf8] sm:$0xff] %v1664
  %v1699 = vld [vmem:[#allocation2] sm:$0xff]
  %v1700 = vld [vmem:[#allocation2 + $0x8] sm:$0xff]
  %v1701 = vld [vmem:[#allocation2 + $0x10] sm:$0xff]
  %v1702 = vld [vmem:[#allocation2 + $0x18] sm:$0xff]
  %v1703 = vld [vmem:[#allocation2 + $0x20] sm:$0xff]
  %v1704 = vld [vmem:[#allocation2 + $0x28] sm:$0xff]
  %v1705 = vld [vmem:[#allocation2 + $0x30] sm:$0xff]
  %v1706 = vld [vmem:[#allocation2 + $0x38] sm:$0xff]
  %v1707 = vld [vmem:[#allocation2 + $0x40] sm:$0xff]
  %v1708 = vld [vmem:[#allocation2 + $0x48] sm:$0xff]
  %v1709 = vld [vmem:[#allocation2 + $0x50] sm:$0xff]
  %v1710 = vld [vmem:[#allocation2 + $0x58] sm:$0xff]
  %v1711 = vld [vmem:[#allocation2 + $0x60] sm:$0xff]
  %v1712 = vld [vmem:[#allocation2 + $0x68] sm:$0xff]
  %v1713 = vld [vmem:[#allocation2 + $0x70] sm:$0xff]
  %v1714 = vld [vmem:[#allocation2 + $0x78] sm:$0xff]
  %v1715 = vld [vmem:[#allocation2 + $0x80] sm:$0xff]
  %v1716 = vld [vmem:[#allocation2 + $0x88] sm:$0xff]
  %v1717 = vld [vmem:[#allocation2 + $0x90] sm:$0xff]
  %v1718 = vld [vmem:[#allocation2 + $0x98] sm:$0xff]
  %v1719 = vld [vmem:[#allocation2 + $0xa0] sm:$0xff]
  %v1720 = vld [vmem:[#allocation2 + $0xa8] sm:$0xff]
  %v1721 = vld [vmem:[#allocation2 + $0xb0] sm:$0xff]
  %v1722 = vld [vmem:[#allocation2 + $0xb8] sm:$0xff]
  %v1723 = vld [vmem:[#allocation2 + $0xc0] sm:$0xff]
  %v1724 = vld [vmem:[#allocation2 + $0xc8] sm:$0xff]
  %v1725 = vld [vmem:[#allocation2 + $0xd0] sm:$0xff]
  %v1726 = vld [vmem:[#allocation2 + $0xd8] sm:$0xff]
  %v1727 = vld [vmem:[#allocation2 + $0xe0] sm:$0xff]
  %v1728 = vld [vmem:[#allocation2 + $0xe8] sm:$0xff]
  %v1729 = vld [vmem:[#allocation2 + $0xf0] sm:$0xff]
  %v1730 = vld [vmem:[#allocation2 + $0xf8] sm:$0xff]
  %v1732 = vshrl.u32 %v1638, 16
  %v1734 = vrot.slane %v1732, 7
  %v1735 = vshll.u32 %v1638, 16
  %v1737 = vor.u32 %v1734, %v1735
  %v1739 = vshrl.u32 %v1639, 16
  %v1741 = vrot.slane %v1739, 7
  %v1742 = vshll.u32 %v1639, 16
  %v1744 = vor.u32 %v1741, %v1742
  %v1746 = vshrl.u32 %v1640, 16
  %v1748 = vrot.slane %v1746, 7
  %v1749 = vshll.u32 %v1640, 16
  %v1751 = vor.u32 %v1748, %v1749
  %v1753 = vshrl.u32 %v1641, 16
  %v1755 = vrot.slane %v1753, 7
  %v1756 = vshll.u32 %v1641, 16
  %v1758 = vor.u32 %v1755, %v1756
  %v1760 = vshrl.u32 %v1642, 16
  %v1762 = vrot.slane %v1760, 7
  %v1763 = vshll.u32 %v1642, 16
  %v1765 = vor.u32 %v1762, %v1763
  %v1767 = vshrl.u32 %v1643, 16
  %v1769 = vrot.slane %v1767, 7
  %v1770 = vshll.u32 %v1643, 16
  %v1772 = vor.u32 %v1769, %v1770
  %v1774 = vshrl.u32 %v1644, 16
  %v1776 = vrot.slane %v1774, 7
  %v1777 = vshll.u32 %v1644, 16
  %v1779 = vor.u32 %v1776, %v1777
  %v1781 = vshrl.u32 %v1645, 16
  %v1783 = vrot.slane %v1781, 7
  %v1784 = vshll.u32 %v1645, 16
  %v1786 = vor.u32 %v1783, %v1784
  %v1788 = vshrl.u32 %v1646, 16
  %v1790 = vrot.slane %v1788, 7
  %v1791 = vshll.u32 %v1646, 16
  %v1793 = vor.u32 %v1790, %v1791
  %v1795 = vshrl.u32 %v1647, 16
  %v1797 = vrot.slane %v1795, 7
  %v1798 = vshll.u32 %v1647, 16
  %v1800 = vor.u32 %v1797, %v1798
  %v1802 = vshrl.u32 %v1648, 16
  %v1804 = vrot.slane %v1802, 7
  %v1805 = vshll.u32 %v1648, 16
  %v1807 = vor.u32 %v1804, %v1805
  %v1809 = vshrl.u32 %v1649, 16
  %v1811 = vrot.slane %v1809, 7
  %v1812 = vshll.u32 %v1649, 16
  %v1814 = vor.u32 %v1811, %v1812
  %v1816 = vshrl.u32 %v1650, 16
  %v1818 = vrot.slane %v1816, 7
  %v1819 = vshll.u32 %v1650, 16
  %v1821 = vor.u32 %v1818, %v1819
  %v1823 = vshrl.u32 %v1651, 16
  %v1825 = vrot.slane %v1823, 7
  %v1826 = vshll.u32 %v1651, 16
  %v1828 = vor.u32 %v1825, %v1826
  %v1830 = vshrl.u32 %v1652, 16
  %v1832 = vrot.slane %v1830, 7
  %v1833 = vshll.u32 %v1652, 16
  %v1835 = vor.u32 %v1832, %v1833
  %v1837 = vshrl.u32 %v1653, 16
  %v1839 = vrot.slane %v1837, 7
  %v1840 = vshll.u32 %v1653, 16
  %v1842 = vor.u32 %v1839, %v1840
  %v1859 = vsel %vm301, 0, %v1737
  %v1860 = vsel %vm301, 0, %v1744
  %v1861 = vsel %vm301, 0, %v1751
  %v1862 = vsel %vm301, 0, %v1758
  %v1863 = vsel %vm301, 0, %v1765
  %v1864 = vsel %vm301, 0, %v1772
  %v1865 = vsel %vm301, 0, %v1779
  %v1866 = vsel %vm301, 0, %v1786
  %v1867 = vsel %vm301, 0, %v1793
  %v1868 = vsel %vm301, 0, %v1800
  %v1869 = vsel %vm301, 0, %v1807
  %v1870 = vsel %vm301, 0, %v1814
  %v1871 = vsel %vm301, 0, %v1821
  %v1872 = vsel %vm301, 0, %v1828
  %v1873 = vsel %vm301, 0, %v1835
  %v1874 = vsel %vm301, 0, %v1842
  %s1875 = scalar_lea.vmem %s1, 768
  %v1876 = vld [vmem:[%s1875] sm:$0xff]
  %v1877 = vld [vmem:[%s1875 + $0x8] sm:$0xff]
  %v1878 = vld [vmem:[%s1875 + $0x10] sm:$0xff]
  %v1879 = vld [vmem:[%s1875 + $0x18] sm:$0xff]
  %v1880 = vld [vmem:[%s1875 + $0x20] sm:$0xff]
  %v1881 = vld [vmem:[%s1875 + $0x28] sm:$0xff]
  %v1882 = vld [vmem:[%s1875 + $0x30] sm:$0xff]
  %v1883 = vld [vmem:[%s1875 + $0x38] sm:$0xff]
  %v1884 = vld [vmem:[%s1875 + $0x40] sm:$0xff]
  %v1885 = vld [vmem:[%s1875 + $0x48] sm:$0xff]
  %v1886 = vld [vmem:[%s1875 + $0x50] sm:$0xff]
  %v1887 = vld [vmem:[%s1875 + $0x58] sm:$0xff]
  %v1888 = vld [vmem:[%s1875 + $0x60] sm:$0xff]
  %v1889 = vld [vmem:[%s1875 + $0x68] sm:$0xff]
  %v1890 = vld [vmem:[%s1875 + $0x70] sm:$0xff]
  %v1891 = vld [vmem:[%s1875 + $0x78] sm:$0xff]
  %v1892 = vld [vmem:[%s1875 + $0x80] sm:$0xff]
  %v1893 = vld [vmem:[%s1875 + $0x88] sm:$0xff]
  %v1894 = vld [vmem:[%s1875 + $0x90] sm:$0xff]
  %v1895 = vld [vmem:[%s1875 + $0x98] sm:$0xff]
  %v1896 = vld [vmem:[%s1875 + $0xa0] sm:$0xff]
  %v1897 = vld [vmem:[%s1875 + $0xa8] sm:$0xff]
  %v1898 = vld [vmem:[%s1875 + $0xb0] sm:$0xff]
  %v1899 = vld [vmem:[%s1875 + $0xb8] sm:$0xff]
  %v1900 = vld [vmem:[%s1875 + $0xc0] sm:$0xff]
  %v1901 = vld [vmem:[%s1875 + $0xc8] sm:$0xff]
  %v1902 = vld [vmem:[%s1875 + $0xd0] sm:$0xff]
  %v1903 = vld [vmem:[%s1875 + $0xd8] sm:$0xff]
  %v1904 = vld [vmem:[%s1875 + $0xe0] sm:$0xff]
  %v1905 = vld [vmem:[%s1875 + $0xe8] sm:$0xff]
  %v1906 = vld [vmem:[%s1875 + $0xf0] sm:$0xff]
  %v1907 = vld [vmem:[%s1875 + $0xf8] sm:$0xff]
  %v1940 = vunpack.c.l.b16 %v1876
  %v1941 = vunpack.c.h.b16 %v1876
  %v1942 = vunpack.c.l.b16 %v1877
  %v1943 = vunpack.c.h.b16 %v1877
  %v1944 = vunpack.c.l.b16 %v1878
  %v1945 = vunpack.c.h.b16 %v1878
  %v1946 = vunpack.c.l.b16 %v1879
  %v1947 = vunpack.c.h.b16 %v1879
  %v1948 = vunpack.c.l.b16 %v1880
  %v1949 = vunpack.c.h.b16 %v1880
  %v1950 = vunpack.c.l.b16 %v1881
  %v1951 = vunpack.c.h.b16 %v1881
  %v1952 = vunpack.c.l.b16 %v1882
  %v1953 = vunpack.c.h.b16 %v1882
  %v1954 = vunpack.c.l.b16 %v1883
  %v1955 = vunpack.c.h.b16 %v1883
  %v1956 = vunpack.c.l.b16 %v1884
  %v1957 = vunpack.c.h.b16 %v1884
  %v1958 = vunpack.c.l.b16 %v1885
  %v1959 = vunpack.c.h.b16 %v1885
  %v1960 = vunpack.c.l.b16 %v1886
  %v1961 = vunpack.c.h.b16 %v1886
  %v1962 = vunpack.c.l.b16 %v1887
  %v1963 = vunpack.c.h.b16 %v1887
  %v1964 = vunpack.c.l.b16 %v1888
  %v1965 = vunpack.c.h.b16 %v1888
  %v1966 = vunpack.c.l.b16 %v1889
  %v1967 = vunpack.c.h.b16 %v1889
  %v1968 = vunpack.c.l.b16 %v1890
  %v1969 = vunpack.c.h.b16 %v1890
  %v1970 = vunpack.c.l.b16 %v1891
  %v1971 = vunpack.c.h.b16 %v1891
  %v1972 = vunpack.c.l.b16 %v1892
  %v1973 = vunpack.c.h.b16 %v1892
  %v1974 = vunpack.c.l.b16 %v1893
  %v1975 = vunpack.c.h.b16 %v1893
  %v1976 = vunpack.c.l.b16 %v1894
  %v1977 = vunpack.c.h.b16 %v1894
  %v1978 = vunpack.c.l.b16 %v1895
  %v1979 = vunpack.c.h.b16 %v1895
  %v1980 = vunpack.c.l.b16 %v1896
  %v1981 = vunpack.c.h.b16 %v1896
  %v1982 = vunpack.c.l.b16 %v1897
  %v1983 = vunpack.c.h.b16 %v1897
  %v1984 = vunpack.c.l.b16 %v1898
  %v1985 = vunpack.c.h.b16 %v1898
  %v1986 = vunpack.c.l.b16 %v1899
  %v1987 = vunpack.c.h.b16 %v1899
  %v1988 = vunpack.c.l.b16 %v1900
  %v1989 = vunpack.c.h.b16 %v1900
  %v1990 = vunpack.c.l.b16 %v1901
  %v1991 = vunpack.c.h.b16 %v1901
  %v1992 = vunpack.c.l.b16 %v1902
  %v1993 = vunpack.c.h.b16 %v1902
  %v1994 = vunpack.c.l.b16 %v1903
  %v1995 = vunpack.c.h.b16 %v1903
  %v1996 = vunpack.c.l.b16 %v1904
  %v1997 = vunpack.c.h.b16 %v1904
  %v1998 = vunpack.c.l.b16 %v1905
  %v1999 = vunpack.c.h.b16 %v1905
  %v2000 = vunpack.c.l.b16 %v1906
  %v2001 = vunpack.c.h.b16 %v1906
  %v2002 = vunpack.c.l.b16 %v1907
  %v2003 = vunpack.c.h.b16 %v1907
  %v2004 = vpack.c.b16 %v1942, %v1940
  %v2005 = vpack.c.b16 %v1943, %v1941
  %v2006 = vpack.c.b16 %v1946, %v1944
  %v2007 = vpack.c.b16 %v1947, %v1945
  %v2008 = vpack.c.b16 %v1950, %v1948
  %v2009 = vpack.c.b16 %v1951, %v1949
  %v2010 = vpack.c.b16 %v1954, %v1952
  %v2011 = vpack.c.b16 %v1955, %v1953
  %v2012 = vpack.c.b16 %v1958, %v1956
  %v2013 = vpack.c.b16 %v1959, %v1957
  %v2014 = vpack.c.b16 %v1962, %v1960
  %v2015 = vpack.c.b16 %v1963, %v1961
  %v2016 = vpack.c.b16 %v1966, %v1964
  %v2017 = vpack.c.b16 %v1967, %v1965
  %v2018 = vpack.c.b16 %v1970, %v1968
  %v2019 = vpack.c.b16 %v1971, %v1969
  %v2020 = vpack.c.b16 %v1974, %v1972
  %v2021 = vpack.c.b16 %v1975, %v1973
  %v2022 = vpack.c.b16 %v1978, %v1976
  %v2023 = vpack.c.b16 %v1979, %v1977
  %v2024 = vpack.c.b16 %v1982, %v1980
  %v2025 = vpack.c.b16 %v1983, %v1981
  %v2026 = vpack.c.b16 %v1986, %v1984
  %v2027 = vpack.c.b16 %v1987, %v1985
  %v2028 = vpack.c.b16 %v1990, %v1988
  %v2029 = vpack.c.b16 %v1991, %v1989
  %v2030 = vpack.c.b16 %v1994, %v1992
  %v2031 = vpack.c.b16 %v1995, %v1993
  %v2032 = vpack.c.b16 %v1998, %v1996
  %v2033 = vpack.c.b16 %v1999, %v1997
  %v2034 = vpack.c.b16 %v2002, %v2000
  %v2035 = vpack.c.b16 %v2003, %v2001
  %2068 = vmatprep.subr.bf16.mxu0 %v2005
  %2069 = vmatpush1.bf16.msra.mxu0 %v2004
  %2070 = vmatprep.subr.bf16.mxu0 %v2007
  %2071 = vmatpush1.bf16.msra.mxu0 %v2006
  %2072 = vmatprep.subr.bf16.mxu0 %v2009
  %2073 = vmatpush1.bf16.msra.mxu0 %v2008
  %2074 = vmatprep.subr.bf16.mxu0 %v2011
  %2075 = vmatpush1.bf16.msra.mxu0 %v2010
  %2076 = vmatprep.subr.bf16.mxu0 %v2013
  %2077 = vmatpush1.bf16.msra.mxu0 %v2012
  %2078 = vmatprep.subr.bf16.mxu0 %v2015
  %2079 = vmatpush1.bf16.msra.mxu0 %v2014
  %2080 = vmatprep.subr.bf16.mxu0 %v2017
  %2081 = vmatpush1.bf16.msra.mxu0 %v2016
  %2082 = vmatprep.subr.bf16.mxu0 %v2019
  %2083 = vmatpush1.bf16.msra.mxu0 %v2018
  %2084 = vmatprep.subr.bf16.mxu0 %v2021
  %2085 = vmatpush1.bf16.msra.mxu0 %v2020
  %2086 = vmatprep.subr.bf16.mxu0 %v2023
  %2087 = vmatpush1.bf16.msra.mxu0 %v2022
  %2088 = vmatprep.subr.bf16.mxu0 %v2025
  %2089 = vmatpush1.bf16.msra.mxu0 %v2024
  %2090 = vmatprep.subr.bf16.mxu0 %v2027
  %2091 = vmatpush1.bf16.msra.mxu0 %v2026
  %2092 = vmatprep.subr.bf16.mxu0 %v2029
  %2093 = vmatpush1.bf16.msra.mxu0 %v2028
  %2094 = vmatprep.subr.bf16.mxu0 %v2031
  %2095 = vmatpush1.bf16.msra.mxu0 %v2030
  %2096 = vmatprep.subr.bf16.mxu0 %v2033
  %2097 = vmatpush1.bf16.msra.mxu0 %v2032
  %2098 = vmatprep.subr.bf16.mxu0 %v2035
  %2099 = vmatpush1.bf16.msra.mxu0 %v2034
  %2100 = vmatprep.mubr.bf16.mxu0 %v1860
  %2101 = vmatmul.mubr.bf16.gmra.mrb[0].mxu0 %v1859
  %v2102 = vpop.f32.mrb[0].mxu0
  %v2103 = vadd.f32 0.0, %v2102
  %v2104 = vpop.f32.mrb[0].mxu0
  %v2105 = vadd.f32 0.0, %v2104
  %v2106 = vpop.f32.mrb[0].mxu0
  %v2107 = vadd.f32 0.0, %v2106
  %v2108 = vpop.f32.mrb[0].mxu0
  %v2109 = vadd.f32 0.0, %v2108
  %2110 = vmatprep.mubr.bf16.mxu0 %v1862
  %2111 = vmatmul.mubr.bf16.gmra.mrb[0].mxu0 %v1861
  %v2112 = vpop.f32.mrb[0].mxu0
  %v2113 = vadd.f32 0.0, %v2112
  %v2114 = vpop.f32.mrb[0].mxu0
  %v2115 = vadd.f32 0.0, %v2114
  %v2116 = vpop.f32.mrb[0].mxu0
  %v2117 = vadd.f32 0.0, %v2116
  %v2118 = vpop.f32.mrb[0].mxu0
  %v2119 = vadd.f32 0.0, %v2118
  %2120 = vmatprep.mubr.bf16.mxu0 %v1864
  %2121 = vmatmul.mubr.bf16.gmra.mrb[0].mxu0 %v1863
  %v2122 = vpop.f32.mrb[0].mxu0
  %v2123 = vadd.f32 0.0, %v2122
  %v2124 = vpop.f32.mrb[0].mxu0
  %v2125 = vadd.f32 0.0, %v2124
  %v2126 = vpop.f32.mrb[0].mxu0
  %v2127 = vadd.f32 0.0, %v2126
  %v2128 = vpop.f32.mrb[0].mxu0
  %v2129 = vadd.f32 0.0, %v2128
  %2130 = vmatprep.mubr.bf16.mxu0 %v1866
  %2131 = vmatmul.mubr.bf16.gmra.mrb[0].mxu0 %v1865
  %v2132 = vpop.f32.mrb[0].mxu0
  %v2133 = vadd.f32 0.0, %v2132
  %v2134 = vpop.f32.mrb[0].mxu0
  %v2135 = vadd.f32 0.0, %v2134
  %v2136 = vpop.f32.mrb[0].mxu0
  %v2137 = vadd.f32 0.0, %v2136
  %v2138 = vpop.f32.mrb[0].mxu0
  %v2139 = vadd.f32 0.0, %v2138
  %2140 = vmatprep.mubr.bf16.mxu0 %v1868
  %2141 = vmatmul.mubr.bf16.gmra.mrb[0].mxu0 %v1867
  %v2142 = vpop.f32.mrb[0].mxu0
  %v2143 = vadd.f32 0.0, %v2142
  %v2144 = vpop.f32.mrb[0].mxu0
  %v2145 = vadd.f32 0.0, %v2144
  %v2146 = vpop.f32.mrb[0].mxu0
  %v2147 = vadd.f32 0.0, %v2146
  %v2148 = vpop.f32.mrb[0].mxu0
  %v2149 = vadd.f32 0.0, %v2148
  %2150 = vmatprep.mubr.bf16.mxu0 %v1870
  %2151 = vmatmul.mubr.bf16.gmra.mrb[0].mxu0 %v1869
  %v2152 = vpop.f32.mrb[0].mxu0
  %v2153 = vadd.f32 0.0, %v2152
  %v2154 = vpop.f32.mrb[0].mxu0
  %v2155 = vadd.f32 0.0, %v2154
  %v2156 = vpop.f32.mrb[0].mxu0
  %v2157 = vadd.f32 0.0, %v2156
  %v2158 = vpop.f32.mrb[0].mxu0
  %v2159 = vadd.f32 0.0, %v2158
  %2160 = vmatprep.mubr.bf16.mxu0 %v1872
  %2161 = vmatmul.mubr.bf16.gmra.mrb[0].mxu0 %v1871
  %v2162 = vpop.f32.mrb[0].mxu0
  %v2163 = vadd.f32 0.0, %v2162
  %v2164 = vpop.f32.mrb[0].mxu0
  %v2165 = vadd.f32 0.0, %v2164
  %v2166 = vpop.f32.mrb[0].mxu0
  %v2167 = vadd.f32 0.0, %v2166
  %v2168 = vpop.f32.mrb[0].mxu0
  %v2169 = vadd.f32 0.0, %v2168
  %2170 = vmatprep.mubr.bf16.mxu0 %v1874
  %2171 = vmatmul.mubr.bf16.gmra.mrb[0].mxu0 %v1873
  %v2172 = vpop.f32.mrb[0].mxu0
  %v2173 = vadd.f32 0.0, %v2172
  %v2174 = vpop.f32.mrb[0].mxu0
  %v2175 = vadd.f32 0.0, %v2174
  %v2176 = vpop.f32.mrb[0].mxu0
  %v2177 = vadd.f32 0.0, %v2176
  %v2178 = vpop.f32.mrb[0].mxu0
  %v2179 = vadd.f32 0.0, %v2178
  %2180 = vdwg.mxu0
  %v2181 = vadd.f32 %v1699, %v2103
  %v2182 = vadd.f32 %v1700, %v2105
  %v2183 = vadd.f32 %v1701, %v2107
  %v2184 = vadd.f32 %v1702, %v2109
  %v2185 = vadd.f32 %v1703, %v2113
  %v2186 = vadd.f32 %v1704, %v2115
  %v2187 = vadd.f32 %v1705, %v2117
  %v2188 = vadd.f32 %v1706, %v2119
  %v2189 = vadd.f32 %v1707, %v2123
  %v2190 = vadd.f32 %v1708, %v2125
  %v2191 = vadd.f32 %v1709, %v2127
  %v2192 = vadd.f32 %v1710, %v2129
  %v2193 = vadd.f32 %v1711, %v2133
  %v2194 = vadd.f32 %v1712, %v2135
  %v2195 = vadd.f32 %v1713, %v2137
  %v2196 = vadd.f32 %v1714, %v2139
  %v2197 = vadd.f32 %v1715, %v2143
  %v2198 = vadd.f32 %v1716, %v2145
  %v2199 = vadd.f32 %v1717, %v2147
  %v2200 = vadd.f32 %v1718, %v2149
  %v2201 = vadd.f32 %v1719, %v2153
  %v2202 = vadd.f32 %v1720, %v2155
  %v2203 = vadd.f32 %v1721, %v2157
  %v2204 = vadd.f32 %v1722, %v2159
  %v2205 = vadd.f32 %v1723, %v2163
  %v2206 = vadd.f32 %v1724, %v2165
  %v2207 = vadd.f32 %v1725, %v2167
  %v2208 = vadd.f32 %v1726, %v2169
  %v2209 = vadd.f32 %v1727, %v2173
  %v2210 = vadd.f32 %v1728, %v2175
  %v2211 = vadd.f32 %v1729, %v2177
  %v2212 = vadd.f32 %v1730, %v2179
  %2213 = vst [vmem:[#allocation2] sm:$0xff] %v2181
  %2214 = vst [vmem:[#allocation2 + $0x8] sm:$0xff] %v2182
  %2215 = vst [vmem:[#allocation2 + $0x10] sm:$0xff] %v2183
  %2216 = vst [vmem:[#allocation2 + $0x18] sm:$0xff] %v2184
  %2217 = vst [vmem:[#allocation2 + $0x20] sm:$0xff] %v2185
  %2218 = vst [vmem:[#allocation2 + $0x28] sm:$0xff] %v2186
  %2219 = vst [vmem:[#allocation2 + $0x30] sm:$0xff] %v2187
  %2220 = vst [vmem:[#allocation2 + $0x38] sm:$0xff] %v2188
  %2221 = vst [vmem:[#allocation2 + $0x40] sm:$0xff] %v2189
  %2222 = vst [vmem:[#allocation2 + $0x48] sm:$0xff] %v2190
  %2223 = vst [vmem:[#allocation2 + $0x50] sm:$0xff] %v2191
  %2224 = vst [vmem:[#allocation2 + $0x58] sm:$0xff] %v2192
  %2225 = vst [vmem:[#allocation2 + $0x60] sm:$0xff] %v2193
  %2226 = vst [vmem:[#allocation2 + $0x68] sm:$0xff] %v2194
  %2227 = vst [vmem:[#allocation2 + $0x70] sm:$0xff] %v2195
  %2228 = vst [vmem:[#allocation2 + $0x78] sm:$0xff] %v2196
  %2229 = vst [vmem:[#allocation2 + $0x80] sm:$0xff] %v2197
  %2230 = vst [vmem:[#allocation2 + $0x88] sm:$0xff] %v2198
  %2231 = vst [vmem:[#allocation2 + $0x90] sm:$0xff] %v2199
  %2232 = vst [vmem:[#allocation2 + $0x98] sm:$0xff] %v2200
  %2233 = vst [vmem:[#allocation2 + $0xa0] sm:$0xff] %v2201
  %2234 = vst [vmem:[#allocation2 + $0xa8] sm:$0xff] %v2202
  %2235 = vst [vmem:[#allocation2 + $0xb0] sm:$0xff] %v2203
  %2236 = vst [vmem:[#allocation2 + $0xb8] sm:$0xff] %v2204
  %2237 = vst [vmem:[#allocation2 + $0xc0] sm:$0xff] %v2205
  %2238 = vst [vmem:[#allocation2 + $0xc8] sm:$0xff] %v2206
  %2239 = vst [vmem:[#allocation2 + $0xd0] sm:$0xff] %v2207
  %2240 = vst [vmem:[#allocation2 + $0xd8] sm:$0xff] %v2208
  %2241 = vst [vmem:[#allocation2 + $0xe0] sm:$0xff] %v2209
  %2242 = vst [vmem:[#allocation2 + $0xe8] sm:$0xff] %v2210
  %2243 = vst [vmem:[#allocation2 + $0xf0] sm:$0xff] %v2211
  %2244 = vst [vmem:[#allocation2 + $0xf8] sm:$0xff] %v2212
  %v2245 = vld [vmem:[#allocation2] sm:$0xff]
  %v2246 = vld [vmem:[#allocation2 + $0x8] sm:$0xff]
  %v2247 = vld [vmem:[#allocation2 + $0x10] sm:$0xff]
  %v2248 = vld [vmem:[#allocation2 + $0x18] sm:$0xff]
  %v2249 = vld [vmem:[#allocation2 + $0x20] sm:$0xff]
  %v2250 = vld [vmem:[#allocation2 + $0x28] sm:$0xff]
  %v2251 = vld [vmem:[#allocation2 + $0x30] sm:$0xff]
  %v2252 = vld [vmem:[#allocation2 + $0x38] sm:$0xff]
  %v2253 = vld [vmem:[#allocation2 + $0x40] sm:$0xff]
  %v2254 = vld [vmem:[#allocation2 + $0x48] sm:$0xff]
  %v2255 = vld [vmem:[#allocation2 + $0x50] sm:$0xff]
  %v2256 = vld [vmem:[#allocation2 + $0x58] sm:$0xff]
  %v2257 = vld [vmem:[#allocation2 + $0x60] sm:$0xff]
  %v2258 = vld [vmem:[#allocation2 + $0x68] sm:$0xff]
  %v2259 = vld [vmem:[#allocation2 + $0x70] sm:$0xff]
  %v2260 = vld [vmem:[#allocation2 + $0x78] sm:$0xff]
  %v2261 = vld [vmem:[#allocation2 + $0x80] sm:$0xff]
  %v2262 = vld [vmem:[#allocation2 + $0x88] sm:$0xff]
  %v2263 = vld [vmem:[#allocation2 + $0x90] sm:$0xff]
  %v2264 = vld [vmem:[#allocation2 + $0x98] sm:$0xff]
  %v2265 = vld [vmem:[#allocation2 + $0xa0] sm:$0xff]
  %v2266 = vld [vmem:[#allocation2 + $0xa8] sm:$0xff]
  %v2267 = vld [vmem:[#allocation2 + $0xb0] sm:$0xff]
  %v2268 = vld [vmem:[#allocation2 + $0xb8] sm:$0xff]
  %v2269 = vld [vmem:[#allocation2 + $0xc0] sm:$0xff]
  %v2270 = vld [vmem:[#allocation2 + $0xc8] sm:$0xff]
  %v2271 = vld [vmem:[#allocation2 + $0xd0] sm:$0xff]
  %v2272 = vld [vmem:[#allocation2 + $0xd8] sm:$0xff]
  %v2273 = vld [vmem:[#allocation2 + $0xe0] sm:$0xff]
  %v2274 = vld [vmem:[#allocation2 + $0xe8] sm:$0xff]
  %v2275 = vld [vmem:[#allocation2 + $0xf0] sm:$0xff]
  %v2276 = vld [vmem:[#allocation2 + $0xf8] sm:$0xff]
  %s2277 = scalar_lea.vmem %s1, 1024
  %v2278 = vld [vmem:[%s2277] sm:$0xff]
  %v2279 = vld [vmem:[%s2277 + $0x8] sm:$0xff]
  %v2280 = vld [vmem:[%s2277 + $0x10] sm:$0xff]
  %v2281 = vld [vmem:[%s2277 + $0x18] sm:$0xff]
  %v2282 = vld [vmem:[%s2277 + $0x20] sm:$0xff]
  %v2283 = vld [vmem:[%s2277 + $0x28] sm:$0xff]
  %v2284 = vld [vmem:[%s2277 + $0x30] sm:$0xff]
  %v2285 = vld [vmem:[%s2277 + $0x38] sm:$0xff]
  %v2286 = vld [vmem:[%s2277 + $0x40] sm:$0xff]
  %v2287 = vld [vmem:[%s2277 + $0x48] sm:$0xff]
  %v2288 = vld [vmem:[%s2277 + $0x50] sm:$0xff]
  %v2289 = vld [vmem:[%s2277 + $0x58] sm:$0xff]
  %v2290 = vld [vmem:[%s2277 + $0x60] sm:$0xff]
  %v2291 = vld [vmem:[%s2277 + $0x68] sm:$0xff]
  %v2292 = vld [vmem:[%s2277 + $0x70] sm:$0xff]
  %v2293 = vld [vmem:[%s2277 + $0x78] sm:$0xff]
  %v2294 = vld [vmem:[%s2277 + $0x80] sm:$0xff]
  %v2295 = vld [vmem:[%s2277 + $0x88] sm:$0xff]
  %v2296 = vld [vmem:[%s2277 + $0x90] sm:$0xff]
  %v2297 = vld [vmem:[%s2277 + $0x98] sm:$0xff]
  %v2298 = vld [vmem:[%s2277 + $0xa0] sm:$0xff]
  %v2299 = vld [vmem:[%s2277 + $0xa8] sm:$0xff]
  %v2300 = vld [vmem:[%s2277 + $0xb0] sm:$0xff]
  %v2301 = vld [vmem:[%s2277 + $0xb8] sm:$0xff]
  %v2302 = vld [vmem:[%s2277 + $0xc0] sm:$0xff]
  %v2303 = vld [vmem:[%s2277 + $0xc8] sm:$0xff]
  %v2304 = vld [vmem:[%s2277 + $0xd0] sm:$0xff]
  %v2305 = vld [vmem:[%s2277 + $0xd8] sm:$0xff]
  %v2306 = vld [vmem:[%s2277 + $0xe0] sm:$0xff]
  %v2307 = vld [vmem:[%s2277 + $0xe8] sm:$0xff]
  %v2308 = vld [vmem:[%s2277 + $0xf0] sm:$0xff]
  %v2309 = vld [vmem:[%s2277 + $0xf8] sm:$0xff]
  %v2342 = vunpack.c.l.b16 %v2278
  %v2343 = vunpack.c.h.b16 %v2278
  %v2344 = vunpack.c.l.b16 %v2279
  %v2345 = vunpack.c.h.b16 %v2279
  %v2346 = vunpack.c.l.b16 %v2280
  %v2347 = vunpack.c.h.b16 %v2280
  %v2348 = vunpack.c.l.b16 %v2281
  %v2349 = vunpack.c.h.b16 %v2281
  %v2350 = vunpack.c.l.b16 %v2282
  %v2351 = vunpack.c.h.b16 %v2282
  %v2352 = vunpack.c.l.b16 %v2283
  %v2353 = vunpack.c.h.b16 %v2283
  %v2354 = vunpack.c.l.b16 %v2284
  %v2355 = vunpack.c.h.b16 %v2284
  %v2356 = vunpack.c.l.b16 %v2285
  %v2357 = vunpack.c.h.b16 %v2285
  %v2358 = vunpack.c.l.b16 %v2286
  %v2359 = vunpack.c.h.b16 %v2286
  %v2360 = vunpack.c.l.b16 %v2287
  %v2361 = vunpack.c.h.b16 %v2287
  %v2362 = vunpack.c.l.b16 %v2288
  %v2363 = vunpack.c.h.b16 %v2288
  %v2364 = vunpack.c.l.b16 %v2289
  %v2365 = vunpack.c.h.b16 %v2289
  %v2366 = vunpack.c.l.b16 %v2290
  %v2367 = vunpack.c.h.b16 %v2290
  %v2368 = vunpack.c.l.b16 %v2291
  %v2369 = vunpack.c.h.b16 %v2291
  %v2370 = vunpack.c.l.b16 %v2292
  %v2371 = vunpack.c.h.b16 %v2292
  %v2372 = vunpack.c.l.b16 %v2293
  %v2373 = vunpack.c.h.b16 %v2293
  %v2374 = vunpack.c.l.b16 %v2294
  %v2375 = vunpack.c.h.b16 %v2294
  %v2376 = vunpack.c.l.b16 %v2295
  %v2377 = vunpack.c.h.b16 %v2295
  %v2378 = vunpack.c.l.b16 %v2296
  %v2379 = vunpack.c.h.b16 %v2296
  %v2380 = vunpack.c.l.b16 %v2297
  %v2381 = vunpack.c.h.b16 %v2297
  %v2382 = vunpack.c.l.b16 %v2298
  %v2383 = vunpack.c.h.b16 %v2298
  %v2384 = vunpack.c.l.b16 %v2299
  %v2385 = vunpack.c.h.b16 %v2299
  %v2386 = vunpack.c.l.b16 %v2300
  %v2387 = vunpack.c.h.b16 %v2300
  %v2388 = vunpack.c.l.b16 %v2301
  %v2389 = vunpack.c.h.b16 %v2301
  %v2390 = vunpack.c.l.b16 %v2302
  %v2391 = vunpack.c.h.b16 %v2302
  %v2392 = vunpack.c.l.b16 %v2303
  %v2393 = vunpack.c.h.b16 %v2303
  %v2394 = vunpack.c.l.b16 %v2304
  %v2395 = vunpack.c.h.b16 %v2304
  %v2396 = vunpack.c.l.b16 %v2305
  %v2397 = vunpack.c.h.b16 %v2305
  %v2398 = vunpack.c.l.b16 %v2306
  %v2399 = vunpack.c.h.b16 %v2306
  %v2400 = vunpack.c.l.b16 %v2307
  %v2401 = vunpack.c.h.b16 %v2307
  %v2402 = vunpack.c.l.b16 %v2308
  %v2403 = vunpack.c.h.b16 %v2308
  %v2404 = vunpack.c.l.b16 %v2309
  %v2405 = vunpack.c.h.b16 %v2309
  %v2406 = vpack.c.b16 %v2344, %v2342
  %v2407 = vpack.c.b16 %v2345, %v2343
  %v2408 = vpack.c.b16 %v2348, %v2346
  %v2409 = vpack.c.b16 %v2349, %v2347
  %v2410 = vpack.c.b16 %v2352, %v2350
  %v2411 = vpack.c.b16 %v2353, %v2351
  %v2412 = vpack.c.b16 %v2356, %v2354
  %v2413 = vpack.c.b16 %v2357, %v2355
  %v2414 = vpack.c.b16 %v2360, %v2358
  %v2415 = vpack.c.b16 %v2361, %v2359
  %v2416 = vpack.c.b16 %v2364, %v2362
  %v2417 = vpack.c.b16 %v2365, %v2363
  %v2418 = vpack.c.b16 %v2368, %v2366
  %v2419 = vpack.c.b16 %v2369, %v2367
  %v2420 = vpack.c.b16 %v2372, %v2370
  %v2421 = vpack.c.b16 %v2373, %v2371
  %v2422 = vpack.c.b16 %v2376, %v2374
  %v2423 = vpack.c.b16 %v2377, %v2375
  %v2424 = vpack.c.b16 %v2380, %v2378
  %v2425 = vpack.c.b16 %v2381, %v2379
  %v2426 = vpack.c.b16 %v2384, %v2382
  %v2427 = vpack.c.b16 %v2385, %v2383
  %v2428 = vpack.c.b16 %v2388, %v2386
  %v2429 = vpack.c.b16 %v2389, %v2387
  %v2430 = vpack.c.b16 %v2392, %v2390
  %v2431 = vpack.c.b16 %v2393, %v2391
  %v2432 = vpack.c.b16 %v2396, %v2394
  %v2433 = vpack.c.b16 %v2397, %v2395
  %v2434 = vpack.c.b16 %v2400, %v2398
  %v2435 = vpack.c.b16 %v2401, %v2399
  %v2436 = vpack.c.b16 %v2404, %v2402
  %v2437 = vpack.c.b16 %v2405, %v2403
  %2470 = vmatprep.subr.bf16.mxu0 %v2407
  %2471 = vmatpush1.bf16.msra.mxu0 %v2406
  %2472 = vmatprep.subr.bf16.mxu0 %v2409
  %2473 = vmatpush1.bf16.msra.mxu0 %v2408
  %2474 = vmatprep.subr.bf16.mxu0 %v2411
  %2475 = vmatpush1.bf16.msra.mxu0 %v2410
  %2476 = vmatprep.subr.bf16.mxu0 %v2413
  %2477 = vmatpush1.bf16.msra.mxu0 %v2412
  %2478 = vmatprep.subr.bf16.mxu0 %v2415
  %2479 = vmatpush1.bf16.msra.mxu0 %v2414
  %2480 = vmatprep.subr.bf16.mxu0 %v2417
  %2481 = vmatpush1.bf16.msra.mxu0 %v2416
  %2482 = vmatprep.subr.bf16.mxu0 %v2419
  %2483 = vmatpush1.bf16.msra.mxu0 %v2418
  %2484 = vmatprep.subr.bf16.mxu0 %v2421
  %2485 = vmatpush1.bf16.msra.mxu0 %v2420
  %2486 = vmatprep.subr.bf16.mxu0 %v2423
  %2487 = vmatpush1.bf16.msra.mxu0 %v2422
  %2488 = vmatprep.subr.bf16.mxu0 %v2425
  %2489 = vmatpush1.bf16.msra.mxu0 %v2424
  %2490 = vmatprep.subr.bf16.mxu0 %v2427
  %2491 = vmatpush1.bf16.msra.mxu0 %v2426
  %2492 = vmatprep.subr.bf16.mxu0 %v2429
  %2493 = vmatpush1.bf16.msra.mxu0 %v2428
  %2494 = vmatprep.subr.bf16.mxu0 %v2431
  %2495 = vmatpush1.bf16.msra.mxu0 %v2430
  %2496 = vmatprep.subr.bf16.mxu0 %v2433
  %2497 = vmatpush1.bf16.msra.mxu0 %v2432
  %2498 = vmatprep.subr.bf16.mxu0 %v2435
  %2499 = vmatpush1.bf16.msra.mxu0 %v2434
  %2500 = vmatprep.subr.bf16.mxu0 %v2437
  %2501 = vmatpush1.bf16.msra.mxu0 %v2436
  %2502 = vmatprep.mubr.bf16.mxu0 %v1639
  %2503 = vmatmul.mubr.bf16.gmra.mrb[0].mxu0 %v1638
  %v2504 = vpop.f32.mrb[0].mxu0
  %v2505 = vadd.f32 0.0, %v2504
  %v2506 = vpop.f32.mrb[0].mxu0
  %v2507 = vadd.f32 0.0, %v2506
  %v2508 = vpop.f32.mrb[0].mxu0
  %v2509 = vadd.f32 0.0, %v2508
  %v2510 = vpop.f32.mrb[0].mxu0
  %v2511 = vadd.f32 0.0, %v2510
  %2512 = vmatprep.mubr.bf16.mxu0 %v1641
  %2513 = vmatmul.mubr.bf16.gmra.mrb[0].mxu0 %v1640
  %v2514 = vpop.f32.mrb[0].mxu0
  %v2515 = vadd.f32 0.0, %v2514
  %v2516 = vpop.f32.mrb[0].mxu0
  %v2517 = vadd.f32 0.0, %v2516
  %v2518 = vpop.f32.mrb[0].mxu0
  %v2519 = vadd.f32 0.0, %v2518
  %v2520 = vpop.f32.mrb[0].mxu0
  %v2521 = vadd.f32 0.0, %v2520
  %2522 = vmatprep.mubr.bf16.mxu0 %v1643
  %2523 = vmatmul.mubr.bf16.gmra.mrb[0].mxu0 %v1642
  %v2524 = vpop.f32.mrb[0].mxu0
  %v2525 = vadd.f32 0.0, %v2524
  %v2526 = vpop.f32.mrb[0].mxu0
  %v2527 = vadd.f32 0.0, %v2526
  %v2528 = vpop.f32.mrb[0].mxu0
  %v2529 = vadd.f32 0.0, %v2528
  %v2530 = vpop.f32.mrb[0].mxu0
  %v2531 = vadd.f32 0.0, %v2530
  %2532 = vmatprep.mubr.bf16.mxu0 %v1645
  %2533 = vmatmul.mubr.bf16.gmra.mrb[0].mxu0 %v1644
  %v2534 = vpop.f32.mrb[0].mxu0
  %v2535 = vadd.f32 0.0, %v2534
  %v2536 = vpop.f32.mrb[0].mxu0
  %v2537 = vadd.f32 0.0, %v2536
  %v2538 = vpop.f32.mrb[0].mxu0
  %v2539 = vadd.f32 0.0, %v2538
  %v2540 = vpop.f32.mrb[0].mxu0
  %v2541 = vadd.f32 0.0, %v2540
  %2542 = vmatprep.mubr.bf16.mxu0 %v1647
  %2543 = vmatmul.mubr.bf16.gmra.mrb[0].mxu0 %v1646
  %v2544 = vpop.f32.mrb[0].mxu0
  %v2545 = vadd.f32 0.0, %v2544
  %v2546 = vpop.f32.mrb[0].mxu0
  %v2547 = vadd.f32 0.0, %v2546
  %v2548 = vpop.f32.mrb[0].mxu0
  %v2549 = vadd.f32 0.0, %v2548
  %v2550 = vpop.f32.mrb[0].mxu0
  %v2551 = vadd.f32 0.0, %v2550
  %2552 = vmatprep.mubr.bf16.mxu0 %v1649
  %2553 = vmatmul.mubr.bf16.gmra.mrb[0].mxu0 %v1648
  %v2554 = vpop.f32.mrb[0].mxu0
  %v2555 = vadd.f32 0.0, %v2554
  %v2556 = vpop.f32.mrb[0].mxu0
  %v2557 = vadd.f32 0.0, %v2556
  %v2558 = vpop.f32.mrb[0].mxu0
  %v2559 = vadd.f32 0.0, %v2558
  %v2560 = vpop.f32.mrb[0].mxu0
  %v2561 = vadd.f32 0.0, %v2560
  %2562 = vmatprep.mubr.bf16.mxu0 %v1651
  %2563 = vmatmul.mubr.bf16.gmra.mrb[0].mxu0 %v1650
  %v2564 = vpop.f32.mrb[0].mxu0
  %v2565 = vadd.f32 0.0, %v2564
  %v2566 = vpop.f32.mrb[0].mxu0
  %v2567 = vadd.f32 0.0, %v2566
  %v2568 = vpop.f32.mrb[0].mxu0
  %v2569 = vadd.f32 0.0, %v2568
  %v2570 = vpop.f32.mrb[0].mxu0
  %v2571 = vadd.f32 0.0, %v2570
  %2572 = vmatprep.mubr.bf16.mxu0 %v1653
  %2573 = vmatmul.mubr.bf16.gmra.mrb[0].mxu0 %v1652
  %v2574 = vpop.f32.mrb[0].mxu0
  %v2575 = vadd.f32 0.0, %v2574
  %v2576 = vpop.f32.mrb[0].mxu0
  %v2577 = vadd.f32 0.0, %v2576
  %v2578 = vpop.f32.mrb[0].mxu0
  %v2579 = vadd.f32 0.0, %v2578
  %v2580 = vpop.f32.mrb[0].mxu0
  %v2581 = vadd.f32 0.0, %v2580
  %2582 = vdwg.mxu0
  %v2583 = vadd.f32 %v2245, %v2505
  %v2584 = vadd.f32 %v2246, %v2507
  %v2585 = vadd.f32 %v2247, %v2509
  %v2586 = vadd.f32 %v2248, %v2511
  %v2587 = vadd.f32 %v2249, %v2515
  %v2588 = vadd.f32 %v2250, %v2517
  %v2589 = vadd.f32 %v2251, %v2519
  %v2590 = vadd.f32 %v2252, %v2521
  %v2591 = vadd.f32 %v2253, %v2525
  %v2592 = vadd.f32 %v2254, %v2527
  %v2593 = vadd.f32 %v2255, %v2529
  %v2594 = vadd.f32 %v2256, %v2531
  %v2595 = vadd.f32 %v2257, %v2535
  %v2596 = vadd.f32 %v2258, %v2537
  %v2597 = vadd.f32 %v2259, %v2539
  %v2598 = vadd.f32 %v2260, %v2541
  %v2599 = vadd.f32 %v2261, %v2545
  %v2600 = vadd.f32 %v2262, %v2547
  %v2601 = vadd.f32 %v2263, %v2549
  %v2602 = vadd.f32 %v2264, %v2551
  %v2603 = vadd.f32 %v2265, %v2555
  %v2604 = vadd.f32 %v2266, %v2557
  %v2605 = vadd.f32 %v2267, %v2559
  %v2606 = vadd.f32 %v2268, %v2561
  %v2607 = vadd.f32 %v2269, %v2565
  %v2608 = vadd.f32 %v2270, %v2567
  %v2609 = vadd.f32 %v2271, %v2569
  %v2610 = vadd.f32 %v2272, %v2571
  %v2611 = vadd.f32 %v2273, %v2575
  %v2612 = vadd.f32 %v2274, %v2577
  %v2613 = vadd.f32 %v2275, %v2579
  %v2614 = vadd.f32 %v2276, %v2581
  %2615 = vst [vmem:[#allocation2] sm:$0xff] %v2583
  %2616 = vst [vmem:[#allocation2 + $0x8] sm:$0xff] %v2584
  %2617 = vst [vmem:[#allocation2 + $0x10] sm:$0xff] %v2585
  %2618 = vst [vmem:[#allocation2 + $0x18] sm:$0xff] %v2586
  %2619 = vst [vmem:[#allocation2 + $0x20] sm:$0xff] %v2587
  %2620 = vst [vmem:[#allocation2 + $0x28] sm:$0xff] %v2588
  %2621 = vst [vmem:[#allocation2 + $0x30] sm:$0xff] %v2589
  %2622 = vst [vmem:[#allocation2 + $0x38] sm:$0xff] %v2590
  %2623 = vst [vmem:[#allocation2 + $0x40] sm:$0xff] %v2591
  %2624 = vst [vmem:[#allocation2 + $0x48] sm:$0xff] %v2592
  %2625 = vst [vmem:[#allocation2 + $0x50] sm:$0xff] %v2593
  %2626 = vst [vmem:[#allocation2 + $0x58] sm:$0xff] %v2594
  %2627 = vst [vmem:[#allocation2 + $0x60] sm:$0xff] %v2595
  %2628 = vst [vmem:[#allocation2 + $0x68] sm:$0xff] %v2596
  %2629 = vst [vmem:[#allocation2 + $0x70] sm:$0xff] %v2597
  %2630 = vst [vmem:[#allocation2 + $0x78] sm:$0xff] %v2598
  %2631 = vst [vmem:[#allocation2 + $0x80] sm:$0xff] %v2599
  %2632 = vst [vmem:[#allocation2 + $0x88] sm:$0xff] %v2600
  %2633 = vst [vmem:[#allocation2 + $0x90] sm:$0xff] %v2601
  %2634 = vst [vmem:[#allocation2 + $0x98] sm:$0xff] %v2602
  %2635 = vst [vmem:[#allocation2 + $0xa0] sm:$0xff] %v2603
  %2636 = vst [vmem:[#allocation2 + $0xa8] sm:$0xff] %v2604
  %2637 = vst [vmem:[#allocation2 + $0xb0] sm:$0xff] %v2605
  %2638 = vst [vmem:[#allocation2 + $0xb8] sm:$0xff] %v2606
  %2639 = vst [vmem:[#allocation2 + $0xc0] sm:$0xff] %v2607
  %2640 = vst [vmem:[#allocation2 + $0xc8] sm:$0xff] %v2608
  %2641 = vst [vmem:[#allocation2 + $0xd0] sm:$0xff] %v2609
  %2642 = vst [vmem:[#allocation2 + $0xd8] sm:$0xff] %v2610
  %2643 = vst [vmem:[#allocation2 + $0xe0] sm:$0xff] %v2611
  %2644 = vst [vmem:[#allocation2 + $0xe8] sm:$0xff] %v2612
  %2645 = vst [vmem:[#allocation2 + $0xf0] sm:$0xff] %v2613
  %2646 = vst [vmem:[#allocation2 + $0xf8] sm:$0xff] %v2614
  %v2647 = vld [vmem:[#allocation2] sm:$0xff]
  %v2648 = vld [vmem:[#allocation2 + $0x8] sm:$0xff]
  %v2649 = vld [vmem:[#allocation2 + $0x10] sm:$0xff]
  %v2650 = vld [vmem:[#allocation2 + $0x18] sm:$0xff]
  %v2651 = vld [vmem:[#allocation2 + $0x20] sm:$0xff]
  %v2652 = vld [vmem:[#allocation2 + $0x28] sm:$0xff]
  %v2653 = vld [vmem:[#allocation2 + $0x30] sm:$0xff]
  %v2654 = vld [vmem:[#allocation2 + $0x38] sm:$0xff]
  %v2655 = vld [vmem:[#allocation2 + $0x40] sm:$0xff]
  %v2656 = vld [vmem:[#allocation2 + $0x48] sm:$0xff]
  %v2657 = vld [vmem:[#allocation2 + $0x50] sm:$0xff]
  %v2658 = vld [vmem:[#allocation2 + $0x58] sm:$0xff]
  %v2659 = vld [vmem:[#allocation2 + $0x60] sm:$0xff]
  %v2660 = vld [vmem:[#allocation2 + $0x68] sm:$0xff]
  %v2661 = vld [vmem:[#allocation2 + $0x70] sm:$0xff]
  %v2662 = vld [vmem:[#allocation2 + $0x78] sm:$0xff]
  %v2663 = vld [vmem:[#allocation2 + $0x80] sm:$0xff]
  %v2664 = vld [vmem:[#allocation2 + $0x88] sm:$0xff]
  %v2665 = vld [vmem:[#allocation2 + $0x90] sm:$0xff]
  %v2666 = vld [vmem:[#allocation2 + $0x98] sm:$0xff]
  %v2667 = vld [vmem:[#allocation2 + $0xa0] sm:$0xff]
  %v2668 = vld [vmem:[#allocation2 + $0xa8] sm:$0xff]
  %v2669 = vld [vmem:[#allocation2 + $0xb0] sm:$0xff]
  %v2670 = vld [vmem:[#allocation2 + $0xb8] sm:$0xff]
  %v2671 = vld [vmem:[#allocation2 + $0xc0] sm:$0xff]
  %v2672 = vld [vmem:[#allocation2 + $0xc8] sm:$0xff]
  %v2673 = vld [vmem:[#allocation2 + $0xd0] sm:$0xff]
  %v2674 = vld [vmem:[#allocation2 + $0xd8] sm:$0xff]
  %v2675 = vld [vmem:[#allocation2 + $0xe0] sm:$0xff]
  %v2676 = vld [vmem:[#allocation2 + $0xe8] sm:$0xff]
  %v2677 = vld [vmem:[#allocation2 + $0xf0] sm:$0xff]
  %v2678 = vld [vmem:[#allocation2 + $0xf8] sm:$0xff]
  %v2679 = vrot.slane %v1735, 1
  %v2680 = vor.u32 %v1732, %v2679
  %v2681 = vrot.slane %v1742, 1
  %v2682 = vor.u32 %v1739, %v2681
  %v2683 = vrot.slane %v1749, 1
  %v2684 = vor.u32 %v1746, %v2683
  %v2685 = vrot.slane %v1756, 1
  %v2686 = vor.u32 %v1753, %v2685
  %v2687 = vrot.slane %v1763, 1
  %v2688 = vor.u32 %v1760, %v2687
  %v2689 = vrot.slane %v1770, 1
  %v2690 = vor.u32 %v1767, %v2689
  %v2691 = vrot.slane %v1777, 1
  %v2692 = vor.u32 %v1774, %v2691
  %v2693 = vrot.slane %v1784, 1
  %v2694 = vor.u32 %v1781, %v2693
  %v2695 = vrot.slane %v1791, 1
  %v2696 = vor.u32 %v1788, %v2695
  %v2697 = vrot.slane %v1798, 1
  %v2698 = vor.u32 %v1795, %v2697
  %v2699 = vrot.slane %v1805, 1
  %v2700 = vor.u32 %v1802, %v2699
  %v2701 = vrot.slane %v1812, 1
  %v2702 = vor.u32 %v1809, %v2701
  %v2703 = vrot.slane %v1819, 1
  %v2704 = vor.u32 %v1816, %v2703
  %v2705 = vrot.slane %v1826, 1
  %v2706 = vor.u32 %v1823, %v2705
  %v2707 = vrot.slane %v1833, 1
  %v2708 = vor.u32 %v1830, %v2707
  %v2709 = vrot.slane %v1840, 1
  %v2710 = vor.u32 %v1837, %v2709
  %v2727 = vsel %vm1187, %v2680, 0
  %v2728 = vsel %vm1187, %v2682, 0
  %v2729 = vsel %vm1187, %v2684, 0
  %v2730 = vsel %vm1187, %v2686, 0
  %v2731 = vsel %vm1187, %v2688, 0
  %v2732 = vsel %vm1187, %v2690, 0
  %v2733 = vsel %vm1187, %v2692, 0
  %v2734 = vsel %vm1187, %v2694, 0
  %v2735 = vsel %vm1187, %v2696, 0
  %v2736 = vsel %vm1187, %v2698, 0
  %v2737 = vsel %vm1187, %v2700, 0
  %v2738 = vsel %vm1187, %v2702, 0
  %v2739 = vsel %vm1187, %v2704, 0
  %v2740 = vsel %vm1187, %v2706, 0
  %v2741 = vsel %vm1187, %v2708, 0
  %v2742 = vsel %vm1187, %v2710, 0
  %s2743 = scalar_lea.vmem %s1, 1280
  %v2744 = vld [vmem:[%s2743] sm:$0xff]
  %v2745 = vld [vmem:[%s2743 + $0x8] sm:$0xff]
  %v2746 = vld [vmem:[%s2743 + $0x10] sm:$0xff]
  %v2747 = vld [vmem:[%s2743 + $0x18] sm:$0xff]
  %v2748 = vld [vmem:[%s2743 + $0x20] sm:$0xff]
  %v2749 = vld [vmem:[%s2743 + $0x28] sm:$0xff]
  %v2750 = vld [vmem:[%s2743 + $0x30] sm:$0xff]
  %v2751 = vld [vmem:[%s2743 + $0x38] sm:$0xff]
  %v2752 = vld [vmem:[%s2743 + $0x40] sm:$0xff]
  %v2753 = vld [vmem:[%s2743 + $0x48] sm:$0xff]
  %v2754 = vld [vmem:[%s2743 + $0x50] sm:$0xff]
  %v2755 = vld [vmem:[%s2743 + $0x58] sm:$0xff]
  %v2756 = vld [vmem:[%s2743 + $0x60] sm:$0xff]
  %v2757 = vld [vmem:[%s2743 + $0x68] sm:$0xff]
  %v2758 = vld [vmem:[%s2743 + $0x70] sm:$0xff]
  %v2759 = vld [vmem:[%s2743 + $0x78] sm:$0xff]
  %v2760 = vld [vmem:[%s2743 + $0x80] sm:$0xff]
  %v2761 = vld [vmem:[%s2743 + $0x88] sm:$0xff]
  %v2762 = vld [vmem:[%s2743 + $0x90] sm:$0xff]
  %v2763 = vld [vmem:[%s2743 + $0x98] sm:$0xff]
  %v2764 = vld [vmem:[%s2743 + $0xa0] sm:$0xff]
  %v2765 = vld [vmem:[%s2743 + $0xa8] sm:$0xff]
  %v2766 = vld [vmem:[%s2743 + $0xb0] sm:$0xff]
  %v2767 = vld [vmem:[%s2743 + $0xb8] sm:$0xff]
  %v2768 = vld [vmem:[%s2743 + $0xc0] sm:$0xff]
  %v2769 = vld [vmem:[%s2743 + $0xc8] sm:$0xff]
  %v2770 = vld [vmem:[%s2743 + $0xd0] sm:$0xff]
  %v2771 = vld [vmem:[%s2743 + $0xd8] sm:$0xff]
  %v2772 = vld [vmem:[%s2743 + $0xe0] sm:$0xff]
  %v2773 = vld [vmem:[%s2743 + $0xe8] sm:$0xff]
  %v2774 = vld [vmem:[%s2743 + $0xf0] sm:$0xff]
  %v2775 = vld [vmem:[%s2743 + $0xf8] sm:$0xff]
  %v2808 = vunpack.c.l.b16 %v2744
  %v2809 = vunpack.c.h.b16 %v2744
  %v2810 = vunpack.c.l.b16 %v2745
  %v2811 = vunpack.c.h.b16 %v2745
  %v2812 = vunpack.c.l.b16 %v2746
  %v2813 = vunpack.c.h.b16 %v2746
  %v2814 = vunpack.c.l.b16 %v2747
  %v2815 = vunpack.c.h.b16 %v2747
  %v2816 = vunpack.c.l.b16 %v2748
  %v2817 = vunpack.c.h.b16 %v2748
  %v2818 = vunpack.c.l.b16 %v2749
  %v2819 = vunpack.c.h.b16 %v2749
  %v2820 = vunpack.c.l.b16 %v2750
  %v2821 = vunpack.c.h.b16 %v2750
  %v2822 = vunpack.c.l.b16 %v2751
  %v2823 = vunpack.c.h.b16 %v2751
  %v2824 = vunpack.c.l.b16 %v2752
  %v2825 = vunpack.c.h.b16 %v2752
  %v2826 = vunpack.c.l.b16 %v2753
  %v2827 = vunpack.c.h.b16 %v2753
  %v2828 = vunpack.c.l.b16 %v2754
  %v2829 = vunpack.c.h.b16 %v2754
  %v2830 = vunpack.c.l.b16 %v2755
  %v2831 = vunpack.c.h.b16 %v2755
  %v2832 = vunpack.c.l.b16 %v2756
  %v2833 = vunpack.c.h.b16 %v2756
  %v2834 = vunpack.c.l.b16 %v2757
  %v2835 = vunpack.c.h.b16 %v2757
  %v2836 = vunpack.c.l.b16 %v2758
  %v2837 = vunpack.c.h.b16 %v2758
  %v2838 = vunpack.c.l.b16 %v2759
  %v2839 = vunpack.c.h.b16 %v2759
  %v2840 = vunpack.c.l.b16 %v2760
  %v2841 = vunpack.c.h.b16 %v2760
  %v2842 = vunpack.c.l.b16 %v2761
  %v2843 = vunpack.c.h.b16 %v2761
  %v2844 = vunpack.c.l.b16 %v2762
  %v2845 = vunpack.c.h.b16 %v2762
  %v2846 = vunpack.c.l.b16 %v2763
  %v2847 = vunpack.c.h.b16 %v2763
  %v2848 = vunpack.c.l.b16 %v2764
  %v2849 = vunpack.c.h.b16 %v2764
  %v2850 = vunpack.c.l.b16 %v2765
  %v2851 = vunpack.c.h.b16 %v2765
  %v2852 = vunpack.c.l.b16 %v2766
  %v2853 = vunpack.c.h.b16 %v2766
  %v2854 = vunpack.c.l.b16 %v2767
  %v2855 = vunpack.c.h.b16 %v2767
  %v2856 = vunpack.c.l.b16 %v2768
  %v2857 = vunpack.c.h.b16 %v2768
  %v2858 = vunpack.c.l.b16 %v2769
  %v2859 = vunpack.c.h.b16 %v2769
  %v2860 = vunpack.c.l.b16 %v2770
  %v2861 = vunpack.c.h.b16 %v2770
  %v2862 = vunpack.c.l.b16 %v2771
  %v2863 = vunpack.c.h.b16 %v2771
  %v2864 = vunpack.c.l.b16 %v2772
  %v2865 = vunpack.c.h.b16 %v2772
  %v2866 = vunpack.c.l.b16 %v2773
  %v2867 = vunpack.c.h.b16 %v2773
  %v2868 = vunpack.c.l.b16 %v2774
  %v2869 = vunpack.c.h.b16 %v2774
  %v2870 = vunpack.c.l.b16 %v2775
  %v2871 = vunpack.c.h.b16 %v2775
  %v2872 = vpack.c.b16 %v2810, %v2808
  %v2873 = vpack.c.b16 %v2811, %v2809
  %v2874 = vpack.c.b16 %v2814, %v2812
  %v2875 = vpack.c.b16 %v2815, %v2813
  %v2876 = vpack.c.b16 %v2818, %v2816
  %v2877 = vpack.c.b16 %v2819, %v2817
  %v2878 = vpack.c.b16 %v2822, %v2820
  %v2879 = vpack.c.b16 %v2823, %v2821
  %v2880 = vpack.c.b16 %v2826, %v2824
  %v2881 = vpack.c.b16 %v2827, %v2825
  %v2882 = vpack.c.b16 %v2830, %v2828
  %v2883 = vpack.c.b16 %v2831, %v2829
  %v2884 = vpack.c.b16 %v2834, %v2832
  %v2885 = vpack.c.b16 %v2835, %v2833
  %v2886 = vpack.c.b16 %v2838, %v2836
  %v2887 = vpack.c.b16 %v2839, %v2837
  %v2888 = vpack.c.b16 %v2842, %v2840
  %v2889 = vpack.c.b16 %v2843, %v2841
  %v2890 = vpack.c.b16 %v2846, %v2844
  %v2891 = vpack.c.b16 %v2847, %v2845
  %v2892 = vpack.c.b16 %v2850, %v2848
  %v2893 = vpack.c.b16 %v2851, %v2849
  %v2894 = vpack.c.b16 %v2854, %v2852
  %v2895 = vpack.c.b16 %v2855, %v2853
  %v2896 = vpack.c.b16 %v2858, %v2856
  %v2897 = vpack.c.b16 %v2859, %v2857
  %v2898 = vpack.c.b16 %v2862, %v2860
  %v2899 = vpack.c.b16 %v2863, %v2861
  %v2900 = vpack.c.b16 %v2866, %v2864
  %v2901 = vpack.c.b16 %v2867, %v2865
  %v2902 = vpack.c.b16 %v2870, %v2868
  %v2903 = vpack.c.b16 %v2871, %v2869
  %2936 = vmatprep.subr.bf16.mxu0 %v2873
  %2937 = vmatpush1.bf16.msra.mxu0 %v2872
  %2938 = vmatprep.subr.bf16.mxu0 %v2875
  %2939 = vmatpush1.bf16.msra.mxu0 %v2874
  %2940 = vmatprep.subr.bf16.mxu0 %v2877
  %2941 = vmatpush1.bf16.msra.mxu0 %v2876
  %2942 = vmatprep.subr.bf16.mxu0 %v2879
  %2943 = vmatpush1.bf16.msra.mxu0 %v2878
  %2944 = vmatprep.subr.bf16.mxu0 %v2881
  %2945 = vmatpush1.bf16.msra.mxu0 %v2880
  %2946 = vmatprep.subr.bf16.mxu0 %v2883
  %2947 = vmatpush1.bf16.msra.mxu0 %v2882
  %2948 = vmatprep.subr.bf16.mxu0 %v2885
  %2949 = vmatpush1.bf16.msra.mxu0 %v2884
  %2950 = vmatprep.subr.bf16.mxu0 %v2887
  %2951 = vmatpush1.bf16.msra.mxu0 %v2886
  %2952 = vmatprep.subr.bf16.mxu0 %v2889
  %2953 = vmatpush1.bf16.msra.mxu0 %v2888
  %2954 = vmatprep.subr.bf16.mxu0 %v2891
  %2955 = vmatpush1.bf16.msra.mxu0 %v2890
  %2956 = vmatprep.subr.bf16.mxu0 %v2893
  %2957 = vmatpush1.bf16.msra.mxu0 %v2892
  %2958 = vmatprep.subr.bf16.mxu0 %v2895
  %2959 = vmatpush1.bf16.msra.mxu0 %v2894
  %2960 = vmatprep.subr.bf16.mxu0 %v2897
  %2961 = vmatpush1.bf16.msra.mxu0 %v2896
  %2962 = vmatprep.subr.bf16.mxu0 %v2899
  %2963 = vmatpush1.bf16.msra.mxu0 %v2898
  %2964 = vmatprep.subr.bf16.mxu0 %v2901
  %2965 = vmatpush1.bf16.msra.mxu0 %v2900
  %2966 = vmatprep.subr.bf16.mxu0 %v2903
  %2967 = vmatpush1.bf16.msra.mxu0 %v2902
  %2968 = vmatprep.mubr.bf16.mxu0 %v2728
  %2969 = vmatmul.mubr.bf16.gmra.mrb[0].mxu0 %v2727
  %v2970 = vpop.f32.mrb[0].mxu0
  %v2971 = vadd.f32 0.0, %v2970
  %v2972 = vpop.f32.mrb[0].mxu0
  %v2973 = vadd.f32 0.0, %v2972
  %v2974 = vpop.f32.mrb[0].mxu0
  %v2975 = vadd.f32 0.0, %v2974
  %v2976 = vpop.f32.mrb[0].mxu0
  %v2977 = vadd.f32 0.0, %v2976
  %2978 = vmatprep.mubr.bf16.mxu0 %v2730
  %2979 = vmatmul.mubr.bf16.gmra.mrb[0].mxu0 %v2729
  %v2980 = vpop.f32.mrb[0].mxu0
  %v2981 = vadd.f32 0.0, %v2980
  %v2982 = vpop.f32.mrb[0].mxu0
  %v2983 = vadd.f32 0.0, %v2982
  %v2984 = vpop.f32.mrb[0].mxu0
  %v2985 = vadd.f32 0.0, %v2984
  %v2986 = vpop.f32.mrb[0].mxu0
  %v2987 = vadd.f32 0.0, %v2986
  %2988 = vmatprep.mubr.bf16.mxu0 %v2732
  %2989 = vmatmul.mubr.bf16.gmra.mrb[0].mxu0 %v2731
  %v2990 = vpop.f32.mrb[0].mxu0
  %v2991 = vadd.f32 0.0, %v2990
  %v2992 = vpop.f32.mrb[0].mxu0
  %v2993 = vadd.f32 0.0, %v2992
  %v2994 = vpop.f32.mrb[0].mxu0
  %v2995 = vadd.f32 0.0, %v2994
  %v2996 = vpop.f32.mrb[0].mxu0
  %v2997 = vadd.f32 0.0, %v2996
  %2998 = vmatprep.mubr.bf16.mxu0 %v2734
  %2999 = vmatmul.mubr.bf16.gmra.mrb[0].mxu0 %v2733
  %v3000 = vpop.f32.mrb[0].mxu0
  %v3001 = vadd.f32 0.0, %v3000
  %v3002 = vpop.f32.mrb[0].mxu0
  %v3003 = vadd.f32 0.0, %v3002
  %v3004 = vpop.f32.mrb[0].mxu0
  %v3005 = vadd.f32 0.0, %v3004
  %v3006 = vpop.f32.mrb[0].mxu0
  %v3007 = vadd.f32 0.0, %v3006
  %3008 = vmatprep.mubr.bf16.mxu0 %v2736
  %3009 = vmatmul.mubr.bf16.gmra.mrb[0].mxu0 %v2735
  %v3010 = vpop.f32.mrb[0].mxu0
  %v3011 = vadd.f32 0.0, %v3010
  %v3012 = vpop.f32.mrb[0].mxu0
  %v3013 = vadd.f32 0.0, %v3012
  %v3014 = vpop.f32.mrb[0].mxu0
  %v3015 = vadd.f32 0.0, %v3014
  %v3016 = vpop.f32.mrb[0].mxu0
  %v3017 = vadd.f32 0.0, %v3016
  %3018 = vmatprep.mubr.bf16.mxu0 %v2738
  %3019 = vmatmul.mubr.bf16.gmra.mrb[0].mxu0 %v2737
  %v3020 = vpop.f32.mrb[0].mxu0
  %v3021 = vadd.f32 0.0, %v3020
  %v3022 = vpop.f32.mrb[0].mxu0
  %v3023 = vadd.f32 0.0, %v3022
  %v3024 = vpop.f32.mrb[0].mxu0
  %v3025 = vadd.f32 0.0, %v3024
  %v3026 = vpop.f32.mrb[0].mxu0
  %v3027 = vadd.f32 0.0, %v3026
  %3028 = vmatprep.mubr.bf16.mxu0 %v2740
  %3029 = vmatmul.mubr.bf16.gmra.mrb[0].mxu0 %v2739
  %v3030 = vpop.f32.mrb[0].mxu0
  %v3031 = vadd.f32 0.0, %v3030
  %v3032 = vpop.f32.mrb[0].mxu0
  %v3033 = vadd.f32 0.0, %v3032
  %v3034 = vpop.f32.mrb[0].mxu0
  %v3035 = vadd.f32 0.0, %v3034
  %v3036 = vpop.f32.mrb[0].mxu0
  %v3037 = vadd.f32 0.0, %v3036
  %3038 = vmatprep.mubr.bf16.mxu0 %v2742
  %3039 = vmatmul.mubr.bf16.gmra.mrb[0].mxu0 %v2741
  %v3040 = vpop.f32.mrb[0].mxu0
  %v3041 = vadd.f32 0.0, %v3040
  %v3042 = vpop.f32.mrb[0].mxu0
  %v3043 = vadd.f32 0.0, %v3042
  %v3044 = vpop.f32.mrb[0].mxu0
  %v3045 = vadd.f32 0.0, %v3044
  %v3046 = vpop.f32.mrb[0].mxu0
  %v3047 = vadd.f32 0.0, %v3046
  %3048 = vdwg.mxu0
  %v3049 = vadd.f32 %v2647, %v2971
  %v3050 = vadd.f32 %v2648, %v2973
  %v3051 = vadd.f32 %v2649, %v2975
  %v3052 = vadd.f32 %v2650, %v2977
  %v3053 = vadd.f32 %v2651, %v2981
  %v3054 = vadd.f32 %v2652, %v2983
  %v3055 = vadd.f32 %v2653, %v2985
  %v3056 = vadd.f32 %v2654, %v2987
  %v3057 = vadd.f32 %v2655, %v2991
  %v3058 = vadd.f32 %v2656, %v2993
  %v3059 = vadd.f32 %v2657, %v2995
  %v3060 = vadd.f32 %v2658, %v2997
  %v3061 = vadd.f32 %v2659, %v3001
  %v3062 = vadd.f32 %v2660, %v3003
  %v3063 = vadd.f32 %v2661, %v3005
  %v3064 = vadd.f32 %v2662, %v3007
  %v3065 = vadd.f32 %v2663, %v3011
  %v3066 = vadd.f32 %v2664, %v3013
  %v3067 = vadd.f32 %v2665, %v3015
  %v3068 = vadd.f32 %v2666, %v3017
  %v3069 = vadd.f32 %v2667, %v3021
  %v3070 = vadd.f32 %v2668, %v3023
  %v3071 = vadd.f32 %v2669, %v3025
  %v3072 = vadd.f32 %v2670, %v3027
  %v3073 = vadd.f32 %v2671, %v3031
  %v3074 = vadd.f32 %v2672, %v3033
  %v3075 = vadd.f32 %v2673, %v3035
  %v3076 = vadd.f32 %v2674, %v3037
  %v3077 = vadd.f32 %v2675, %v3041
  %v3078 = vadd.f32 %v2676, %v3043
  %v3079 = vadd.f32 %v2677, %v3045
  %v3080 = vadd.f32 %v2678, %v3047
  %3081 = vst [vmem:[#allocation2] sm:$0xff] %v3049
  %3082 = vst [vmem:[#allocation2 + $0x8] sm:$0xff] %v3050
  %3083 = vst [vmem:[#allocation2 + $0x10] sm:$0xff] %v3051
  %3084 = vst [vmem:[#allocation2 + $0x18] sm:$0xff] %v3052
  %3085 = vst [vmem:[#allocation2 + $0x20] sm:$0xff] %v3053
  %3086 = vst [vmem:[#allocation2 + $0x28] sm:$0xff] %v3054
  %3087 = vst [vmem:[#allocation2 + $0x30] sm:$0xff] %v3055
  %3088 = vst [vmem:[#allocation2 + $0x38] sm:$0xff] %v3056
  %3089 = vst [vmem:[#allocation2 + $0x40] sm:$0xff] %v3057
  %3090 = vst [vmem:[#allocation2 + $0x48] sm:$0xff] %v3058
  %3091 = vst [vmem:[#allocation2 + $0x50] sm:$0xff] %v3059
  %3092 = vst [vmem:[#allocation2 + $0x58] sm:$0xff] %v3060
  %3093 = vst [vmem:[#allocation2 + $0x60] sm:$0xff] %v3061
  %3094 = vst [vmem:[#allocation2 + $0x68] sm:$0xff] %v3062
  %3095 = vst [vmem:[#allocation2 + $0x70] sm:$0xff] %v3063
  %3096 = vst [vmem:[#allocation2 + $0x78] sm:$0xff] %v3064
  %3097 = vst [vmem:[#allocation2 + $0x80] sm:$0xff] %v3065
  %3098 = vst [vmem:[#allocation2 + $0x88] sm:$0xff] %v3066
  %3099 = vst [vmem:[#allocation2 + $0x90] sm:$0xff] %v3067
  %3100 = vst [vmem:[#allocation2 + $0x98] sm:$0xff] %v3068
  %3101 = vst [vmem:[#allocation2 + $0xa0] sm:$0xff] %v3069
  %3102 = vst [vmem:[#allocation2 + $0xa8] sm:$0xff] %v3070
  %3103 = vst [vmem:[#allocation2 + $0xb0] sm:$0xff] %v3071
  %3104 = vst [vmem:[#allocation2 + $0xb8] sm:$0xff] %v3072
  %3105 = vst [vmem:[#allocation2 + $0xc0] sm:$0xff] %v3073
  %3106 = vst [vmem:[#allocation2 + $0xc8] sm:$0xff] %v3074
  %3107 = vst [vmem:[#allocation2 + $0xd0] sm:$0xff] %v3075
  %3108 = vst [vmem:[#allocation2 + $0xd8] sm:$0xff] %v3076
  %3109 = vst [vmem:[#allocation2 + $0xe0] sm:$0xff] %v3077
  %3110 = vst [vmem:[#allocation2 + $0xe8] sm:$0xff] %v3078
  %3111 = vst [vmem:[#allocation2 + $0xf0] sm:$0xff] %v3079
  %3112 = vst [vmem:[#allocation2 + $0xf8] sm:$0xff] %v3080
  %v3113 = vld [vmem:[#allocation2] sm:$0xff]
  %v3114 = vld [vmem:[#allocation2 + $0x8] sm:$0xff]
  %v3115 = vld [vmem:[#allocation2 + $0x10] sm:$0xff]
  %v3116 = vld [vmem:[#allocation2 + $0x18] sm:$0xff]
  %v3117 = vld [vmem:[#allocation2 + $0x20] sm:$0xff]
  %v3118 = vld [vmem:[#allocation2 + $0x28] sm:$0xff]
  %v3119 = vld [vmem:[#allocation2 + $0x30] sm:$0xff]
  %v3120 = vld [vmem:[#allocation2 + $0x38] sm:$0xff]
  %v3121 = vld [vmem:[#allocation2 + $0x40] sm:$0xff]
  %v3122 = vld [vmem:[#allocation2 + $0x48] sm:$0xff]
  %v3123 = vld [vmem:[#allocation2 + $0x50] sm:$0xff]
  %v3124 = vld [vmem:[#allocation2 + $0x58] sm:$0xff]
  %v3125 = vld [vmem:[#allocation2 + $0x60] sm:$0xff]
  %v3126 = vld [vmem:[#allocation2 + $0x68] sm:$0xff]
  %v3127 = vld [vmem:[#allocation2 + $0x70] sm:$0xff]
  %v3128 = vld [vmem:[#allocation2 + $0x78] sm:$0xff]
  %v3129 = vld [vmem:[#allocation2 + $0x80] sm:$0xff]
  %v3130 = vld [vmem:[#allocation2 + $0x88] sm:$0xff]
  %v3131 = vld [vmem:[#allocation2 + $0x90] sm:$0xff]
  %v3132 = vld [vmem:[#allocation2 + $0x98] sm:$0xff]
  %v3133 = vld [vmem:[#allocation2 + $0xa0] sm:$0xff]
  %v3134 = vld [vmem:[#allocation2 + $0xa8] sm:$0xff]
  %v3135 = vld [vmem:[#allocation2 + $0xb0] sm:$0xff]
  %v3136 = vld [vmem:[#allocation2 + $0xb8] sm:$0xff]
  %v3137 = vld [vmem:[#allocation2 + $0xc0] sm:$0xff]
  %v3138 = vld [vmem:[#allocation2 + $0xc8] sm:$0xff]
  %v3139 = vld [vmem:[#allocation2 + $0xd0] sm:$0xff]
  %v3140 = vld [vmem:[#allocation2 + $0xd8] sm:$0xff]
  %v3141 = vld [vmem:[#allocation2 + $0xe0] sm:$0xff]
  %v3142 = vld [vmem:[#allocation2 + $0xe8] sm:$0xff]
  %v3143 = vld [vmem:[#allocation2 + $0xf0] sm:$0xff]
  %v3144 = vld [vmem:[#allocation2 + $0xf8] sm:$0xff]
  %v3145 = vtanh.pop %v3113
  %v3146 = vtanh.pop %v3114
  %v3147 = vtanh.pop %v3115
  %v3148 = vtanh.pop %v3116
  %v3149 = vtanh.pop %v3117
  %v3150 = vtanh.pop %v3118
  %v3151 = vtanh.pop %v3119
  %v3152 = vtanh.pop %v3120
  %v3153 = vtanh.pop %v3121
  %v3154 = vtanh.pop %v3122
  %v3155 = vtanh.pop %v3123
  %v3156 = vtanh.pop %v3124
  %v3157 = vtanh.pop %v3125
  %v3158 = vtanh.pop %v3126
  %v3159 = vtanh.pop %v3127
  %v3160 = vtanh.pop %v3128
  %v3161 = vtanh.pop %v3129
  %v3162 = vtanh.pop %v3130
  %v3163 = vtanh.pop %v3131
  %v3164 = vtanh.pop %v3132
  %v3165 = vtanh.pop %v3133
  %v3166 = vtanh.pop %v3134
  %v3167 = vtanh.pop %v3135
  %v3168 = vtanh.pop %v3136
  %v3169 = vtanh.pop %v3137
  %v3170 = vtanh.pop %v3138
  %v3171 = vtanh.pop %v3139
  %v3172 = vtanh.pop %v3140
  %v3173 = vtanh.pop %v3141
  %v3174 = vtanh.pop %v3142
  %v3175 = vtanh.pop %v3143
  %v3176 = vtanh.pop %v3144
  %v3177 = vpack.c.bf16 %v3147, %v3145
  %v3178 = vpack.c.bf16 %v3148, %v3146
  %v3179 = vpack.c.bf16 %v3151, %v3149
  %v3180 = vpack.c.bf16 %v3152, %v3150
  %v3181 = vpack.c.bf16 %v3155, %v3153
  %v3182 = vpack.c.bf16 %v3156, %v3154
  %v3183 = vpack.c.bf16 %v3159, %v3157
  %v3184 = vpack.c.bf16 %v3160, %v3158
  %v3185 = vpack.c.bf16 %v3163, %v3161
  %v3186 = vpack.c.bf16 %v3164, %v3162
  %v3187 = vpack.c.bf16 %v3167, %v3165
  %v3188 = vpack.c.bf16 %v3168, %v3166
  %v3189 = vpack.c.bf16 %v3171, %v3169
  %v3190 = vpack.c.bf16 %v3172, %v3170
  %v3191 = vpack.c.bf16 %v3175, %v3173
  %v3192 = vpack.c.bf16 %v3176, %v3174
  %s3193 = scalar_lea.vmem %s2, 2
  %v3194 = vld [vmem:[%s3193] ss:$4 sm:$0x3]
  %v3196 = vlaneseq
  %v3197 = vshrl.u32 %v3196, 7
  %v3198 = vsub.s32 0, %v3197
  %v3199 = vrot.slane %v3194, %v3198
  %v3200 = vlaneseq
  %v3201 = vshrl.u32 %v3200, 7
  %v3202 = vsub.s32 1, %v3201
  %v3203 = vrot.slane %v3194, %v3202
  %3206 = vst [vmem:[#allocation2] sm:$0xff] %v3199
  %3207 = vst [vmem:[#allocation2 + $0x8] sm:$0xff] %v3203
  %3208 = vst [vmem:[#allocation2 + $0x10] sm:$0xff] %v3199
  %3209 = vst [vmem:[#allocation2 + $0x18] sm:$0xff] %v3203
  %3210 = vst [vmem:[#allocation2 + $0x20] sm:$0xff] %v3199
  %3211 = vst [vmem:[#allocation2 + $0x28] sm:$0xff] %v3203
  %3212 = vst [vmem:[#allocation2 + $0x30] sm:$0xff] %v3199
  %3213 = vst [vmem:[#allocation2 + $0x38] sm:$0xff] %v3203
  %3214 = vst [vmem:[#allocation2 + $0x40] sm:$0xff] %v3199
  %3215 = vst [vmem:[#allocation2 + $0x48] sm:$0xff] %v3203
  %3216 = vst [vmem:[#allocation2 + $0x50] sm:$0xff] %v3199
  %3217 = vst [vmem:[#allocation2 + $0x58] sm:$0xff] %v3203
  %3218 = vst [vmem:[#allocation2 + $0x60] sm:$0xff] %v3199
  %3219 = vst [vmem:[#allocation2 + $0x68] sm:$0xff] %v3203
  %3220 = vst [vmem:[#allocation2 + $0x70] sm:$0xff] %v3199
  %3221 = vst [vmem:[#allocation2 + $0x78] sm:$0xff] %v3203
  %3222 = vst [vmem:[#allocation2 + $0x80] sm:$0xff] %v3199
  %3223 = vst [vmem:[#allocation2 + $0x88] sm:$0xff] %v3203
  %3224 = vst [vmem:[#allocation2 + $0x90] sm:$0xff] %v3199
  %3225 = vst [vmem:[#allocation2 + $0x98] sm:$0xff] %v3203
  %3226 = vst [vmem:[#allocation2 + $0xa0] sm:$0xff] %v3199
  %3227 = vst [vmem:[#allocation2 + $0xa8] sm:$0xff] %v3203
  %3228 = vst [vmem:[#allocation2 + $0xb0] sm:$0xff] %v3199
  %3229 = vst [vmem:[#allocation2 + $0xb8] sm:$0xff] %v3203
  %3230 = vst [vmem:[#allocation2 + $0xc0] sm:$0xff] %v3199
  %3231 = vst [vmem:[#allocation2 + $0xc8] sm:$0xff] %v3203
  %3232 = vst [vmem:[#allocation2 + $0xd0] sm:$0xff] %v3199
  %3233 = vst [vmem:[#allocation2 + $0xd8] sm:$0xff] %v3203
  %3234 = vst [vmem:[#allocation2 + $0xe0] sm:$0xff] %v3199
  %3235 = vst [vmem:[#allocation2 + $0xe8] sm:$0xff] %v3203
  %3236 = vst [vmem:[#allocation2 + $0xf0] sm:$0xff] %v3199
  %3237 = vst [vmem:[#allocation2 + $0xf8] sm:$0xff] %v3203
  %v3238 = vld [vmem:[#allocation2] sm:$0xff]
  %v3239 = vld [vmem:[#allocation2 + $0x8] sm:$0xff]
  %v3240 = vld [vmem:[#allocation2 + $0x10] sm:$0xff]
  %v3241 = vld [vmem:[#allocation2 + $0x18] sm:$0xff]
  %v3242 = vld [vmem:[#allocation2 + $0x20] sm:$0xff]
  %v3243 = vld [vmem:[#allocation2 + $0x28] sm:$0xff]
  %v3244 = vld [vmem:[#allocation2 + $0x30] sm:$0xff]
  %v3245 = vld [vmem:[#allocation2 + $0x38] sm:$0xff]
  %v3246 = vld [vmem:[#allocation2 + $0x40] sm:$0xff]
  %v3247 = vld [vmem:[#allocation2 + $0x48] sm:$0xff]
  %v3248 = vld [vmem:[#allocation2 + $0x50] sm:$0xff]
  %v3249 = vld [vmem:[#allocation2 + $0x58] sm:$0xff]
  %v3250 = vld [vmem:[#allocation2 + $0x60] sm:$0xff]
  %v3251 = vld [vmem:[#allocation2 + $0x68] sm:$0xff]
  %v3252 = vld [vmem:[#allocation2 + $0x70] sm:$0xff]
  %v3253 = vld [vmem:[#allocation2 + $0x78] sm:$0xff]
  %v3254 = vld [vmem:[#allocation2 + $0x80] sm:$0xff]
  %v3255 = vld [vmem:[#allocation2 + $0x88] sm:$0xff]
  %v3256 = vld [vmem:[#allocation2 + $0x90] sm:$0xff]
  %v3257 = vld [vmem:[#allocation2 + $0x98] sm:$0xff]
  %v3258 = vld [vmem:[#allocation2 + $0xa0] sm:$0xff]
  %v3259 = vld [vmem:[#allocation2 + $0xa8] sm:$0xff]
  %v3260 = vld [vmem:[#allocation2 + $0xb0] sm:$0xff]
  %v3261 = vld [vmem:[#allocation2 + $0xb8] sm:$0xff]
  %v3262 = vld [vmem:[#allocation2 + $0xc0] sm:$0xff]
  %v3263 = vld [vmem:[#allocation2 + $0xc8] sm:$0xff]
  %v3264 = vld [vmem:[#allocation2 + $0xd0] sm:$0xff]
  %v3265 = vld [vmem:[#allocation2 + $0xd8] sm:$0xff]
  %v3266 = vld [vmem:[#allocation2 + $0xe0] sm:$0xff]
  %v3267 = vld [vmem:[#allocation2 + $0xe8] sm:$0xff]
  %v3268 = vld [vmem:[#allocation2 + $0xf0] sm:$0xff]
  %v3269 = vld [vmem:[#allocation2 + $0xf8] sm:$0xff]
  %v3271 = vshrl.u32 %v3177, 16
  %v3273 = vrot.slane %v3271, 7
  %v3274 = vshll.u32 %v3177, 16
  %v3276 = vor.u32 %v3273, %v3274
  %v3278 = vshrl.u32 %v3178, 16
  %v3280 = vrot.slane %v3278, 7
  %v3281 = vshll.u32 %v3178, 16
  %v3283 = vor.u32 %v3280, %v3281
  %v3285 = vshrl.u32 %v3179, 16
  %v3287 = vrot.slane %v3285, 7
  %v3288 = vshll.u32 %v3179, 16
  %v3290 = vor.u32 %v3287, %v3288
  %v3292 = vshrl.u32 %v3180, 16
  %v3294 = vrot.slane %v3292, 7
  %v3295 = vshll.u32 %v3180, 16
  %v3297 = vor.u32 %v3294, %v3295
  %v3299 = vshrl.u32 %v3181, 16
  %v3301 = vrot.slane %v3299, 7
  %v3302 = vshll.u32 %v3181, 16
  %v3304 = vor.u32 %v3301, %v3302
  %v3306 = vshrl.u32 %v3182, 16
  %v3308 = vrot.slane %v3306, 7
  %v3309 = vshll.u32 %v3182, 16
  %v3311 = vor.u32 %v3308, %v3309
  %v3313 = vshrl.u32 %v3183, 16
  %v3315 = vrot.slane %v3313, 7
  %v3316 = vshll.u32 %v3183, 16
  %v3318 = vor.u32 %v3315, %v3316
  %v3320 = vshrl.u32 %v3184, 16
  %v3322 = vrot.slane %v3320, 7
  %v3323 = vshll.u32 %v3184, 16
  %v3325 = vor.u32 %v3322, %v3323
  %v3327 = vshrl.u32 %v3185, 16
  %v3329 = vrot.slane %v3327, 7
  %v3330 = vshll.u32 %v3185, 16
  %v3332 = vor.u32 %v3329, %v3330
  %v3334 = vshrl.u32 %v3186, 16
  %v3336 = vrot.slane %v3334, 7
  %v3337 = vshll.u32 %v3186, 16
  %v3339 = vor.u32 %v3336, %v3337
  %v3341 = vshrl.u32 %v3187, 16
  %v3343 = vrot.slane %v3341, 7
  %v3344 = vshll.u32 %v3187, 16
  %v3346 = vor.u32 %v3343, %v3344
  %v3348 = vshrl.u32 %v3188, 16
  %v3350 = vrot.slane %v3348, 7
  %v3351 = vshll.u32 %v3188, 16
  %v3353 = vor.u32 %v3350, %v3351
  %v3355 = vshrl.u32 %v3189, 16
  %v3357 = vrot.slane %v3355, 7
  %v3358 = vshll.u32 %v3189, 16
  %v3360 = vor.u32 %v3357, %v3358
  %v3362 = vshrl.u32 %v3190, 16
  %v3364 = vrot.slane %v3362, 7
  %v3365 = vshll.u32 %v3190, 16
  %v3367 = vor.u32 %v3364, %v3365
  %v3369 = vshrl.u32 %v3191, 16
  %v3371 = vrot.slane %v3369, 7
  %v3372 = vshll.u32 %v3191, 16
  %v3374 = vor.u32 %v3371, %v3372
  %v3376 = vshrl.u32 %v3192, 16
  %v3378 = vrot.slane %v3376, 7
  %v3379 = vshll.u32 %v3192, 16
  %v3381 = vor.u32 %v3378, %v3379
  %v3398 = vsel %vm301, 0, %v3276
  %v3399 = vsel %vm301, 0, %v3283
  %v3400 = vsel %vm301, 0, %v3290
  %v3401 = vsel %vm301, 0, %v3297
  %v3402 = vsel %vm301, 0, %v3304
  %v3403 = vsel %vm301, 0, %v3311
  %v3404 = vsel %vm301, 0, %v3318
  %v3405 = vsel %vm301, 0, %v3325
  %v3406 = vsel %vm301, 0, %v3332
  %v3407 = vsel %vm301, 0, %v3339
  %v3408 = vsel %vm301, 0, %v3346
  %v3409 = vsel %vm301, 0, %v3353
  %v3410 = vsel %vm301, 0, %v3360
  %v3411 = vsel %vm301, 0, %v3367
  %v3412 = vsel %vm301, 0, %v3374
  %v3413 = vsel %vm301, 0, %v3381
  %s3414 = scalar_lea.vmem %s1, 1536
  %v3415 = vld [vmem:[%s3414] sm:$0xff]
  %v3416 = vld [vmem:[%s3414 + $0x8] sm:$0xff]
  %v3417 = vld [vmem:[%s3414 + $0x10] sm:$0xff]
  %v3418 = vld [vmem:[%s3414 + $0x18] sm:$0xff]
  %v3419 = vld [vmem:[%s3414 + $0x20] sm:$0xff]
  %v3420 = vld [vmem:[%s3414 + $0x28] sm:$0xff]
  %v3421 = vld [vmem:[%s3414 + $0x30] sm:$0xff]
  %v3422 = vld [vmem:[%s3414 + $0x38] sm:$0xff]
  %v3423 = vld [vmem:[%s3414 + $0x40] sm:$0xff]
  %v3424 = vld [vmem:[%s3414 + $0x48] sm:$0xff]
  %v3425 = vld [vmem:[%s3414 + $0x50] sm:$0xff]
  %v3426 = vld [vmem:[%s3414 + $0x58] sm:$0xff]
  %v3427 = vld [vmem:[%s3414 + $0x60] sm:$0xff]
  %v3428 = vld [vmem:[%s3414 + $0x68] sm:$0xff]
  %v3429 = vld [vmem:[%s3414 + $0x70] sm:$0xff]
  %v3430 = vld [vmem:[%s3414 + $0x78] sm:$0xff]
  %v3431 = vld [vmem:[%s3414 + $0x80] sm:$0xff]
  %v3432 = vld [vmem:[%s3414 + $0x88] sm:$0xff]
  %v3433 = vld [vmem:[%s3414 + $0x90] sm:$0xff]
  %v3434 = vld [vmem:[%s3414 + $0x98] sm:$0xff]
  %v3435 = vld [vmem:[%s3414 + $0xa0] sm:$0xff]
  %v3436 = vld [vmem:[%s3414 + $0xa8] sm:$0xff]
  %v3437 = vld [vmem:[%s3414 + $0xb0] sm:$0xff]
  %v3438 = vld [vmem:[%s3414 + $0xb8] sm:$0xff]
  %v3439 = vld [vmem:[%s3414 + $0xc0] sm:$0xff]
  %v3440 = vld [vmem:[%s3414 + $0xc8] sm:$0xff]
  %v3441 = vld [vmem:[%s3414 + $0xd0] sm:$0xff]
  %v3442 = vld [vmem:[%s3414 + $0xd8] sm:$0xff]
  %v3443 = vld [vmem:[%s3414 + $0xe0] sm:$0xff]
  %v3444 = vld [vmem:[%s3414 + $0xe8] sm:$0xff]
  %v3445 = vld [vmem:[%s3414 + $0xf0] sm:$0xff]
  %v3446 = vld [vmem:[%s3414 + $0xf8] sm:$0xff]
  %v3479 = vunpack.c.l.b16 %v3415
  %v3480 = vunpack.c.h.b16 %v3415
  %v3481 = vunpack.c.l.b16 %v3416
  %v3482 = vunpack.c.h.b16 %v3416
  %v3483 = vunpack.c.l.b16 %v3417
  %v3484 = vunpack.c.h.b16 %v3417
  %v3485 = vunpack.c.l.b16 %v3418
  %v3486 = vunpack.c.h.b16 %v3418
  %v3487 = vunpack.c.l.b16 %v3419
  %v3488 = vunpack.c.h.b16 %v3419
  %v3489 = vunpack.c.l.b16 %v3420
  %v3490 = vunpack.c.h.b16 %v3420
  %v3491 = vunpack.c.l.b16 %v3421
  %v3492 = vunpack.c.h.b16 %v3421
  %v3493 = vunpack.c.l.b16 %v3422
  %v3494 = vunpack.c.h.b16 %v3422
  %v3495 = vunpack.c.l.b16 %v3423
  %v3496 = vunpack.c.h.b16 %v3423
  %v3497 = vunpack.c.l.b16 %v3424
  %v3498 = vunpack.c.h.b16 %v3424
  %v3499 = vunpack.c.l.b16 %v3425
  %v3500 = vunpack.c.h.b16 %v3425
  %v3501 = vunpack.c.l.b16 %v3426
  %v3502 = vunpack.c.h.b16 %v3426
  %v3503 = vunpack.c.l.b16 %v3427
  %v3504 = vunpack.c.h.b16 %v3427
  %v3505 = vunpack.c.l.b16 %v3428
  %v3506 = vunpack.c.h.b16 %v3428
  %v3507 = vunpack.c.l.b16 %v3429
  %v3508 = vunpack.c.h.b16 %v3429
  %v3509 = vunpack.c.l.b16 %v3430
  %v3510 = vunpack.c.h.b16 %v3430
  %v3511 = vunpack.c.l.b16 %v3431
  %v3512 = vunpack.c.h.b16 %v3431
  %v3513 = vunpack.c.l.b16 %v3432
  %v3514 = vunpack.c.h.b16 %v3432
  %v3515 = vunpack.c.l.b16 %v3433
  %v3516 = vunpack.c.h.b16 %v3433
  %v3517 = vunpack.c.l.b16 %v3434
  %v3518 = vunpack.c.h.b16 %v3434
  %v3519 = vunpack.c.l.b16 %v3435
  %v3520 = vunpack.c.h.b16 %v3435
  %v3521 = vunpack.c.l.b16 %v3436
  %v3522 = vunpack.c.h.b16 %v3436
  %v3523 = vunpack.c.l.b16 %v3437
  %v3524 = vunpack.c.h.b16 %v3437
  %v3525 = vunpack.c.l.b16 %v3438
  %v3526 = vunpack.c.h.b16 %v3438
  %v3527 = vunpack.c.l.b16 %v3439
  %v3528 = vunpack.c.h.b16 %v3439
  %v3529 = vunpack.c.l.b16 %v3440
  %v3530 = vunpack.c.h.b16 %v3440
  %v3531 = vunpack.c.l.b16 %v3441
  %v3532 = vunpack.c.h.b16 %v3441
  %v3533 = vunpack.c.l.b16 %v3442
  %v3534 = vunpack.c.h.b16 %v3442
  %v3535 = vunpack.c.l.b16 %v3443
  %v3536 = vunpack.c.h.b16 %v3443
  %v3537 = vunpack.c.l.b16 %v3444
  %v3538 = vunpack.c.h.b16 %v3444
  %v3539 = vunpack.c.l.b16 %v3445
  %v3540 = vunpack.c.h.b16 %v3445
  %v3541 = vunpack.c.l.b16 %v3446
  %v3542 = vunpack.c.h.b16 %v3446
  %v3543 = vpack.c.b16 %v3481, %v3479
  %v3544 = vpack.c.b16 %v3482, %v3480
  %v3545 = vpack.c.b16 %v3485, %v3483
  %v3546 = vpack.c.b16 %v3486, %v3484
  %v3547 = vpack.c.b16 %v3489, %v3487
  %v3548 = vpack.c.b16 %v3490, %v3488
  %v3549 = vpack.c.b16 %v3493, %v3491
  %v3550 = vpack.c.b16 %v3494, %v3492
  %v3551 = vpack.c.b16 %v3497, %v3495
  %v3552 = vpack.c.b16 %v3498, %v3496
  %v3553 = vpack.c.b16 %v3501, %v3499
  %v3554 = vpack.c.b16 %v3502, %v3500
  %v3555 = vpack.c.b16 %v3505, %v3503
  %v3556 = vpack.c.b16 %v3506, %v3504
  %v3557 = vpack.c.b16 %v3509, %v3507
  %v3558 = vpack.c.b16 %v3510, %v3508
  %v3559 = vpack.c.b16 %v3513, %v3511
  %v3560 = vpack.c.b16 %v3514, %v3512
  %v3561 = vpack.c.b16 %v3517, %v3515
  %v3562 = vpack.c.b16 %v3518, %v3516
  %v3563 = vpack.c.b16 %v3521, %v3519
  %v3564 = vpack.c.b16 %v3522, %v3520
  %v3565 = vpack.c.b16 %v3525, %v3523
  %v3566 = vpack.c.b16 %v3526, %v3524
  %v3567 = vpack.c.b16 %v3529, %v3527
  %v3568 = vpack.c.b16 %v3530, %v3528
  %v3569 = vpack.c.b16 %v3533, %v3531
  %v3570 = vpack.c.b16 %v3534, %v3532
  %v3571 = vpack.c.b16 %v3537, %v3535
  %v3572 = vpack.c.b16 %v3538, %v3536
  %v3573 = vpack.c.b16 %v3541, %v3539
  %v3574 = vpack.c.b16 %v3542, %v3540
  %3607 = vmatprep.subr.bf16.mxu0 %v3544
  %3608 = vmatpush1.bf16.msra.mxu0 %v3543
  %3609 = vmatprep.subr.bf16.mxu0 %v3546
  %3610 = vmatpush1.bf16.msra.mxu0 %v3545
  %3611 = vmatprep.subr.bf16.mxu0 %v3548
  %3612 = vmatpush1.bf16.msra.mxu0 %v3547
  %3613 = vmatprep.subr.bf16.mxu0 %v3550
  %3614 = vmatpush1.bf16.msra.mxu0 %v3549
  %3615 = vmatprep.subr.bf16.mxu0 %v3552
  %3616 = vmatpush1.bf16.msra.mxu0 %v3551
  %3617 = vmatprep.subr.bf16.mxu0 %v3554
  %3618 = vmatpush1.bf16.msra.mxu0 %v3553
  %3619 = vmatprep.subr.bf16.mxu0 %v3556
  %3620 = vmatpush1.bf16.msra.mxu0 %v3555
  %3621 = vmatprep.subr.bf16.mxu0 %v3558
  %3622 = vmatpush1.bf16.msra.mxu0 %v3557
  %3623 = vmatprep.subr.bf16.mxu0 %v3560
  %3624 = vmatpush1.bf16.msra.mxu0 %v3559
  %3625 = vmatprep.subr.bf16.mxu0 %v3562
  %3626 = vmatpush1.bf16.msra.mxu0 %v3561
  %3627 = vmatprep.subr.bf16.mxu0 %v3564
  %3628 = vmatpush1.bf16.msra.mxu0 %v3563
  %3629 = vmatprep.subr.bf16.mxu0 %v3566
  %3630 = vmatpush1.bf16.msra.mxu0 %v3565
  %3631 = vmatprep.subr.bf16.mxu0 %v3568
  %3632 = vmatpush1.bf16.msra.mxu0 %v3567
  %3633 = vmatprep.subr.bf16.mxu0 %v3570
  %3634 = vmatpush1.bf16.msra.mxu0 %v3569
  %3635 = vmatprep.subr.bf16.mxu0 %v3572
  %3636 = vmatpush1.bf16.msra.mxu0 %v3571
  %3637 = vmatprep.subr.bf16.mxu0 %v3574
  %3638 = vmatpush1.bf16.msra.mxu0 %v3573
  %3639 = vmatprep.mubr.bf16.mxu0 %v3399
  %3640 = vmatmul.mubr.bf16.gmra.mrb[0].mxu0 %v3398
  %v3641 = vpop.f32.mrb[0].mxu0
  %v3642 = vadd.f32 0.0, %v3641
  %v3643 = vpop.f32.mrb[0].mxu0
  %v3644 = vadd.f32 0.0, %v3643
  %v3645 = vpop.f32.mrb[0].mxu0
  %v3646 = vadd.f32 0.0, %v3645
  %v3647 = vpop.f32.mrb[0].mxu0
  %v3648 = vadd.f32 0.0, %v3647
  %3649 = vmatprep.mubr.bf16.mxu0 %v3401
  %3650 = vmatmul.mubr.bf16.gmra.mrb[0].mxu0 %v3400
  %v3651 = vpop.f32.mrb[0].mxu0
  %v3652 = vadd.f32 0.0, %v3651
  %v3653 = vpop.f32.mrb[0].mxu0
  %v3654 = vadd.f32 0.0, %v3653
  %v3655 = vpop.f32.mrb[0].mxu0
  %v3656 = vadd.f32 0.0, %v3655
  %v3657 = vpop.f32.mrb[0].mxu0
  %v3658 = vadd.f32 0.0, %v3657
  %3659 = vmatprep.mubr.bf16.mxu0 %v3403
  %3660 = vmatmul.mubr.bf16.gmra.mrb[0].mxu0 %v3402
  %v3661 = vpop.f32.mrb[0].mxu0
  %v3662 = vadd.f32 0.0, %v3661
  %v3663 = vpop.f32.mrb[0].mxu0
  %v3664 = vadd.f32 0.0, %v3663
  %v3665 = vpop.f32.mrb[0].mxu0
  %v3666 = vadd.f32 0.0, %v3665
  %v3667 = vpop.f32.mrb[0].mxu0
  %v3668 = vadd.f32 0.0, %v3667
  %3669 = vmatprep.mubr.bf16.mxu0 %v3405
  %3670 = vmatmul.mubr.bf16.gmra.mrb[0].mxu0 %v3404
  %v3671 = vpop.f32.mrb[0].mxu0
  %v3672 = vadd.f32 0.0, %v3671
  %v3673 = vpop.f32.mrb[0].mxu0
  %v3674 = vadd.f32 0.0, %v3673
  %v3675 = vpop.f32.mrb[0].mxu0
  %v3676 = vadd.f32 0.0, %v3675
  %v3677 = vpop.f32.mrb[0].mxu0
  %v3678 = vadd.f32 0.0, %v3677
  %3679 = vmatprep.mubr.bf16.mxu0 %v3407
  %3680 = vmatmul.mubr.bf16.gmra.mrb[0].mxu0 %v3406
  %v3681 = vpop.f32.mrb[0].mxu0
  %v3682 = vadd.f32 0.0, %v3681
  %v3683 = vpop.f32.mrb[0].mxu0
  %v3684 = vadd.f32 0.0, %v3683
  %v3685 = vpop.f32.mrb[0].mxu0
  %v3686 = vadd.f32 0.0, %v3685
  %v3687 = vpop.f32.mrb[0].mxu0
  %v3688 = vadd.f32 0.0, %v3687
  %3689 = vmatprep.mubr.bf16.mxu0 %v3409
  %3690 = vmatmul.mubr.bf16.gmra.mrb[0].mxu0 %v3408
  %v3691 = vpop.f32.mrb[0].mxu0
  %v3692 = vadd.f32 0.0, %v3691
  %v3693 = vpop.f32.mrb[0].mxu0
  %v3694 = vadd.f32 0.0, %v3693
  %v3695 = vpop.f32.mrb[0].mxu0
  %v3696 = vadd.f32 0.0, %v3695
  %v3697 = vpop.f32.mrb[0].mxu0
  %v3698 = vadd.f32 0.0, %v3697
  %3699 = vmatprep.mubr.bf16.mxu0 %v3411
  %3700 = vmatmul.mubr.bf16.gmra.mrb[0].mxu0 %v3410
  %v3701 = vpop.f32.mrb[0].mxu0
  %v3702 = vadd.f32 0.0, %v3701
  %v3703 = vpop.f32.mrb[0].mxu0
  %v3704 = vadd.f32 0.0, %v3703
  %v3705 = vpop.f32.mrb[0].mxu0
  %v3706 = vadd.f32 0.0, %v3705
  %v3707 = vpop.f32.mrb[0].mxu0
  %v3708 = vadd.f32 0.0, %v3707
  %3709 = vmatprep.mubr.bf16.mxu0 %v3413
  %3710 = vmatmul.mubr.bf16.gmra.mrb[0].mxu0 %v3412
  %v3711 = vpop.f32.mrb[0].mxu0
  %v3712 = vadd.f32 0.0, %v3711
  %v3713 = vpop.f32.mrb[0].mxu0
  %v3714 = vadd.f32 0.0, %v3713
  %v3715 = vpop.f32.mrb[0].mxu0
  %v3716 = vadd.f32 0.0, %v3715
  %v3717 = vpop.f32.mrb[0].mxu0
  %v3718 = vadd.f32 0.0, %v3717
  %3719 = vdwg.mxu0
  %v3720 = vadd.f32 %v3238, %v3642
  %v3721 = vadd.f32 %v3239, %v3644
  %v3722 = vadd.f32 %v3240, %v3646
  %v3723 = vadd.f32 %v3241, %v3648
  %v3724 = vadd.f32 %v3242, %v3652
  %v3725 = vadd.f32 %v3243, %v3654
  %v3726 = vadd.f32 %v3244, %v3656
  %v3727 = vadd.f32 %v3245, %v3658
  %v3728 = vadd.f32 %v3246, %v3662
  %v3729 = vadd.f32 %v3247, %v3664
  %v3730 = vadd.f32 %v3248, %v3666
  %v3731 = vadd.f32 %v3249, %v3668
  %v3732 = vadd.f32 %v3250, %v3672
  %v3733 = vadd.f32 %v3251, %v3674
  %v3734 = vadd.f32 %v3252, %v3676
  %v3735 = vadd.f32 %v3253, %v3678
  %v3736 = vadd.f32 %v3254, %v3682
  %v3737 = vadd.f32 %v3255, %v3684
  %v3738 = vadd.f32 %v3256, %v3686
  %v3739 = vadd.f32 %v3257, %v3688
  %v3740 = vadd.f32 %v3258, %v3692
  %v3741 = vadd.f32 %v3259, %v3694
  %v3742 = vadd.f32 %v3260, %v3696
  %v3743 = vadd.f32 %v3261, %v3698
  %v3744 = vadd.f32 %v3262, %v3702
  %v3745 = vadd.f32 %v3263, %v3704
  %v3746 = vadd.f32 %v3264, %v3706
  %v3747 = vadd.f32 %v3265, %v3708
  %v3748 = vadd.f32 %v3266, %v3712
  %v3749 = vadd.f32 %v3267, %v3714
  %v3750 = vadd.f32 %v3268, %v3716
  %v3751 = vadd.f32 %v3269, %v3718
  %3752 = vst [vmem:[#allocation2] sm:$0xff] %v3720
  %3753 = vst [vmem:[#allocation2 + $0x8] sm:$0xff] %v3721
  %3754 = vst [vmem:[#allocation2 + $0x10] sm:$0xff] %v3722
  %3755 = vst [vmem:[#allocation2 + $0x18] sm:$0xff] %v3723
  %3756 = vst [vmem:[#allocation2 + $0x20] sm:$0xff] %v3724
  %3757 = vst [vmem:[#allocation2 + $0x28] sm:$0xff] %v3725
  %3758 = vst [vmem:[#allocation2 + $0x30] sm:$0xff] %v3726
  %3759 = vst [vmem:[#allocation2 + $0x38] sm:$0xff] %v3727
  %3760 = vst [vmem:[#allocation2 + $0x40] sm:$0xff] %v3728
  %3761 = vst [vmem:[#allocation2 + $0x48] sm:$0xff] %v3729
  %3762 = vst [vmem:[#allocation2 + $0x50] sm:$0xff] %v3730
  %3763 = vst [vmem:[#allocation2 + $0x58] sm:$0xff] %v3731
  %3764 = vst [vmem:[#allocation2 + $0x60] sm:$0xff] %v3732
  %3765 = vst [vmem:[#allocation2 + $0x68] sm:$0xff] %v3733
  %3766 = vst [vmem:[#allocation2 + $0x70] sm:$0xff] %v3734
  %3767 = vst [vmem:[#allocation2 + $0x78] sm:$0xff] %v3735
  %3768 = vst [vmem:[#allocation2 + $0x80] sm:$0xff] %v3736
  %3769 = vst [vmem:[#allocation2 + $0x88] sm:$0xff] %v3737
  %3770 = vst [vmem:[#allocation2 + $0x90] sm:$0xff] %v3738
  %3771 = vst [vmem:[#allocation2 + $0x98] sm:$0xff] %v3739
  %3772 = vst [vmem:[#allocation2 + $0xa0] sm:$0xff] %v3740
  %3773 = vst [vmem:[#allocation2 + $0xa8] sm:$0xff] %v3741
  %3774 = vst [vmem:[#allocation2 + $0xb0] sm:$0xff] %v3742
  %3775 = vst [vmem:[#allocation2 + $0xb8] sm:$0xff] %v3743
  %3776 = vst [vmem:[#allocation2 + $0xc0] sm:$0xff] %v3744
  %3777 = vst [vmem:[#allocation2 + $0xc8] sm:$0xff] %v3745
  %3778 = vst [vmem:[#allocation2 + $0xd0] sm:$0xff] %v3746
  %3779 = vst [vmem:[#allocation2 + $0xd8] sm:$0xff] %v3747
  %3780 = vst [vmem:[#allocation2 + $0xe0] sm:$0xff] %v3748
  %3781 = vst [vmem:[#allocation2 + $0xe8] sm:$0xff] %v3749
  %3782 = vst [vmem:[#allocation2 + $0xf0] sm:$0xff] %v3750
  %3783 = vst [vmem:[#allocation2 + $0xf8] sm:$0xff] %v3751
  %v3784 = vld [vmem:[#allocation2] sm:$0xff]
  %v3785 = vld [vmem:[#allocation2 + $0x8] sm:$0xff]
  %v3786 = vld [vmem:[#allocation2 + $0x10] sm:$0xff]
  %v3787 = vld [vmem:[#allocation2 + $0x18] sm:$0xff]
  %v3788 = vld [vmem:[#allocation2 + $0x20] sm:$0xff]
  %v3789 = vld [vmem:[#allocation2 + $0x28] sm:$0xff]
  %v3790 = vld [vmem:[#allocation2 + $0x30] sm:$0xff]
  %v3791 = vld [vmem:[#allocation2 + $0x38] sm:$0xff]
  %v3792 = vld [vmem:[#allocation2 + $0x40] sm:$0xff]
  %v3793 = vld [vmem:[#allocation2 + $0x48] sm:$0xff]
  %v3794 = vld [vmem:[#allocation2 + $0x50] sm:$0xff]
  %v3795 = vld [vmem:[#allocation2 + $0x58] sm:$0xff]
  %v3796 = vld [vmem:[#allocation2 + $0x60] sm:$0xff]
  %v3797 = vld [vmem:[#allocation2 + $0x68] sm:$0xff]
  %v3798 = vld [vmem:[#allocation2 + $0x70] sm:$0xff]
  %v3799 = vld [vmem:[#allocation2 + $0x78] sm:$0xff]
  %v3800 = vld [vmem:[#allocation2 + $0x80] sm:$0xff]
  %v3801 = vld [vmem:[#allocation2 + $0x88] sm:$0xff]
  %v3802 = vld [vmem:[#allocation2 + $0x90] sm:$0xff]
  %v3803 = vld [vmem:[#allocation2 + $0x98] sm:$0xff]
  %v3804 = vld [vmem:[#allocation2 + $0xa0] sm:$0xff]
  %v3805 = vld [vmem:[#allocation2 + $0xa8] sm:$0xff]
  %v3806 = vld [vmem:[#allocation2 + $0xb0] sm:$0xff]
  %v3807 = vld [vmem:[#allocation2 + $0xb8] sm:$0xff]
  %v3808 = vld [vmem:[#allocation2 + $0xc0] sm:$0xff]
  %v3809 = vld [vmem:[#allocation2 + $0xc8] sm:$0xff]
  %v3810 = vld [vmem:[#allocation2 + $0xd0] sm:$0xff]
  %v3811 = vld [vmem:[#allocation2 + $0xd8] sm:$0xff]
  %v3812 = vld [vmem:[#allocation2 + $0xe0] sm:$0xff]
  %v3813 = vld [vmem:[#allocation2 + $0xe8] sm:$0xff]
  %v3814 = vld [vmem:[#allocation2 + $0xf0] sm:$0xff]
  %v3815 = vld [vmem:[#allocation2 + $0xf8] sm:$0xff]
  %s3816 = scalar_lea.vmem %s1, 1792
  %v3817 = vld [vmem:[%s3816] sm:$0xff]
  %v3818 = vld [vmem:[%s3816 + $0x8] sm:$0xff]
  %v3819 = vld [vmem:[%s3816 + $0x10] sm:$0xff]
  %v3820 = vld [vmem:[%s3816 + $0x18] sm:$0xff]
  %v3821 = vld [vmem:[%s3816 + $0x20] sm:$0xff]
  %v3822 = vld [vmem:[%s3816 + $0x28] sm:$0xff]
  %v3823 = vld [vmem:[%s3816 + $0x30] sm:$0xff]
  %v3824 = vld [vmem:[%s3816 + $0x38] sm:$0xff]
  %v3825 = vld [vmem:[%s3816 + $0x40] sm:$0xff]
  %v3826 = vld [vmem:[%s3816 + $0x48] sm:$0xff]
  %v3827 = vld [vmem:[%s3816 + $0x50] sm:$0xff]
  %v3828 = vld [vmem:[%s3816 + $0x58] sm:$0xff]
  %v3829 = vld [vmem:[%s3816 + $0x60] sm:$0xff]
  %v3830 = vld [vmem:[%s3816 + $0x68] sm:$0xff]
  %v3831 = vld [vmem:[%s3816 + $0x70] sm:$0xff]
  %v3832 = vld [vmem:[%s3816 + $0x78] sm:$0xff]
  %v3833 = vld [vmem:[%s3816 + $0x80] sm:$0xff]
  %v3834 = vld [vmem:[%s3816 + $0x88] sm:$0xff]
  %v3835 = vld [vmem:[%s3816 + $0x90] sm:$0xff]
  %v3836 = vld [vmem:[%s3816 + $0x98] sm:$0xff]
  %v3837 = vld [vmem:[%s3816 + $0xa0] sm:$0xff]
  %v3838 = vld [vmem:[%s3816 + $0xa8] sm:$0xff]
  %v3839 = vld [vmem:[%s3816 + $0xb0] sm:$0xff]
  %v3840 = vld [vmem:[%s3816 + $0xb8] sm:$0xff]
  %v3841 = vld [vmem:[%s3816 + $0xc0] sm:$0xff]
  %v3842 = vld [vmem:[%s3816 + $0xc8] sm:$0xff]
  %v3843 = vld [vmem:[%s3816 + $0xd0] sm:$0xff]
  %v3844 = vld [vmem:[%s3816 + $0xd8] sm:$0xff]
  %v3845 = vld [vmem:[%s3816 + $0xe0] sm:$0xff]
  %v3846 = vld [vmem:[%s3816 + $0xe8] sm:$0xff]
  %v3847 = vld [vmem:[%s3816 + $0xf0] sm:$0xff]
  %v3848 = vld [vmem:[%s3816 + $0xf8] sm:$0xff]
  %v3881 = vunpack.c.l.b16 %v3817
  %v3882 = vunpack.c.h.b16 %v3817
  %v3883 = vunpack.c.l.b16 %v3818
  %v3884 = vunpack.c.h.b16 %v3818
  %v3885 = vunpack.c.l.b16 %v3819
  %v3886 = vunpack.c.h.b16 %v3819
  %v3887 = vunpack.c.l.b16 %v3820
  %v3888 = vunpack.c.h.b16 %v3820
  %v3889 = vunpack.c.l.b16 %v3821
  %v3890 = vunpack.c.h.b16 %v3821
  %v3891 = vunpack.c.l.b16 %v3822
  %v3892 = vunpack.c.h.b16 %v3822
  %v3893 = vunpack.c.l.b16 %v3823
  %v3894 = vunpack.c.h.b16 %v3823
  %v3895 = vunpack.c.l.b16 %v3824
  %v3896 = vunpack.c.h.b16 %v3824
  %v3897 = vunpack.c.l.b16 %v3825
  %v3898 = vunpack.c.h.b16 %v3825
  %v3899 = vunpack.c.l.b16 %v3826
  %v3900 = vunpack.c.h.b16 %v3826
  %v3901 = vunpack.c.l.b16 %v3827
  %v3902 = vunpack.c.h.b16 %v3827
  %v3903 = vunpack.c.l.b16 %v3828
  %v3904 = vunpack.c.h.b16 %v3828
  %v3905 = vunpack.c.l.b16 %v3829
  %v3906 = vunpack.c.h.b16 %v3829
  %v3907 = vunpack.c.l.b16 %v3830
  %v3908 = vunpack.c.h.b16 %v3830
  %v3909 = vunpack.c.l.b16 %v3831
  %v3910 = vunpack.c.h.b16 %v3831
  %v3911 = vunpack.c.l.b16 %v3832
  %v3912 = vunpack.c.h.b16 %v3832
  %v3913 = vunpack.c.l.b16 %v3833
  %v3914 = vunpack.c.h.b16 %v3833
  %v3915 = vunpack.c.l.b16 %v3834
  %v3916 = vunpack.c.h.b16 %v3834
  %v3917 = vunpack.c.l.b16 %v3835
  %v3918 = vunpack.c.h.b16 %v3835
  %v3919 = vunpack.c.l.b16 %v3836
  %v3920 = vunpack.c.h.b16 %v3836
  %v3921 = vunpack.c.l.b16 %v3837
  %v3922 = vunpack.c.h.b16 %v3837
  %v3923 = vunpack.c.l.b16 %v3838
  %v3924 = vunpack.c.h.b16 %v3838
  %v3925 = vunpack.c.l.b16 %v3839
  %v3926 = vunpack.c.h.b16 %v3839
  %v3927 = vunpack.c.l.b16 %v3840
  %v3928 = vunpack.c.h.b16 %v3840
  %v3929 = vunpack.c.l.b16 %v3841
  %v3930 = vunpack.c.h.b16 %v3841
  %v3931 = vunpack.c.l.b16 %v3842
  %v3932 = vunpack.c.h.b16 %v3842
  %v3933 = vunpack.c.l.b16 %v3843
  %v3934 = vunpack.c.h.b16 %v3843
  %v3935 = vunpack.c.l.b16 %v3844
  %v3936 = vunpack.c.h.b16 %v3844
  %v3937 = vunpack.c.l.b16 %v3845
  %v3938 = vunpack.c.h.b16 %v3845
  %v3939 = vunpack.c.l.b16 %v3846
  %v3940 = vunpack.c.h.b16 %v3846
  %v3941 = vunpack.c.l.b16 %v3847
  %v3942 = vunpack.c.h.b16 %v3847
  %v3943 = vunpack.c.l.b16 %v3848
  %v3944 = vunpack.c.h.b16 %v3848
  %v3945 = vpack.c.b16 %v3883, %v3881
  %v3946 = vpack.c.b16 %v3884, %v3882
  %v3947 = vpack.c.b16 %v3887, %v3885
  %v3948 = vpack.c.b16 %v3888, %v3886
  %v3949 = vpack.c.b16 %v3891, %v3889
  %v3950 = vpack.c.b16 %v3892, %v3890
  %v3951 = vpack.c.b16 %v3895, %v3893
  %v3952 = vpack.c.b16 %v3896, %v3894
  %v3953 = vpack.c.b16 %v3899, %v3897
  %v3954 = vpack.c.b16 %v3900, %v3898
  %v3955 = vpack.c.b16 %v3903, %v3901
  %v3956 = vpack.c.b16 %v3904, %v3902
  %v3957 = vpack.c.b16 %v3907, %v3905
  %v3958 = vpack.c.b16 %v3908, %v3906
  %v3959 = vpack.c.b16 %v3911, %v3909
  %v3960 = vpack.c.b16 %v3912, %v3910
  %v3961 = vpack.c.b16 %v3915, %v3913
  %v3962 = vpack.c.b16 %v3916, %v3914
  %v3963 = vpack.c.b16 %v3919, %v3917
  %v3964 = vpack.c.b16 %v3920, %v3918
  %v3965 = vpack.c.b16 %v3923, %v3921
  %v3966 = vpack.c.b16 %v3924, %v3922
  %v3967 = vpack.c.b16 %v3927, %v3925
  %v3968 = vpack.c.b16 %v3928, %v3926
  %v3969 = vpack.c.b16 %v3931, %v3929
  %v3970 = vpack.c.b16 %v3932, %v3930
  %v3971 = vpack.c.b16 %v3935, %v3933
  %v3972 = vpack.c.b16 %v3936, %v3934
  %v3973 = vpack.c.b16 %v3939, %v3937
  %v3974 = vpack.c.b16 %v3940, %v3938
  %v3975 = vpack.c.b16 %v3943, %v3941
  %v3976 = vpack.c.b16 %v3944, %v3942
  %4009 = vmatprep.subr.bf16.mxu0 %v3946
  %4010 = vmatpush1.bf16.msra.mxu0 %v3945
  %4011 = vmatprep.subr.bf16.mxu0 %v3948
  %4012 = vmatpush1.bf16.msra.mxu0 %v3947
  %4013 = vmatprep.subr.bf16.mxu0 %v3950
  %4014 = vmatpush1.bf16.msra.mxu0 %v3949
  %4015 = vmatprep.subr.bf16.mxu0 %v3952
  %4016 = vmatpush1.bf16.msra.mxu0 %v3951
  %4017 = vmatprep.subr.bf16.mxu0 %v3954
  %4018 = vmatpush1.bf16.msra.mxu0 %v3953
  %4019 = vmatprep.subr.bf16.mxu0 %v3956
  %4020 = vmatpush1.bf16.msra.mxu0 %v3955
  %4021 = vmatprep.subr.bf16.mxu0 %v3958
  %4022 = vmatpush1.bf16.msra.mxu0 %v3957
  %4023 = vmatprep.subr.bf16.mxu0 %v3960
  %4024 = vmatpush1.bf16.msra.mxu0 %v3959
  %4025 = vmatprep.subr.bf16.mxu0 %v3962
  %4026 = vmatpush1.bf16.msra.mxu0 %v3961
  %4027 = vmatprep.subr.bf16.mxu0 %v3964
  %4028 = vmatpush1.bf16.msra.mxu0 %v3963
  %4029 = vmatprep.subr.bf16.mxu0 %v3966
  %4030 = vmatpush1.bf16.msra.mxu0 %v3965
  %4031 = vmatprep.subr.bf16.mxu0 %v3968
  %4032 = vmatpush1.bf16.msra.mxu0 %v3967
  %4033 = vmatprep.subr.bf16.mxu0 %v3970
  %4034 = vmatpush1.bf16.msra.mxu0 %v3969
  %4035 = vmatprep.subr.bf16.mxu0 %v3972
  %4036 = vmatpush1.bf16.msra.mxu0 %v3971
  %4037 = vmatprep.subr.bf16.mxu0 %v3974
  %4038 = vmatpush1.bf16.msra.mxu0 %v3973
  %4039 = vmatprep.subr.bf16.mxu0 %v3976
  %4040 = vmatpush1.bf16.msra.mxu0 %v3975
  %4041 = vmatprep.mubr.bf16.mxu0 %v3178
  %4042 = vmatmul.mubr.bf16.gmra.mrb[0].mxu0 %v3177
  %v4043 = vpop.f32.mrb[0].mxu0
  %v4044 = vadd.f32 0.0, %v4043
  %v4045 = vpop.f32.mrb[0].mxu0
  %v4046 = vadd.f32 0.0, %v4045
  %v4047 = vpop.f32.mrb[0].mxu0
  %v4048 = vadd.f32 0.0, %v4047
  %v4049 = vpop.f32.mrb[0].mxu0
  %v4050 = vadd.f32 0.0, %v4049
  %4051 = vmatprep.mubr.bf16.mxu0 %v3180
  %4052 = vmatmul.mubr.bf16.gmra.mrb[0].mxu0 %v3179
  %v4053 = vpop.f32.mrb[0].mxu0
  %v4054 = vadd.f32 0.0, %v4053
  %v4055 = vpop.f32.mrb[0].mxu0
  %v4056 = vadd.f32 0.0, %v4055
  %v4057 = vpop.f32.mrb[0].mxu0
  %v4058 = vadd.f32 0.0, %v4057
  %v4059 = vpop.f32.mrb[0].mxu0
  %v4060 = vadd.f32 0.0, %v4059
  %4061 = vmatprep.mubr.bf16.mxu0 %v3182
  %4062 = vmatmul.mubr.bf16.gmra.mrb[0].mxu0 %v3181
  %v4063 = vpop.f32.mrb[0].mxu0
  %v4064 = vadd.f32 0.0, %v4063
  %v4065 = vpop.f32.mrb[0].mxu0
  %v4066 = vadd.f32 0.0, %v4065
  %v4067 = vpop.f32.mrb[0].mxu0
  %v4068 = vadd.f32 0.0, %v4067
  %v4069 = vpop.f32.mrb[0].mxu0
  %v4070 = vadd.f32 0.0, %v4069
  %4071 = vmatprep.mubr.bf16.mxu0 %v3184
  %4072 = vmatmul.mubr.bf16.gmra.mrb[0].mxu0 %v3183
  %v4073 = vpop.f32.mrb[0].mxu0
  %v4074 = vadd.f32 0.0, %v4073
  %v4075 = vpop.f32.mrb[0].mxu0
  %v4076 = vadd.f32 0.0, %v4075
  %v4077 = vpop.f32.mrb[0].mxu0
  %v4078 = vadd.f32 0.0, %v4077
  %v4079 = vpop.f32.mrb[0].mxu0
  %v4080 = vadd.f32 0.0, %v4079
  %4081 = vmatprep.mubr.bf16.mxu0 %v3186
  %4082 = vmatmul.mubr.bf16.gmra.mrb[0].mxu0 %v3185
  %v4083 = vpop.f32.mrb[0].mxu0
  %v4084 = vadd.f32 0.0, %v4083
  %v4085 = vpop.f32.mrb[0].mxu0
  %v4086 = vadd.f32 0.0, %v4085
  %v4087 = vpop.f32.mrb[0].mxu0
  %v4088 = vadd.f32 0.0, %v4087
  %v4089 = vpop.f32.mrb[0].mxu0
  %v4090 = vadd.f32 0.0, %v4089
  %4091 = vmatprep.mubr.bf16.mxu0 %v3188
  %4092 = vmatmul.mubr.bf16.gmra.mrb[0].mxu0 %v3187
  %v4093 = vpop.f32.mrb[0].mxu0
  %v4094 = vadd.f32 0.0, %v4093
  %v4095 = vpop.f32.mrb[0].mxu0
  %v4096 = vadd.f32 0.0, %v4095
  %v4097 = vpop.f32.mrb[0].mxu0
  %v4098 = vadd.f32 0.0, %v4097
  %v4099 = vpop.f32.mrb[0].mxu0
  %v4100 = vadd.f32 0.0, %v4099
  %4101 = vmatprep.mubr.bf16.mxu0 %v3190
  %4102 = vmatmul.mubr.bf16.gmra.mrb[0].mxu0 %v3189
  %v4103 = vpop.f32.mrb[0].mxu0
  %v4104 = vadd.f32 0.0, %v4103
  %v4105 = vpop.f32.mrb[0].mxu0
  %v4106 = vadd.f32 0.0, %v4105
  %v4107 = vpop.f32.mrb[0].mxu0
  %v4108 = vadd.f32 0.0, %v4107
  %v4109 = vpop.f32.mrb[0].mxu0
  %v4110 = vadd.f32 0.0, %v4109
  %4111 = vmatprep.mubr.bf16.mxu0 %v3192
  %4112 = vmatmul.mubr.bf16.gmra.mrb[0].mxu0 %v3191
  %v4113 = vpop.f32.mrb[0].mxu0
  %v4114 = vadd.f32 0.0, %v4113
  %v4115 = vpop.f32.mrb[0].mxu0
  %v4116 = vadd.f32 0.0, %v4115
  %v4117 = vpop.f32.mrb[0].mxu0
  %v4118 = vadd.f32 0.0, %v4117
  %v4119 = vpop.f32.mrb[0].mxu0
  %v4120 = vadd.f32 0.0, %v4119
  %4121 = vdwg.mxu0
  %v4122 = vadd.f32 %v3784, %v4044
  %v4123 = vadd.f32 %v3785, %v4046
  %v4124 = vadd.f32 %v3786, %v4048
  %v4125 = vadd.f32 %v3787, %v4050
  %v4126 = vadd.f32 %v3788, %v4054
  %v4127 = vadd.f32 %v3789, %v4056
  %v4128 = vadd.f32 %v3790, %v4058
  %v4129 = vadd.f32 %v3791, %v4060
  %v4130 = vadd.f32 %v3792, %v4064
  %v4131 = vadd.f32 %v3793, %v4066
  %v4132 = vadd.f32 %v3794, %v4068
  %v4133 = vadd.f32 %v3795, %v4070
  %v4134 = vadd.f32 %v3796, %v4074
  %v4135 = vadd.f32 %v3797, %v4076
  %v4136 = vadd.f32 %v3798, %v4078
  %v4137 = vadd.f32 %v3799, %v4080
  %v4138 = vadd.f32 %v3800, %v4084
  %v4139 = vadd.f32 %v3801, %v4086
  %v4140 = vadd.f32 %v3802, %v4088
  %v4141 = vadd.f32 %v3803, %v4090
  %v4142 = vadd.f32 %v3804, %v4094
  %v4143 = vadd.f32 %v3805, %v4096
  %v4144 = vadd.f32 %v3806, %v4098
  %v4145 = vadd.f32 %v3807, %v4100
  %v4146 = vadd.f32 %v3808, %v4104
  %v4147 = vadd.f32 %v3809, %v4106
  %v4148 = vadd.f32 %v3810, %v4108
  %v4149 = vadd.f32 %v3811, %v4110
  %v4150 = vadd.f32 %v3812, %v4114
  %v4151 = vadd.f32 %v3813, %v4116
  %v4152 = vadd.f32 %v3814, %v4118
  %v4153 = vadd.f32 %v3815, %v4120
  %4154 = vst [vmem:[#allocation2] sm:$0xff] %v4122
  %4155 = vst [vmem:[#allocation2 + $0x8] sm:$0xff] %v4123
  %4156 = vst [vmem:[#allocation2 + $0x10] sm:$0xff] %v4124
  %4157 = vst [vmem:[#allocation2 + $0x18] sm:$0xff] %v4125
  %4158 = vst [vmem:[#allocation2 + $0x20] sm:$0xff] %v4126
  %4159 = vst [vmem:[#allocation2 + $0x28] sm:$0xff] %v4127
  %4160 = vst [vmem:[#allocation2 + $0x30] sm:$0xff] %v4128
  %4161 = vst [vmem:[#allocation2 + $0x38] sm:$0xff] %v4129
  %4162 = vst [vmem:[#allocation2 + $0x40] sm:$0xff] %v4130
  %4163 = vst [vmem:[#allocation2 + $0x48] sm:$0xff] %v4131
  %4164 = vst [vmem:[#allocation2 + $0x50] sm:$0xff] %v4132
  %4165 = vst [vmem:[#allocation2 + $0x58] sm:$0xff] %v4133
  %4166 = vst [vmem:[#allocation2 + $0x60] sm:$0xff] %v4134
  %4167 = vst [vmem:[#allocation2 + $0x68] sm:$0xff] %v4135
  %4168 = vst [vmem:[#allocation2 + $0x70] sm:$0xff] %v4136
  %4169 = vst [vmem:[#allocation2 + $0x78] sm:$0xff] %v4137
  %4170 = vst [vmem:[#allocation2 + $0x80] sm:$0xff] %v4138
  %4171 = vst [vmem:[#allocation2 + $0x88] sm:$0xff] %v4139
  %4172 = vst [vmem:[#allocation2 + $0x90] sm:$0xff] %v4140
  %4173 = vst [vmem:[#allocation2 + $0x98] sm:$0xff] %v4141
  %4174 = vst [vmem:[#allocation2 + $0xa0] sm:$0xff] %v4142
  %4175 = vst [vmem:[#allocation2 + $0xa8] sm:$0xff] %v4143
  %4176 = vst [vmem:[#allocation2 + $0xb0] sm:$0xff] %v4144
  %4177 = vst [vmem:[#allocation2 + $0xb8] sm:$0xff] %v4145
  %4178 = vst [vmem:[#allocation2 + $0xc0] sm:$0xff] %v4146
  %4179 = vst [vmem:[#allocation2 + $0xc8] sm:$0xff] %v4147
  %4180 = vst [vmem:[#allocation2 + $0xd0] sm:$0xff] %v4148
  %4181 = vst [vmem:[#allocation2 + $0xd8] sm:$0xff] %v4149
  %4182 = vst [vmem:[#allocation2 + $0xe0] sm:$0xff] %v4150
  %4183 = vst [vmem:[#allocation2 + $0xe8] sm:$0xff] %v4151
  %4184 = vst [vmem:[#allocation2 + $0xf0] sm:$0xff] %v4152
  %4185 = vst [vmem:[#allocation2 + $0xf8] sm:$0xff] %v4153
  %v4186 = vld [vmem:[#allocation2] sm:$0xff]
  %v4187 = vld [vmem:[#allocation2 + $0x8] sm:$0xff]
  %v4188 = vld [vmem:[#allocation2 + $0x10] sm:$0xff]
  %v4189 = vld [vmem:[#allocation2 + $0x18] sm:$0xff]
  %v4190 = vld [vmem:[#allocation2 + $0x20] sm:$0xff]
  %v4191 = vld [vmem:[#allocation2 + $0x28] sm:$0xff]
  %v4192 = vld [vmem:[#allocation2 + $0x30] sm:$0xff]
  %v4193 = vld [vmem:[#allocation2 + $0x38] sm:$0xff]
  %v4194 = vld [vmem:[#allocation2 + $0x40] sm:$0xff]
  %v4195 = vld [vmem:[#allocation2 + $0x48] sm:$0xff]
  %v4196 = vld [vmem:[#allocation2 + $0x50] sm:$0xff]
  %v4197 = vld [vmem:[#allocation2 + $0x58] sm:$0xff]
  %v4198 = vld [vmem:[#allocation2 + $0x60] sm:$0xff]
  %v4199 = vld [vmem:[#allocation2 + $0x68] sm:$0xff]
  %v4200 = vld [vmem:[#allocation2 + $0x70] sm:$0xff]
  %v4201 = vld [vmem:[#allocation2 + $0x78] sm:$0xff]
  %v4202 = vld [vmem:[#allocation2 + $0x80] sm:$0xff]
  %v4203 = vld [vmem:[#allocation2 + $0x88] sm:$0xff]
  %v4204 = vld [vmem:[#allocation2 + $0x90] sm:$0xff]
  %v4205 = vld [vmem:[#allocation2 + $0x98] sm:$0xff]
  %v4206 = vld [vmem:[#allocation2 + $0xa0] sm:$0xff]
  %v4207 = vld [vmem:[#allocation2 + $0xa8] sm:$0xff]
  %v4208 = vld [vmem:[#allocation2 + $0xb0] sm:$0xff]
  %v4209 = vld [vmem:[#allocation2 + $0xb8] sm:$0xff]
  %v4210 = vld [vmem:[#allocation2 + $0xc0] sm:$0xff]
  %v4211 = vld [vmem:[#allocation2 + $0xc8] sm:$0xff]
  %v4212 = vld [vmem:[#allocation2 + $0xd0] sm:$0xff]
  %v4213 = vld [vmem:[#allocation2 + $0xd8] sm:$0xff]
  %v4214 = vld [vmem:[#allocation2 + $0xe0] sm:$0xff]
  %v4215 = vld [vmem:[#allocation2 + $0xe8] sm:$0xff]
  %v4216 = vld [vmem:[#allocation2 + $0xf0] sm:$0xff]
  %v4217 = vld [vmem:[#allocation2 + $0xf8] sm:$0xff]
  %v4218 = vrot.slane %v3274, 1
  %v4219 = vor.u32 %v3271, %v4218
  %v4220 = vrot.slane %v3281, 1
  %v4221 = vor.u32 %v3278, %v4220
  %v4222 = vrot.slane %v3288, 1
  %v4223 = vor.u32 %v3285, %v4222
  %v4224 = vrot.slane %v3295, 1
  %v4225 = vor.u32 %v3292, %v4224
  %v4226 = vrot.slane %v3302, 1
  %v4227 = vor.u32 %v3299, %v4226
  %v4228 = vrot.slane %v3309, 1
  %v4229 = vor.u32 %v3306, %v4228
  %v4230 = vrot.slane %v3316, 1
  %v4231 = vor.u32 %v3313, %v4230
  %v4232 = vrot.slane %v3323, 1
  %v4233 = vor.u32 %v3320, %v4232
  %v4234 = vrot.slane %v3330, 1
  %v4235 = vor.u32 %v3327, %v4234
  %v4236 = vrot.slane %v3337, 1
  %v4237 = vor.u32 %v3334, %v4236
  %v4238 = vrot.slane %v3344, 1
  %v4239 = vor.u32 %v3341, %v4238
  %v4240 = vrot.slane %v3351, 1
  %v4241 = vor.u32 %v3348, %v4240
  %v4242 = vrot.slane %v3358, 1
  %v4243 = vor.u32 %v3355, %v4242
  %v4244 = vrot.slane %v3365, 1
  %v4245 = vor.u32 %v3362, %v4244
  %v4246 = vrot.slane %v3372, 1
  %v4247 = vor.u32 %v3369, %v4246
  %v4248 = vrot.slane %v3379, 1
  %v4249 = vor.u32 %v3376, %v4248
  %v4266 = vsel %vm1187, %v4219, 0
  %v4267 = vsel %vm1187, %v4221, 0
  %v4268 = vsel %vm1187, %v4223, 0
  %v4269 = vsel %vm1187, %v4225, 0
  %v4270 = vsel %vm1187, %v4227, 0
  %v4271 = vsel %vm1187, %v4229, 0
  %v4272 = vsel %vm1187, %v4231, 0
  %v4273 = vsel %vm1187, %v4233, 0
  %v4274 = vsel %vm1187, %v4235, 0
  %v4275 = vsel %vm1187, %v4237, 0
  %v4276 = vsel %vm1187, %v4239, 0
  %v4277 = vsel %vm1187, %v4241, 0
  %v4278 = vsel %vm1187, %v4243, 0
  %v4279 = vsel %vm1187, %v4245, 0
  %v4280 = vsel %vm1187, %v4247, 0
  %v4281 = vsel %vm1187, %v4249, 0
  %s4282 = scalar_lea.vmem %s1, 2048
  %v4283 = vld [vmem:[%s4282] sm:$0xff]
  %v4284 = vld [vmem:[%s4282 + $0x8] sm:$0xff]
  %v4285 = vld [vmem:[%s4282 + $0x10] sm:$0xff]
  %v4286 = vld [vmem:[%s4282 + $0x18] sm:$0xff]
  %v4287 = vld [vmem:[%s4282 + $0x20] sm:$0xff]
  %v4288 = vld [vmem:[%s4282 + $0x28] sm:$0xff]
  %v4289 = vld [vmem:[%s4282 + $0x30] sm:$0xff]
  %v4290 = vld [vmem:[%s4282 + $0x38] sm:$0xff]
  %v4291 = vld [vmem:[%s4282 + $0x40] sm:$0xff]
  %v4292 = vld [vmem:[%s4282 + $0x48] sm:$0xff]
  %v4293 = vld [vmem:[%s4282 + $0x50] sm:$0xff]
  %v4294 = vld [vmem:[%s4282 + $0x58] sm:$0xff]
  %v4295 = vld [vmem:[%s4282 + $0x60] sm:$0xff]
  %v4296 = vld [vmem:[%s4282 + $0x68] sm:$0xff]
  %v4297 = vld [vmem:[%s4282 + $0x70] sm:$0xff]
  %v4298 = vld [vmem:[%s4282 + $0x78] sm:$0xff]
  %v4299 = vld [vmem:[%s4282 + $0x80] sm:$0xff]
  %v4300 = vld [vmem:[%s4282 + $0x88] sm:$0xff]
  %v4301 = vld [vmem:[%s4282 + $0x90] sm:$0xff]
  %v4302 = vld [vmem:[%s4282 + $0x98] sm:$0xff]
  %v4303 = vld [vmem:[%s4282 + $0xa0] sm:$0xff]
  %v4304 = vld [vmem:[%s4282 + $0xa8] sm:$0xff]
  %v4305 = vld [vmem:[%s4282 + $0xb0] sm:$0xff]
  %v4306 = vld [vmem:[%s4282 + $0xb8] sm:$0xff]
  %v4307 = vld [vmem:[%s4282 + $0xc0] sm:$0xff]
  %v4308 = vld [vmem:[%s4282 + $0xc8] sm:$0xff]
  %v4309 = vld [vmem:[%s4282 + $0xd0] sm:$0xff]
  %v4310 = vld [vmem:[%s4282 + $0xd8] sm:$0xff]
  %v4311 = vld [vmem:[%s4282 + $0xe0] sm:$0xff]
  %v4312 = vld [vmem:[%s4282 + $0xe8] sm:$0xff]
  %v4313 = vld [vmem:[%s4282 + $0xf0] sm:$0xff]
  %v4314 = vld [vmem:[%s4282 + $0xf8] sm:$0xff]
  %v4347 = vunpack.c.l.b16 %v4283
  %v4348 = vunpack.c.h.b16 %v4283
  %v4349 = vunpack.c.l.b16 %v4284
  %v4350 = vunpack.c.h.b16 %v4284
  %v4351 = vunpack.c.l.b16 %v4285
  %v4352 = vunpack.c.h.b16 %v4285
  %v4353 = vunpack.c.l.b16 %v4286
  %v4354 = vunpack.c.h.b16 %v4286
  %v4355 = vunpack.c.l.b16 %v4287
  %v4356 = vunpack.c.h.b16 %v4287
  %v4357 = vunpack.c.l.b16 %v4288
  %v4358 = vunpack.c.h.b16 %v4288
  %v4359 = vunpack.c.l.b16 %v4289
  %v4360 = vunpack.c.h.b16 %v4289
  %v4361 = vunpack.c.l.b16 %v4290
  %v4362 = vunpack.c.h.b16 %v4290
  %v4363 = vunpack.c.l.b16 %v4291
  %v4364 = vunpack.c.h.b16 %v4291
  %v4365 = vunpack.c.l.b16 %v4292
  %v4366 = vunpack.c.h.b16 %v4292
  %v4367 = vunpack.c.l.b16 %v4293
  %v4368 = vunpack.c.h.b16 %v4293
  %v4369 = vunpack.c.l.b16 %v4294
  %v4370 = vunpack.c.h.b16 %v4294
  %v4371 = vunpack.c.l.b16 %v4295
  %v4372 = vunpack.c.h.b16 %v4295
  %v4373 = vunpack.c.l.b16 %v4296
  %v4374 = vunpack.c.h.b16 %v4296
  %v4375 = vunpack.c.l.b16 %v4297
  %v4376 = vunpack.c.h.b16 %v4297
  %v4377 = vunpack.c.l.b16 %v4298
  %v4378 = vunpack.c.h.b16 %v4298
  %v4379 = vunpack.c.l.b16 %v4299
  %v4380 = vunpack.c.h.b16 %v4299
  %v4381 = vunpack.c.l.b16 %v4300
  %v4382 = vunpack.c.h.b16 %v4300
  %v4383 = vunpack.c.l.b16 %v4301
  %v4384 = vunpack.c.h.b16 %v4301
  %v4385 = vunpack.c.l.b16 %v4302
  %v4386 = vunpack.c.h.b16 %v4302
  %v4387 = vunpack.c.l.b16 %v4303
  %v4388 = vunpack.c.h.b16 %v4303
  %v4389 = vunpack.c.l.b16 %v4304
  %v4390 = vunpack.c.h.b16 %v4304
  %v4391 = vunpack.c.l.b16 %v4305
  %v4392 = vunpack.c.h.b16 %v4305
  %v4393 = vunpack.c.l.b16 %v4306
  %v4394 = vunpack.c.h.b16 %v4306
  %v4395 = vunpack.c.l.b16 %v4307
  %v4396 = vunpack.c.h.b16 %v4307
  %v4397 = vunpack.c.l.b16 %v4308
  %v4398 = vunpack.c.h.b16 %v4308
  %v4399 = vunpack.c.l.b16 %v4309
  %v4400 = vunpack.c.h.b16 %v4309
  %v4401 = vunpack.c.l.b16 %v4310
  %v4402 = vunpack.c.h.b16 %v4310
  %v4403 = vunpack.c.l.b16 %v4311
  %v4404 = vunpack.c.h.b16 %v4311
  %v4405 = vunpack.c.l.b16 %v4312
  %v4406 = vunpack.c.h.b16 %v4312
  %v4407 = vunpack.c.l.b16 %v4313
  %v4408 = vunpack.c.h.b16 %v4313
  %v4409 = vunpack.c.l.b16 %v4314
  %v4410 = vunpack.c.h.b16 %v4314
  %v4411 = vpack.c.b16 %v4349, %v4347
  %v4412 = vpack.c.b16 %v4350, %v4348
  %v4413 = vpack.c.b16 %v4353, %v4351
  %v4414 = vpack.c.b16 %v4354, %v4352
  %v4415 = vpack.c.b16 %v4357, %v4355
  %v4416 = vpack.c.b16 %v4358, %v4356
  %v4417 = vpack.c.b16 %v4361, %v4359
  %v4418 = vpack.c.b16 %v4362, %v4360
  %v4419 = vpack.c.b16 %v4365, %v4363
  %v4420 = vpack.c.b16 %v4366, %v4364
  %v4421 = vpack.c.b16 %v4369, %v4367
  %v4422 = vpack.c.b16 %v4370, %v4368
  %v4423 = vpack.c.b16 %v4373, %v4371
  %v4424 = vpack.c.b16 %v4374, %v4372
  %v4425 = vpack.c.b16 %v4377, %v4375
  %v4426 = vpack.c.b16 %v4378, %v4376
  %v4427 = vpack.c.b16 %v4381, %v4379
  %v4428 = vpack.c.b16 %v4382, %v4380
  %v4429 = vpack.c.b16 %v4385, %v4383
  %v4430 = vpack.c.b16 %v4386, %v4384
  %v4431 = vpack.c.b16 %v4389, %v4387
  %v4432 = vpack.c.b16 %v4390, %v4388
  %v4433 = vpack.c.b16 %v4393, %v4391
  %v4434 = vpack.c.b16 %v4394, %v4392
  %v4435 = vpack.c.b16 %v4397, %v4395
  %v4436 = vpack.c.b16 %v4398, %v4396
  %v4437 = vpack.c.b16 %v4401, %v4399
  %v4438 = vpack.c.b16 %v4402, %v4400
  %v4439 = vpack.c.b16 %v4405, %v4403
  %v4440 = vpack.c.b16 %v4406, %v4404
  %v4441 = vpack.c.b16 %v4409, %v4407
  %v4442 = vpack.c.b16 %v4410, %v4408
  %4475 = vmatprep.subr.bf16.mxu0 %v4412
  %4476 = vmatpush1.bf16.msra.mxu0 %v4411
  %4477 = vmatprep.subr.bf16.mxu0 %v4414
  %4478 = vmatpush1.bf16.msra.mxu0 %v4413
  %4479 = vmatprep.subr.bf16.mxu0 %v4416
  %4480 = vmatpush1.bf16.msra.mxu0 %v4415
  %4481 = vmatprep.subr.bf16.mxu0 %v4418
  %4482 = vmatpush1.bf16.msra.mxu0 %v4417
  %4483 = vmatprep.subr.bf16.mxu0 %v4420
  %4484 = vmatpush1.bf16.msra.mxu0 %v4419
  %4485 = vmatprep.subr.bf16.mxu0 %v4422
  %4486 = vmatpush1.bf16.msra.mxu0 %v4421
  %4487 = vmatprep.subr.bf16.mxu0 %v4424
  %4488 = vmatpush1.bf16.msra.mxu0 %v4423
  %4489 = vmatprep.subr.bf16.mxu0 %v4426
  %4490 = vmatpush1.bf16.msra.mxu0 %v4425
  %4491 = vmatprep.subr.bf16.mxu0 %v4428
  %4492 = vmatpush1.bf16.msra.mxu0 %v4427
  %4493 = vmatprep.subr.bf16.mxu0 %v4430
  %4494 = vmatpush1.bf16.msra.mxu0 %v4429
  %4495 = vmatprep.subr.bf16.mxu0 %v4432
  %4496 = vmatpush1.bf16.msra.mxu0 %v4431
  %4497 = vmatprep.subr.bf16.mxu0 %v4434
  %4498 = vmatpush1.bf16.msra.mxu0 %v4433
  %4499 = vmatprep.subr.bf16.mxu0 %v4436
  %4500 = vmatpush1.bf16.msra.mxu0 %v4435
  %4501 = vmatprep.subr.bf16.mxu0 %v4438
  %4502 = vmatpush1.bf16.msra.mxu0 %v4437
  %4503 = vmatprep.subr.bf16.mxu0 %v4440
  %4504 = vmatpush1.bf16.msra.mxu0 %v4439
  %4505 = vmatprep.subr.bf16.mxu0 %v4442
  %4506 = vmatpush1.bf16.msra.mxu0 %v4441
  %4507 = vmatprep.mubr.bf16.mxu0 %v4267
  %4508 = vmatmul.mubr.bf16.gmra.mrb[0].mxu0 %v4266
  %v4509 = vpop.f32.mrb[0].mxu0
  %v4510 = vadd.f32 0.0, %v4509
  %v4511 = vpop.f32.mrb[0].mxu0
  %v4512 = vadd.f32 0.0, %v4511
  %v4513 = vpop.f32.mrb[0].mxu0
  %v4514 = vadd.f32 0.0, %v4513
  %v4515 = vpop.f32.mrb[0].mxu0
  %v4516 = vadd.f32 0.0, %v4515
  %4517 = vmatprep.mubr.bf16.mxu0 %v4269
  %4518 = vmatmul.mubr.bf16.gmra.mrb[0].mxu0 %v4268
  %v4519 = vpop.f32.mrb[0].mxu0
  %v4520 = vadd.f32 0.0, %v4519
  %v4521 = vpop.f32.mrb[0].mxu0
  %v4522 = vadd.f32 0.0, %v4521
  %v4523 = vpop.f32.mrb[0].mxu0
  %v4524 = vadd.f32 0.0, %v4523
  %v4525 = vpop.f32.mrb[0].mxu0
  %v4526 = vadd.f32 0.0, %v4525
  %4527 = vmatprep.mubr.bf16.mxu0 %v4271
  %4528 = vmatmul.mubr.bf16.gmra.mrb[0].mxu0 %v4270
  %v4529 = vpop.f32.mrb[0].mxu0
  %v4530 = vadd.f32 0.0, %v4529
  %v4531 = vpop.f32.mrb[0].mxu0
  %v4532 = vadd.f32 0.0, %v4531
  %v4533 = vpop.f32.mrb[0].mxu0
  %v4534 = vadd.f32 0.0, %v4533
  %v4535 = vpop.f32.mrb[0].mxu0
  %v4536 = vadd.f32 0.0, %v4535
  %4537 = vmatprep.mubr.bf16.mxu0 %v4273
  %4538 = vmatmul.mubr.bf16.gmra.mrb[0].mxu0 %v4272
  %v4539 = vpop.f32.mrb[0].mxu0
  %v4540 = vadd.f32 0.0, %v4539
  %v4541 = vpop.f32.mrb[0].mxu0
  %v4542 = vadd.f32 0.0, %v4541
  %v4543 = vpop.f32.mrb[0].mxu0
  %v4544 = vadd.f32 0.0, %v4543
  %v4545 = vpop.f32.mrb[0].mxu0
  %v4546 = vadd.f32 0.0, %v4545
  %4547 = vmatprep.mubr.bf16.mxu0 %v4275
  %4548 = vmatmul.mubr.bf16.gmra.mrb[0].mxu0 %v4274
  %v4549 = vpop.f32.mrb[0].mxu0
  %v4550 = vadd.f32 0.0, %v4549
  %v4551 = vpop.f32.mrb[0].mxu0
  %v4552 = vadd.f32 0.0, %v4551
  %v4553 = vpop.f32.mrb[0].mxu0
  %v4554 = vadd.f32 0.0, %v4553
  %v4555 = vpop.f32.mrb[0].mxu0
  %v4556 = vadd.f32 0.0, %v4555
  %4557 = vmatprep.mubr.bf16.mxu0 %v4277
  %4558 = vmatmul.mubr.bf16.gmra.mrb[0].mxu0 %v4276
  %v4559 = vpop.f32.mrb[0].mxu0
  %v4560 = vadd.f32 0.0, %v4559
  %v4561 = vpop.f32.mrb[0].mxu0
  %v4562 = vadd.f32 0.0, %v4561
  %v4563 = vpop.f32.mrb[0].mxu0
  %v4564 = vadd.f32 0.0, %v4563
  %v4565 = vpop.f32.mrb[0].mxu0
  %v4566 = vadd.f32 0.0, %v4565
  %4567 = vmatprep.mubr.bf16.mxu0 %v4279
  %4568 = vmatmul.mubr.bf16.gmra.mrb[0].mxu0 %v4278
  %v4569 = vpop.f32.mrb[0].mxu0
  %v4570 = vadd.f32 0.0, %v4569
  %v4571 = vpop.f32.mrb[0].mxu0
  %v4572 = vadd.f32 0.0, %v4571
  %v4573 = vpop.f32.mrb[0].mxu0
  %v4574 = vadd.f32 0.0, %v4573
  %v4575 = vpop.f32.mrb[0].mxu0
  %v4576 = vadd.f32 0.0, %v4575
  %4577 = vmatprep.mubr.bf16.mxu0 %v4281
  %4578 = vmatmul.mubr.bf16.gmra.mrb[0].mxu0 %v4280
  %v4579 = vpop.f32.mrb[0].mxu0
  %v4580 = vadd.f32 0.0, %v4579
  %v4581 = vpop.f32.mrb[0].mxu0
  %v4582 = vadd.f32 0.0, %v4581
  %v4583 = vpop.f32.mrb[0].mxu0
  %v4584 = vadd.f32 0.0, %v4583
  %v4585 = vpop.f32.mrb[0].mxu0
  %v4586 = vadd.f32 0.0, %v4585
  %4587 = vdwg.mxu0
  %v4588 = vadd.f32 %v4186, %v4510
  %v4589 = vadd.f32 %v4187, %v4512
  %v4590 = vadd.f32 %v4188, %v4514
  %v4591 = vadd.f32 %v4189, %v4516
  %v4592 = vadd.f32 %v4190, %v4520
  %v4593 = vadd.f32 %v4191, %v4522
  %v4594 = vadd.f32 %v4192, %v4524
  %v4595 = vadd.f32 %v4193, %v4526
  %v4596 = vadd.f32 %v4194, %v4530
  %v4597 = vadd.f32 %v4195, %v4532
  %v4598 = vadd.f32 %v4196, %v4534
  %v4599 = vadd.f32 %v4197, %v4536
  %v4600 = vadd.f32 %v4198, %v4540
  %v4601 = vadd.f32 %v4199, %v4542
  %v4602 = vadd.f32 %v4200, %v4544
  %v4603 = vadd.f32 %v4201, %v4546
  %v4604 = vadd.f32 %v4202, %v4550
  %v4605 = vadd.f32 %v4203, %v4552
  %v4606 = vadd.f32 %v4204, %v4554
  %v4607 = vadd.f32 %v4205, %v4556
  %v4608 = vadd.f32 %v4206, %v4560
  %v4609 = vadd.f32 %v4207, %v4562
  %v4610 = vadd.f32 %v4208, %v4564
  %v4611 = vadd.f32 %v4209, %v4566
  %v4612 = vadd.f32 %v4210, %v4570
  %v4613 = vadd.f32 %v4211, %v4572
  %v4614 = vadd.f32 %v4212, %v4574
  %v4615 = vadd.f32 %v4213, %v4576
  %v4616 = vadd.f32 %v4214, %v4580
  %v4617 = vadd.f32 %v4215, %v4582
  %v4618 = vadd.f32 %v4216, %v4584
  %v4619 = vadd.f32 %v4217, %v4586
  %4620 = vst [vmem:[#allocation2] sm:$0xff] %v4588
  %4621 = vst [vmem:[#allocation2 + $0x8] sm:$0xff] %v4589
  %4622 = vst [vmem:[#allocation2 + $0x10] sm:$0xff] %v4590
  %4623 = vst [vmem:[#allocation2 + $0x18] sm:$0xff] %v4591
  %4624 = vst [vmem:[#allocation2 + $0x20] sm:$0xff] %v4592
  %4625 = vst [vmem:[#allocation2 + $0x28] sm:$0xff] %v4593
  %4626 = vst [vmem:[#allocation2 + $0x30] sm:$0xff] %v4594
  %4627 = vst [vmem:[#allocation2 + $0x38] sm:$0xff] %v4595
  %4628 = vst [vmem:[#allocation2 + $0x40] sm:$0xff] %v4596
  %4629 = vst [vmem:[#allocation2 + $0x48] sm:$0xff] %v4597
  %4630 = vst [vmem:[#allocation2 + $0x50] sm:$0xff] %v4598
  %4631 = vst [vmem:[#allocation2 + $0x58] sm:$0xff] %v4599
  %4632 = vst [vmem:[#allocation2 + $0x60] sm:$0xff] %v4600
  %4633 = vst [vmem:[#allocation2 + $0x68] sm:$0xff] %v4601
  %4634 = vst [vmem:[#allocation2 + $0x70] sm:$0xff] %v4602
  %4635 = vst [vmem:[#allocation2 + $0x78] sm:$0xff] %v4603
  %4636 = vst [vmem:[#allocation2 + $0x80] sm:$0xff] %v4604
  %4637 = vst [vmem:[#allocation2 + $0x88] sm:$0xff] %v4605
  %4638 = vst [vmem:[#allocation2 + $0x90] sm:$0xff] %v4606
  %4639 = vst [vmem:[#allocation2 + $0x98] sm:$0xff] %v4607
  %4640 = vst [vmem:[#allocation2 + $0xa0] sm:$0xff] %v4608
  %4641 = vst [vmem:[#allocation2 + $0xa8] sm:$0xff] %v4609
  %4642 = vst [vmem:[#allocation2 + $0xb0] sm:$0xff] %v4610
  %4643 = vst [vmem:[#allocation2 + $0xb8] sm:$0xff] %v4611
  %4644 = vst [vmem:[#allocation2 + $0xc0] sm:$0xff] %v4612
  %4645 = vst [vmem:[#allocation2 + $0xc8] sm:$0xff] %v4613
  %4646 = vst [vmem:[#allocation2 + $0xd0] sm:$0xff] %v4614
  %4647 = vst [vmem:[#allocation2 + $0xd8] sm:$0xff] %v4615
  %4648 = vst [vmem:[#allocation2 + $0xe0] sm:$0xff] %v4616
  %4649 = vst [vmem:[#allocation2 + $0xe8] sm:$0xff] %v4617
  %4650 = vst [vmem:[#allocation2 + $0xf0] sm:$0xff] %v4618
  %4651 = vst [vmem:[#allocation2 + $0xf8] sm:$0xff] %v4619
  %v4652 = vld [vmem:[#allocation2] sm:$0xff]
  %v4653 = vld [vmem:[#allocation2 + $0x8] sm:$0xff]
  %v4654 = vld [vmem:[#allocation2 + $0x10] sm:$0xff]
  %v4655 = vld [vmem:[#allocation2 + $0x18] sm:$0xff]
  %v4656 = vld [vmem:[#allocation2 + $0x20] sm:$0xff]
  %v4657 = vld [vmem:[#allocation2 + $0x28] sm:$0xff]
  %v4658 = vld [vmem:[#allocation2 + $0x30] sm:$0xff]
  %v4659 = vld [vmem:[#allocation2 + $0x38] sm:$0xff]
  %v4660 = vld [vmem:[#allocation2 + $0x40] sm:$0xff]
  %v4661 = vld [vmem:[#allocation2 + $0x48] sm:$0xff]
  %v4662 = vld [vmem:[#allocation2 + $0x50] sm:$0xff]
  %v4663 = vld [vmem:[#allocation2 + $0x58] sm:$0xff]
  %v4664 = vld [vmem:[#allocation2 + $0x60] sm:$0xff]
  %v4665 = vld [vmem:[#allocation2 + $0x68] sm:$0xff]
  %v4666 = vld [vmem:[#allocation2 + $0x70] sm:$0xff]
  %v4667 = vld [vmem:[#allocation2 + $0x78] sm:$0xff]
  %v4668 = vld [vmem:[#allocation2 + $0x80] sm:$0xff]
  %v4669 = vld [vmem:[#allocation2 + $0x88] sm:$0xff]
  %v4670 = vld [vmem:[#allocation2 + $0x90] sm:$0xff]
  %v4671 = vld [vmem:[#allocation2 + $0x98] sm:$0xff]
  %v4672 = vld [vmem:[#allocation2 + $0xa0] sm:$0xff]
  %v4673 = vld [vmem:[#allocation2 + $0xa8] sm:$0xff]
  %v4674 = vld [vmem:[#allocation2 + $0xb0] sm:$0xff]
  %v4675 = vld [vmem:[#allocation2 + $0xb8] sm:$0xff]
  %v4676 = vld [vmem:[#allocation2 + $0xc0] sm:$0xff]
  %v4677 = vld [vmem:[#allocation2 + $0xc8] sm:$0xff]
  %v4678 = vld [vmem:[#allocation2 + $0xd0] sm:$0xff]
  %v4679 = vld [vmem:[#allocation2 + $0xd8] sm:$0xff]
  %v4680 = vld [vmem:[#allocation2 + $0xe0] sm:$0xff]
  %v4681 = vld [vmem:[#allocation2 + $0xe8] sm:$0xff]
  %v4682 = vld [vmem:[#allocation2 + $0xf0] sm:$0xff]
  %v4683 = vld [vmem:[#allocation2 + $0xf8] sm:$0xff]
  %v4684 = vadd.f32 %v4652, %v1574
  %v4685 = vadd.f32 %v4653, %v1575
  %v4686 = vadd.f32 %v4654, %v1576
  %v4687 = vadd.f32 %v4655, %v1577
  %v4688 = vadd.f32 %v4656, %v1578
  %v4689 = vadd.f32 %v4657, %v1579
  %v4690 = vadd.f32 %v4658, %v1580
  %v4691 = vadd.f32 %v4659, %v1581
  %v4692 = vadd.f32 %v4660, %v1582
  %v4693 = vadd.f32 %v4661, %v1583
  %v4694 = vadd.f32 %v4662, %v1584
  %v4695 = vadd.f32 %v4663, %v1585
  %v4696 = vadd.f32 %v4664, %v1586
  %v4697 = vadd.f32 %v4665, %v1587
  %v4698 = vadd.f32 %v4666, %v1588
  %v4699 = vadd.f32 %v4667, %v1589
  %v4700 = vadd.f32 %v4668, %v1590
  %v4701 = vadd.f32 %v4669, %v1591
  %v4702 = vadd.f32 %v4670, %v1592
  %v4703 = vadd.f32 %v4671, %v1593
  %v4704 = vadd.f32 %v4672, %v1594
  %v4705 = vadd.f32 %v4673, %v1595
  %v4706 = vadd.f32 %v4674, %v1596
  %v4707 = vadd.f32 %v4675, %v1597
  %v4708 = vadd.f32 %v4676, %v1598
  %v4709 = vadd.f32 %v4677, %v1599
  %v4710 = vadd.f32 %v4678, %v1600
  %v4711 = vadd.f32 %v4679, %v1601
  %v4712 = vadd.f32 %v4680, %v1602
  %v4713 = vadd.f32 %v4681, %v1603
  %v4714 = vadd.f32 %v4682, %v1604
  %v4715 = vadd.f32 %v4683, %v1605
  %v4716 = vpack.c.bf16 %v4686, %v4684
  %v4717 = vpack.c.bf16 %v4687, %v4685
  %v4718 = vpack.c.bf16 %v4690, %v4688
  %v4719 = vpack.c.bf16 %v4691, %v4689
  %v4720 = vpack.c.bf16 %v4694, %v4692
  %v4721 = vpack.c.bf16 %v4695, %v4693
  %v4722 = vpack.c.bf16 %v4698, %v4696
  %v4723 = vpack.c.bf16 %v4699, %v4697
  %v4724 = vpack.c.bf16 %v4702, %v4700
  %v4725 = vpack.c.bf16 %v4703, %v4701
  %v4726 = vpack.c.bf16 %v4706, %v4704
  %v4727 = vpack.c.bf16 %v4707, %v4705
  %v4728 = vpack.c.bf16 %v4710, %v4708
  %v4729 = vpack.c.bf16 %v4711, %v4709
  %v4730 = vpack.c.bf16 %v4714, %v4712
  %v4731 = vpack.c.bf16 %v4715, %v4713
  %s4732 = scalar_lea.vmem %s2, 3
  %v4733 = vld [vmem:[%s4732] ss:$4 sm:$0x3]
  %v4735 = vlaneseq
  %v4736 = vshrl.u32 %v4735, 7
  %v4737 = vsub.s32 0, %v4736
  %v4738 = vrot.slane %v4733, %v4737
  %v4739 = vlaneseq
  %v4740 = vshrl.u32 %v4739, 7
  %v4741 = vsub.s32 1, %v4740
  %v4742 = vrot.slane %v4733, %v4741
  %4745 = vst [vmem:[#allocation2] sm:$0xff] %v4738
  %4746 = vst [vmem:[#allocation2 + $0x8] sm:$0xff] %v4742
  %4747 = vst [vmem:[#allocation2 + $0x10] sm:$0xff] %v4738
  %4748 = vst [vmem:[#allocation2 + $0x18] sm:$0xff] %v4742
  %4749 = vst [vmem:[#allocation2 + $0x20] sm:$0xff] %v4738
  %4750 = vst [vmem:[#allocation2 + $0x28] sm:$0xff] %v4742
  %4751 = vst [vmem:[#allocation2 + $0x30] sm:$0xff] %v4738
  %4752 = vst [vmem:[#allocation2 + $0x38] sm:$0xff] %v4742
  %4753 = vst [vmem:[#allocation2 + $0x40] sm:$0xff] %v4738
  %4754 = vst [vmem:[#allocation2 + $0x48] sm:$0xff] %v4742
  %4755 = vst [vmem:[#allocation2 + $0x50] sm:$0xff] %v4738
  %4756 = vst [vmem:[#allocation2 + $0x58] sm:$0xff] %v4742
  %4757 = vst [vmem:[#allocation2 + $0x60] sm:$0xff] %v4738
  %4758 = vst [vmem:[#allocation2 + $0x68] sm:$0xff] %v4742
  %4759 = vst [vmem:[#allocation2 + $0x70] sm:$0xff] %v4738
  %4760 = vst [vmem:[#allocation2 + $0x78] sm:$0xff] %v4742
  %4761 = vst [vmem:[#allocation2 + $0x80] sm:$0xff] %v4738
  %4762 = vst [vmem:[#allocation2 + $0x88] sm:$0xff] %v4742
  %4763 = vst [vmem:[#allocation2 + $0x90] sm:$0xff] %v4738
  %4764 = vst [vmem:[#allocation2 + $0x98] sm:$0xff] %v4742
  %4765 = vst [vmem:[#allocation2 + $0xa0] sm:$0xff] %v4738
  %4766 = vst [vmem:[#allocation2 + $0xa8] sm:$0xff] %v4742
  %4767 = vst [vmem:[#allocation2 + $0xb0] sm:$0xff] %v4738
  %4768 = vst [vmem:[#allocation2 + $0xb8] sm:$0xff] %v4742
  %4769 = vst [vmem:[#allocation2 + $0xc0] sm:$0xff] %v4738
  %4770 = vst [vmem:[#allocation2 + $0xc8] sm:$0xff] %v4742
  %4771 = vst [vmem:[#allocation2 + $0xd0] sm:$0xff] %v4738
  %4772 = vst [vmem:[#allocation2 + $0xd8] sm:$0xff] %v4742
  %4773 = vst [vmem:[#allocation2 + $0xe0] sm:$0xff] %v4738
  %4774 = vst [vmem:[#allocation2 + $0xe8] sm:$0xff] %v4742
  %4775 = vst [vmem:[#allocation2 + $0xf0] sm:$0xff] %v4738
  %4776 = vst [vmem:[#allocation2 + $0xf8] sm:$0xff] %v4742
  %v4777 = vld [vmem:[#allocation2] sm:$0xff]
  %v4778 = vld [vmem:[#allocation2 + $0x8] sm:$0xff]
  %v4779 = vld [vmem:[#allocation2 + $0x10] sm:$0xff]
  %v4780 = vld [vmem:[#allocation2 + $0x18] sm:$0xff]
  %v4781 = vld [vmem:[#allocation2 + $0x20] sm:$0xff]
  %v4782 = vld [vmem:[#allocation2 + $0x28] sm:$0xff]
  %v4783 = vld [vmem:[#allocation2 + $0x30] sm:$0xff]
  %v4784 = vld [vmem:[#allocation2 + $0x38] sm:$0xff]
  %v4785 = vld [vmem:[#allocation2 + $0x40] sm:$0xff]
  %v4786 = vld [vmem:[#allocation2 + $0x48] sm:$0xff]
  %v4787 = vld [vmem:[#allocation2 + $0x50] sm:$0xff]
  %v4788 = vld [vmem:[#allocation2 + $0x58] sm:$0xff]
  %v4789 = vld [vmem:[#allocation2 + $0x60] sm:$0xff]
  %v4790 = vld [vmem:[#allocation2 + $0x68] sm:$0xff]
  %v4791 = vld [vmem:[#allocation2 + $0x70] sm:$0xff]
  %v4792 = vld [vmem:[#allocation2 + $0x78] sm:$0xff]
  %v4793 = vld [vmem:[#allocation2 + $0x80] sm:$0xff]
  %v4794 = vld [vmem:[#allocation2 + $0x88] sm:$0xff]
  %v4795 = vld [vmem:[#allocation2 + $0x90] sm:$0xff]
  %v4796 = vld [vmem:[#allocation2 + $0x98] sm:$0xff]
  %v4797 = vld [vmem:[#allocation2 + $0xa0] sm:$0xff]
  %v4798 = vld [vmem:[#allocation2 + $0xa8] sm:$0xff]
  %v4799 = vld [vmem:[#allocation2 + $0xb0] sm:$0xff]
  %v4800 = vld [vmem:[#allocation2 + $0xb8] sm:$0xff]
  %v4801 = vld [vmem:[#allocation2 + $0xc0] sm:$0xff]
  %v4802 = vld [vmem:[#allocation2 + $0xc8] sm:$0xff]
  %v4803 = vld [vmem:[#allocation2 + $0xd0] sm:$0xff]
  %v4804 = vld [vmem:[#allocation2 + $0xd8] sm:$0xff]
  %v4805 = vld [vmem:[#allocation2 + $0xe0] sm:$0xff]
  %v4806 = vld [vmem:[#allocation2 + $0xe8] sm:$0xff]
  %v4807 = vld [vmem:[#allocation2 + $0xf0] sm:$0xff]
  %v4808 = vld [vmem:[#allocation2 + $0xf8] sm:$0xff]
  %v4810 = vshrl.u32 %v4716, 16
  %v4812 = vrot.slane %v4810, 7
  %v4813 = vshll.u32 %v4716, 16
  %v4815 = vor.u32 %v4812, %v4813
  %v4817 = vshrl.u32 %v4717, 16
  %v4819 = vrot.slane %v4817, 7
  %v4820 = vshll.u32 %v4717, 16
  %v4822 = vor.u32 %v4819, %v4820
  %v4824 = vshrl.u32 %v4718, 16
  %v4826 = vrot.slane %v4824, 7
  %v4827 = vshll.u32 %v4718, 16
  %v4829 = vor.u32 %v4826, %v4827
  %v4831 = vshrl.u32 %v4719, 16
  %v4833 = vrot.slane %v4831, 7
  %v4834 = vshll.u32 %v4719, 16
  %v4836 = vor.u32 %v4833, %v4834
  %v4838 = vshrl.u32 %v4720, 16
  %v4840 = vrot.slane %v4838, 7
  %v4841 = vshll.u32 %v4720, 16
  %v4843 = vor.u32 %v4840, %v4841
  %v4845 = vshrl.u32 %v4721, 16
  %v4847 = vrot.slane %v4845, 7
  %v4848 = vshll.u32 %v4721, 16
  %v4850 = vor.u32 %v4847, %v4848
  %v4852 = vshrl.u32 %v4722, 16
  %v4854 = vrot.slane %v4852, 7
  %v4855 = vshll.u32 %v4722, 16
  %v4857 = vor.u32 %v4854, %v4855
  %v4859 = vshrl.u32 %v4723, 16
  %v4861 = vrot.slane %v4859, 7
  %v4862 = vshll.u32 %v4723, 16
  %v4864 = vor.u32 %v4861, %v4862
  %v4866 = vshrl.u32 %v4724, 16
  %v4868 = vrot.slane %v4866, 7
  %v4869 = vshll.u32 %v4724, 16
  %v4871 = vor.u32 %v4868, %v4869
  %v4873 = vshrl.u32 %v4725, 16
  %v4875 = vrot.slane %v4873, 7
  %v4876 = vshll.u32 %v4725, 16
  %v4878 = vor.u32 %v4875, %v4876
  %v4880 = vshrl.u32 %v4726, 16
  %v4882 = vrot.slane %v4880, 7
  %v4883 = vshll.u32 %v4726, 16
  %v4885 = vor.u32 %v4882, %v4883
  %v4887 = vshrl.u32 %v4727, 16
  %v4889 = vrot.slane %v4887, 7
  %v4890 = vshll.u32 %v4727, 16
  %v4892 = vor.u32 %v4889, %v4890
  %v4894 = vshrl.u32 %v4728, 16
  %v4896 = vrot.slane %v4894, 7
  %v4897 = vshll.u32 %v4728, 16
  %v4899 = vor.u32 %v4896, %v4897
  %v4901 = vshrl.u32 %v4729, 16
  %v4903 = vrot.slane %v4901, 7
  %v4904 = vshll.u32 %v4729, 16
  %v4906 = vor.u32 %v4903, %v4904
  %v4908 = vshrl.u32 %v4730, 16
  %v4910 = vrot.slane %v4908, 7
  %v4911 = vshll.u32 %v4730, 16
  %v4913 = vor.u32 %v4910, %v4911
  %v4915 = vshrl.u32 %v4731, 16
  %v4917 = vrot.slane %v4915, 7
  %v4918 = vshll.u32 %v4731, 16
  %v4920 = vor.u32 %v4917, %v4918
  %v4937 = vsel %vm301, 0, %v4815
  %v4938 = vsel %vm301, 0, %v4822
  %v4939 = vsel %vm301, 0, %v4829
  %v4940 = vsel %vm301, 0, %v4836
  %v4941 = vsel %vm301, 0, %v4843
  %v4942 = vsel %vm301, 0, %v4850
  %v4943 = vsel %vm301, 0, %v4857
  %v4944 = vsel %vm301, 0, %v4864
  %v4945 = vsel %vm301, 0, %v4871
  %v4946 = vsel %vm301, 0, %v4878
  %v4947 = vsel %vm301, 0, %v4885
  %v4948 = vsel %vm301, 0, %v4892
  %v4949 = vsel %vm301, 0, %v4899
  %v4950 = vsel %vm301, 0, %v4906
  %v4951 = vsel %vm301, 0, %v4913
  %v4952 = vsel %vm301, 0, %v4920
  %s4953 = scalar_lea.vmem %s1, 2304
  %v4954 = vld [vmem:[%s4953] sm:$0xff]
  %v4955 = vld [vmem:[%s4953 + $0x8] sm:$0xff]
  %v4956 = vld [vmem:[%s4953 + $0x10] sm:$0xff]
  %v4957 = vld [vmem:[%s4953 + $0x18] sm:$0xff]
  %v4958 = vld [vmem:[%s4953 + $0x20] sm:$0xff]
  %v4959 = vld [vmem:[%s4953 + $0x28] sm:$0xff]
  %v4960 = vld [vmem:[%s4953 + $0x30] sm:$0xff]
  %v4961 = vld [vmem:[%s4953 + $0x38] sm:$0xff]
  %v4962 = vld [vmem:[%s4953 + $0x40] sm:$0xff]
  %v4963 = vld [vmem:[%s4953 + $0x48] sm:$0xff]
  %v4964 = vld [vmem:[%s4953 + $0x50] sm:$0xff]
  %v4965 = vld [vmem:[%s4953 + $0x58] sm:$0xff]
  %v4966 = vld [vmem:[%s4953 + $0x60] sm:$0xff]
  %v4967 = vld [vmem:[%s4953 + $0x68] sm:$0xff]
  %v4968 = vld [vmem:[%s4953 + $0x70] sm:$0xff]
  %v4969 = vld [vmem:[%s4953 + $0x78] sm:$0xff]
  %v4970 = vld [vmem:[%s4953 + $0x80] sm:$0xff]
  %v4971 = vld [vmem:[%s4953 + $0x88] sm:$0xff]
  %v4972 = vld [vmem:[%s4953 + $0x90] sm:$0xff]
  %v4973 = vld [vmem:[%s4953 + $0x98] sm:$0xff]
  %v4974 = vld [vmem:[%s4953 + $0xa0] sm:$0xff]
  %v4975 = vld [vmem:[%s4953 + $0xa8] sm:$0xff]
  %v4976 = vld [vmem:[%s4953 + $0xb0] sm:$0xff]
  %v4977 = vld [vmem:[%s4953 + $0xb8] sm:$0xff]
  %v4978 = vld [vmem:[%s4953 + $0xc0] sm:$0xff]
  %v4979 = vld [vmem:[%s4953 + $0xc8] sm:$0xff]
  %v4980 = vld [vmem:[%s4953 + $0xd0] sm:$0xff]
  %v4981 = vld [vmem:[%s4953 + $0xd8] sm:$0xff]
  %v4982 = vld [vmem:[%s4953 + $0xe0] sm:$0xff]
  %v4983 = vld [vmem:[%s4953 + $0xe8] sm:$0xff]
  %v4984 = vld [vmem:[%s4953 + $0xf0] sm:$0xff]
  %v4985 = vld [vmem:[%s4953 + $0xf8] sm:$0xff]
  %v5018 = vunpack.c.l.b16 %v4954
  %v5019 = vunpack.c.h.b16 %v4954
  %v5020 = vunpack.c.l.b16 %v4955
  %v5021 = vunpack.c.h.b16 %v4955
  %v5022 = vunpack.c.l.b16 %v4956
  %v5023 = vunpack.c.h.b16 %v4956
  %v5024 = vunpack.c.l.b16 %v4957
  %v5025 = vunpack.c.h.b16 %v4957
  %v5026 = vunpack.c.l.b16 %v4958
  %v5027 = vunpack.c.h.b16 %v4958
  %v5028 = vunpack.c.l.b16 %v4959
  %v5029 = vunpack.c.h.b16 %v4959
  %v5030 = vunpack.c.l.b16 %v4960
  %v5031 = vunpack.c.h.b16 %v4960
  %v5032 = vunpack.c.l.b16 %v4961
  %v5033 = vunpack.c.h.b16 %v4961
  %v5034 = vunpack.c.l.b16 %v4962
  %v5035 = vunpack.c.h.b16 %v4962
  %v5036 = vunpack.c.l.b16 %v4963
  %v5037 = vunpack.c.h.b16 %v4963
  %v5038 = vunpack.c.l.b16 %v4964
  %v5039 = vunpack.c.h.b16 %v4964
  %v5040 = vunpack.c.l.b16 %v4965
  %v5041 = vunpack.c.h.b16 %v4965
  %v5042 = vunpack.c.l.b16 %v4966
  %v5043 = vunpack.c.h.b16 %v4966
  %v5044 = vunpack.c.l.b16 %v4967
  %v5045 = vunpack.c.h.b16 %v4967
  %v5046 = vunpack.c.l.b16 %v4968
  %v5047 = vunpack.c.h.b16 %v4968
  %v5048 = vunpack.c.l.b16 %v4969
  %v5049 = vunpack.c.h.b16 %v4969
  %v5050 = vunpack.c.l.b16 %v4970
  %v5051 = vunpack.c.h.b16 %v4970
  %v5052 = vunpack.c.l.b16 %v4971
  %v5053 = vunpack.c.h.b16 %v4971
  %v5054 = vunpack.c.l.b16 %v4972
  %v5055 = vunpack.c.h.b16 %v4972
  %v5056 = vunpack.c.l.b16 %v4973
  %v5057 = vunpack.c.h.b16 %v4973
  %v5058 = vunpack.c.l.b16 %v4974
  %v5059 = vunpack.c.h.b16 %v4974
  %v5060 = vunpack.c.l.b16 %v4975
  %v5061 = vunpack.c.h.b16 %v4975
  %v5062 = vunpack.c.l.b16 %v4976
  %v5063 = vunpack.c.h.b16 %v4976
  %v5064 = vunpack.c.l.b16 %v4977
  %v5065 = vunpack.c.h.b16 %v4977
  %v5066 = vunpack.c.l.b16 %v4978
  %v5067 = vunpack.c.h.b16 %v4978
  %v5068 = vunpack.c.l.b16 %v4979
  %v5069 = vunpack.c.h.b16 %v4979
  %v5070 = vunpack.c.l.b16 %v4980
  %v5071 = vunpack.c.h.b16 %v4980
  %v5072 = vunpack.c.l.b16 %v4981
  %v5073 = vunpack.c.h.b16 %v4981
  %v5074 = vunpack.c.l.b16 %v4982
  %v5075 = vunpack.c.h.b16 %v4982
  %v5076 = vunpack.c.l.b16 %v4983
  %v5077 = vunpack.c.h.b16 %v4983
  %v5078 = vunpack.c.l.b16 %v4984
  %v5079 = vunpack.c.h.b16 %v4984
  %v5080 = vunpack.c.l.b16 %v4985
  %v5081 = vunpack.c.h.b16 %v4985
  %v5082 = vpack.c.b16 %v5020, %v5018
  %v5083 = vpack.c.b16 %v5021, %v5019
  %v5084 = vpack.c.b16 %v5024, %v5022
  %v5085 = vpack.c.b16 %v5025, %v5023
  %v5086 = vpack.c.b16 %v5028, %v5026
  %v5087 = vpack.c.b16 %v5029, %v5027
  %v5088 = vpack.c.b16 %v5032, %v5030
  %v5089 = vpack.c.b16 %v5033, %v5031
  %v5090 = vpack.c.b16 %v5036, %v5034
  %v5091 = vpack.c.b16 %v5037, %v5035
  %v5092 = vpack.c.b16 %v5040, %v5038
  %v5093 = vpack.c.b16 %v5041, %v5039
  %v5094 = vpack.c.b16 %v5044, %v5042
  %v5095 = vpack.c.b16 %v5045, %v5043
  %v5096 = vpack.c.b16 %v5048, %v5046
  %v5097 = vpack.c.b16 %v5049, %v5047
  %v5098 = vpack.c.b16 %v5052, %v5050
  %v5099 = vpack.c.b16 %v5053, %v5051
  %v5100 = vpack.c.b16 %v5056, %v5054
  %v5101 = vpack.c.b16 %v5057, %v5055
  %v5102 = vpack.c.b16 %v5060, %v5058
  %v5103 = vpack.c.b16 %v5061, %v5059
  %v5104 = vpack.c.b16 %v5064, %v5062
  %v5105 = vpack.c.b16 %v5065, %v5063
  %v5106 = vpack.c.b16 %v5068, %v5066
  %v5107 = vpack.c.b16 %v5069, %v5067
  %v5108 = vpack.c.b16 %v5072, %v5070
  %v5109 = vpack.c.b16 %v5073, %v5071
  %v5110 = vpack.c.b16 %v5076, %v5074
  %v5111 = vpack.c.b16 %v5077, %v5075
  %v5112 = vpack.c.b16 %v5080, %v5078
  %v5113 = vpack.c.b16 %v5081, %v5079
  %5146 = vmatprep.subr.bf16.mxu0 %v5083
  %5147 = vmatpush1.bf16.msra.mxu0 %v5082
  %5148 = vmatprep.subr.bf16.mxu0 %v5085
  %5149 = vmatpush1.bf16.msra.mxu0 %v5084
  %5150 = vmatprep.subr.bf16.mxu0 %v5087
  %5151 = vmatpush1.bf16.msra.mxu0 %v5086
  %5152 = vmatprep.subr.bf16.mxu0 %v5089
  %5153 = vmatpush1.bf16.msra.mxu0 %v5088
  %5154 = vmatprep.subr.bf16.mxu0 %v5091
  %5155 = vmatpush1.bf16.msra.mxu0 %v5090
  %5156 = vmatprep.subr.bf16.mxu0 %v5093
  %5157 = vmatpush1.bf16.msra.mxu0 %v5092
  %5158 = vmatprep.subr.bf16.mxu0 %v5095
  %5159 = vmatpush1.bf16.msra.mxu0 %v5094
  %5160 = vmatprep.subr.bf16.mxu0 %v5097
  %5161 = vmatpush1.bf16.msra.mxu0 %v5096
  %5162 = vmatprep.subr.bf16.mxu0 %v5099
  %5163 = vmatpush1.bf16.msra.mxu0 %v5098
  %5164 = vmatprep.subr.bf16.mxu0 %v5101
  %5165 = vmatpush1.bf16.msra.mxu0 %v5100
  %5166 = vmatprep.subr.bf16.mxu0 %v5103
  %5167 = vmatpush1.bf16.msra.mxu0 %v5102
  %5168 = vmatprep.subr.bf16.mxu0 %v5105
  %5169 = vmatpush1.bf16.msra.mxu0 %v5104
  %5170 = vmatprep.subr.bf16.mxu0 %v5107
  %5171 = vmatpush1.bf16.msra.mxu0 %v5106
  %5172 = vmatprep.subr.bf16.mxu0 %v5109
  %5173 = vmatpush1.bf16.msra.mxu0 %v5108
  %5174 = vmatprep.subr.bf16.mxu0 %v5111
  %5175 = vmatpush1.bf16.msra.mxu0 %v5110
  %5176 = vmatprep.subr.bf16.mxu0 %v5113
  %5177 = vmatpush1.bf16.msra.mxu0 %v5112
  %5178 = vmatprep.mubr.bf16.mxu0 %v4938
  %5179 = vmatmul.mubr.bf16.gmra.mrb[0].mxu0 %v4937
  %v5180 = vpop.f32.mrb[0].mxu0
  %v5181 = vadd.f32 0.0, %v5180
  %v5182 = vpop.f32.mrb[0].mxu0
  %v5183 = vadd.f32 0.0, %v5182
  %v5184 = vpop.f32.mrb[0].mxu0
  %v5185 = vadd.f32 0.0, %v5184
  %v5186 = vpop.f32.mrb[0].mxu0
  %v5187 = vadd.f32 0.0, %v5186
  %5188 = vmatprep.mubr.bf16.mxu0 %v4940
  %5189 = vmatmul.mubr.bf16.gmra.mrb[0].mxu0 %v4939
  %v5190 = vpop.f32.mrb[0].mxu0
  %v5191 = vadd.f32 0.0, %v5190
  %v5192 = vpop.f32.mrb[0].mxu0
  %v5193 = vadd.f32 0.0, %v5192
  %v5194 = vpop.f32.mrb[0].mxu0
  %v5195 = vadd.f32 0.0, %v5194
  %v5196 = vpop.f32.mrb[0].mxu0
  %v5197 = vadd.f32 0.0, %v5196
  %5198 = vmatprep.mubr.bf16.mxu0 %v4942
  %5199 = vmatmul.mubr.bf16.gmra.mrb[0].mxu0 %v4941
  %v5200 = vpop.f32.mrb[0].mxu0
  %v5201 = vadd.f32 0.0, %v5200
  %v5202 = vpop.f32.mrb[0].mxu0
  %v5203 = vadd.f32 0.0, %v5202
  %v5204 = vpop.f32.mrb[0].mxu0
  %v5205 = vadd.f32 0.0, %v5204
  %v5206 = vpop.f32.mrb[0].mxu0
  %v5207 = vadd.f32 0.0, %v5206
  %5208 = vmatprep.mubr.bf16.mxu0 %v4944
  %5209 = vmatmul.mubr.bf16.gmra.mrb[0].mxu0 %v4943
  %v5210 = vpop.f32.mrb[0].mxu0
  %v5211 = vadd.f32 0.0, %v5210
  %v5212 = vpop.f32.mrb[0].mxu0
  %v5213 = vadd.f32 0.0, %v5212
  %v5214 = vpop.f32.mrb[0].mxu0
  %v5215 = vadd.f32 0.0, %v5214
  %v5216 = vpop.f32.mrb[0].mxu0
  %v5217 = vadd.f32 0.0, %v5216
  %5218 = vmatprep.mubr.bf16.mxu0 %v4946
  %5219 = vmatmul.mubr.bf16.gmra.mrb[0].mxu0 %v4945
  %v5220 = vpop.f32.mrb[0].mxu0
  %v5221 = vadd.f32 0.0, %v5220
  %v5222 = vpop.f32.mrb[0].mxu0
  %v5223 = vadd.f32 0.0, %v5222
  %v5224 = vpop.f32.mrb[0].mxu0
  %v5225 = vadd.f32 0.0, %v5224
  %v5226 = vpop.f32.mrb[0].mxu0
  %v5227 = vadd.f32 0.0, %v5226
  %5228 = vmatprep.mubr.bf16.mxu0 %v4948
  %5229 = vmatmul.mubr.bf16.gmra.mrb[0].mxu0 %v4947
  %v5230 = vpop.f32.mrb[0].mxu0
  %v5231 = vadd.f32 0.0, %v5230
  %v5232 = vpop.f32.mrb[0].mxu0
  %v5233 = vadd.f32 0.0, %v5232
  %v5234 = vpop.f32.mrb[0].mxu0
  %v5235 = vadd.f32 0.0, %v5234
  %v5236 = vpop.f32.mrb[0].mxu0
  %v5237 = vadd.f32 0.0, %v5236
  %5238 = vmatprep.mubr.bf16.mxu0 %v4950
  %5239 = vmatmul.mubr.bf16.gmra.mrb[0].mxu0 %v4949
  %v5240 = vpop.f32.mrb[0].mxu0
  %v5241 = vadd.f32 0.0, %v5240
  %v5242 = vpop.f32.mrb[0].mxu0
  %v5243 = vadd.f32 0.0, %v5242
  %v5244 = vpop.f32.mrb[0].mxu0
  %v5245 = vadd.f32 0.0, %v5244
  %v5246 = vpop.f32.mrb[0].mxu0
  %v5247 = vadd.f32 0.0, %v5246
  %5248 = vmatprep.mubr.bf16.mxu0 %v4952
  %5249 = vmatmul.mubr.bf16.gmra.mrb[0].mxu0 %v4951
  %v5250 = vpop.f32.mrb[0].mxu0
  %v5251 = vadd.f32 0.0, %v5250
  %v5252 = vpop.f32.mrb[0].mxu0
  %v5253 = vadd.f32 0.0, %v5252
  %v5254 = vpop.f32.mrb[0].mxu0
  %v5255 = vadd.f32 0.0, %v5254
  %v5256 = vpop.f32.mrb[0].mxu0
  %v5257 = vadd.f32 0.0, %v5256
  %5258 = vdwg.mxu0
  %v5259 = vadd.f32 %v4777, %v5181
  %v5260 = vadd.f32 %v4778, %v5183
  %v5261 = vadd.f32 %v4779, %v5185
  %v5262 = vadd.f32 %v4780, %v5187
  %v5263 = vadd.f32 %v4781, %v5191
  %v5264 = vadd.f32 %v4782, %v5193
  %v5265 = vadd.f32 %v4783, %v5195
  %v5266 = vadd.f32 %v4784, %v5197
  %v5267 = vadd.f32 %v4785, %v5201
  %v5268 = vadd.f32 %v4786, %v5203
  %v5269 = vadd.f32 %v4787, %v5205
  %v5270 = vadd.f32 %v4788, %v5207
  %v5271 = vadd.f32 %v4789, %v5211
  %v5272 = vadd.f32 %v4790, %v5213
  %v5273 = vadd.f32 %v4791, %v5215
  %v5274 = vadd.f32 %v4792, %v5217
  %v5275 = vadd.f32 %v4793, %v5221
  %v5276 = vadd.f32 %v4794, %v5223
  %v5277 = vadd.f32 %v4795, %v5225
  %v5278 = vadd.f32 %v4796, %v5227
  %v5279 = vadd.f32 %v4797, %v5231
  %v5280 = vadd.f32 %v4798, %v5233
  %v5281 = vadd.f32 %v4799, %v5235
  %v5282 = vadd.f32 %v4800, %v5237
  %v5283 = vadd.f32 %v4801, %v5241
  %v5284 = vadd.f32 %v4802, %v5243
  %v5285 = vadd.f32 %v4803, %v5245
  %v5286 = vadd.f32 %v4804, %v5247
  %v5287 = vadd.f32 %v4805, %v5251
  %v5288 = vadd.f32 %v4806, %v5253
  %v5289 = vadd.f32 %v4807, %v5255
  %v5290 = vadd.f32 %v4808, %v5257
  %5291 = vst [vmem:[#allocation2] sm:$0xff] %v5259
  %5292 = vst [vmem:[#allocation2 + $0x8] sm:$0xff] %v5260
  %5293 = vst [vmem:[#allocation2 + $0x10] sm:$0xff] %v5261
  %5294 = vst [vmem:[#allocation2 + $0x18] sm:$0xff] %v5262
  %5295 = vst [vmem:[#allocation2 + $0x20] sm:$0xff] %v5263
  %5296 = vst [vmem:[#allocation2 + $0x28] sm:$0xff] %v5264
  %5297 = vst [vmem:[#allocation2 + $0x30] sm:$0xff] %v5265
  %5298 = vst [vmem:[#allocation2 + $0x38] sm:$0xff] %v5266
  %5299 = vst [vmem:[#allocation2 + $0x40] sm:$0xff] %v5267
  %5300 = vst [vmem:[#allocation2 + $0x48] sm:$0xff] %v5268
  %5301 = vst [vmem:[#allocation2 + $0x50] sm:$0xff] %v5269
  %5302 = vst [vmem:[#allocation2 + $0x58] sm:$0xff] %v5270
  %5303 = vst [vmem:[#allocation2 + $0x60] sm:$0xff] %v5271
  %5304 = vst [vmem:[#allocation2 + $0x68] sm:$0xff] %v5272
  %5305 = vst [vmem:[#allocation2 + $0x70] sm:$0xff] %v5273
  %5306 = vst [vmem:[#allocation2 + $0x78] sm:$0xff] %v5274
  %5307 = vst [vmem:[#allocation2 + $0x80] sm:$0xff] %v5275
  %5308 = vst [vmem:[#allocation2 + $0x88] sm:$0xff] %v5276
  %5309 = vst [vmem:[#allocation2 + $0x90] sm:$0xff] %v5277
  %5310 = vst [vmem:[#allocation2 + $0x98] sm:$0xff] %v5278
  %5311 = vst [vmem:[#allocation2 + $0xa0] sm:$0xff] %v5279
  %5312 = vst [vmem:[#allocation2 + $0xa8] sm:$0xff] %v5280
  %5313 = vst [vmem:[#allocation2 + $0xb0] sm:$0xff] %v5281
  %5314 = vst [vmem:[#allocation2 + $0xb8] sm:$0xff] %v5282
  %5315 = vst [vmem:[#allocation2 + $0xc0] sm:$0xff] %v5283
  %5316 = vst [vmem:[#allocation2 + $0xc8] sm:$0xff] %v5284
  %5317 = vst [vmem:[#allocation2 + $0xd0] sm:$0xff] %v5285
  %5318 = vst [vmem:[#allocation2 + $0xd8] sm:$0xff] %v5286
  %5319 = vst [vmem:[#allocation2 + $0xe0] sm:$0xff] %v5287
  %5320 = vst [vmem:[#allocation2 + $0xe8] sm:$0xff] %v5288
  %5321 = vst [vmem:[#allocation2 + $0xf0] sm:$0xff] %v5289
  %5322 = vst [vmem:[#allocation2 + $0xf8] sm:$0xff] %v5290
  %v5323 = vld [vmem:[#allocation2] sm:$0xff]
  %v5324 = vld [vmem:[#allocation2 + $0x8] sm:$0xff]
  %v5325 = vld [vmem:[#allocation2 + $0x10] sm:$0xff]
  %v5326 = vld [vmem:[#allocation2 + $0x18] sm:$0xff]
  %v5327 = vld [vmem:[#allocation2 + $0x20] sm:$0xff]
  %v5328 = vld [vmem:[#allocation2 + $0x28] sm:$0xff]
  %v5329 = vld [vmem:[#allocation2 + $0x30] sm:$0xff]
  %v5330 = vld [vmem:[#allocation2 + $0x38] sm:$0xff]
  %v5331 = vld [vmem:[#allocation2 + $0x40] sm:$0xff]
  %v5332 = vld [vmem:[#allocation2 + $0x48] sm:$0xff]
  %v5333 = vld [vmem:[#allocation2 + $0x50] sm:$0xff]
  %v5334 = vld [vmem:[#allocation2 + $0x58] sm:$0xff]
  %v5335 = vld [vmem:[#allocation2 + $0x60] sm:$0xff]
  %v5336 = vld [vmem:[#allocation2 + $0x68] sm:$0xff]
  %v5337 = vld [vmem:[#allocation2 + $0x70] sm:$0xff]
  %v5338 = vld [vmem:[#allocation2 + $0x78] sm:$0xff]
  %v5339 = vld [vmem:[#allocation2 + $0x80] sm:$0xff]
  %v5340 = vld [vmem:[#allocation2 + $0x88] sm:$0xff]
  %v5341 = vld [vmem:[#allocation2 + $0x90] sm:$0xff]
  %v5342 = vld [vmem:[#allocation2 + $0x98] sm:$0xff]
  %v5343 = vld [vmem:[#allocation2 + $0xa0] sm:$0xff]
  %v5344 = vld [vmem:[#allocation2 + $0xa8] sm:$0xff]
  %v5345 = vld [vmem:[#allocation2 + $0xb0] sm:$0xff]
  %v5346 = vld [vmem:[#allocation2 + $0xb8] sm:$0xff]
  %v5347 = vld [vmem:[#allocation2 + $0xc0] sm:$0xff]
  %v5348 = vld [vmem:[#allocation2 + $0xc8] sm:$0xff]
  %v5349 = vld [vmem:[#allocation2 + $0xd0] sm:$0xff]
  %v5350 = vld [vmem:[#allocation2 + $0xd8] sm:$0xff]
  %v5351 = vld [vmem:[#allocation2 + $0xe0] sm:$0xff]
  %v5352 = vld [vmem:[#allocation2 + $0xe8] sm:$0xff]
  %v5353 = vld [vmem:[#allocation2 + $0xf0] sm:$0xff]
  %v5354 = vld [vmem:[#allocation2 + $0xf8] sm:$0xff]
  %s5355 = scalar_lea.vmem %s1, 2560
  %v5356 = vld [vmem:[%s5355] sm:$0xff]
  %v5357 = vld [vmem:[%s5355 + $0x8] sm:$0xff]
  %v5358 = vld [vmem:[%s5355 + $0x10] sm:$0xff]
  %v5359 = vld [vmem:[%s5355 + $0x18] sm:$0xff]
  %v5360 = vld [vmem:[%s5355 + $0x20] sm:$0xff]
  %v5361 = vld [vmem:[%s5355 + $0x28] sm:$0xff]
  %v5362 = vld [vmem:[%s5355 + $0x30] sm:$0xff]
  %v5363 = vld [vmem:[%s5355 + $0x38] sm:$0xff]
  %v5364 = vld [vmem:[%s5355 + $0x40] sm:$0xff]
  %v5365 = vld [vmem:[%s5355 + $0x48] sm:$0xff]
  %v5366 = vld [vmem:[%s5355 + $0x50] sm:$0xff]
  %v5367 = vld [vmem:[%s5355 + $0x58] sm:$0xff]
  %v5368 = vld [vmem:[%s5355 + $0x60] sm:$0xff]
  %v5369 = vld [vmem:[%s5355 + $0x68] sm:$0xff]
  %v5370 = vld [vmem:[%s5355 + $0x70] sm:$0xff]
  %v5371 = vld [vmem:[%s5355 + $0x78] sm:$0xff]
  %v5372 = vld [vmem:[%s5355 + $0x80] sm:$0xff]
  %v5373 = vld [vmem:[%s5355 + $0x88] sm:$0xff]
  %v5374 = vld [vmem:[%s5355 + $0x90] sm:$0xff]
  %v5375 = vld [vmem:[%s5355 + $0x98] sm:$0xff]
  %v5376 = vld [vmem:[%s5355 + $0xa0] sm:$0xff]
  %v5377 = vld [vmem:[%s5355 + $0xa8] sm:$0xff]
  %v5378 = vld [vmem:[%s5355 + $0xb0] sm:$0xff]
  %v5379 = vld [vmem:[%s5355 + $0xb8] sm:$0xff]
  %v5380 = vld [vmem:[%s5355 + $0xc0] sm:$0xff]
  %v5381 = vld [vmem:[%s5355 + $0xc8] sm:$0xff]
  %v5382 = vld [vmem:[%s5355 + $0xd0] sm:$0xff]
  %v5383 = vld [vmem:[%s5355 + $0xd8] sm:$0xff]
  %v5384 = vld [vmem:[%s5355 + $0xe0] sm:$0xff]
  %v5385 = vld [vmem:[%s5355 + $0xe8] sm:$0xff]
  %v5386 = vld [vmem:[%s5355 + $0xf0] sm:$0xff]
  %v5387 = vld [vmem:[%s5355 + $0xf8] sm:$0xff]
  %v5420 = vunpack.c.l.b16 %v5356
  %v5421 = vunpack.c.h.b16 %v5356
  %v5422 = vunpack.c.l.b16 %v5357
  %v5423 = vunpack.c.h.b16 %v5357
  %v5424 = vunpack.c.l.b16 %v5358
  %v5425 = vunpack.c.h.b16 %v5358
  %v5426 = vunpack.c.l.b16 %v5359
  %v5427 = vunpack.c.h.b16 %v5359
  %v5428 = vunpack.c.l.b16 %v5360
  %v5429 = vunpack.c.h.b16 %v5360
  %v5430 = vunpack.c.l.b16 %v5361
  %v5431 = vunpack.c.h.b16 %v5361
  %v5432 = vunpack.c.l.b16 %v5362
  %v5433 = vunpack.c.h.b16 %v5362
  %v5434 = vunpack.c.l.b16 %v5363
  %v5435 = vunpack.c.h.b16 %v5363
  %v5436 = vunpack.c.l.b16 %v5364
  %v5437 = vunpack.c.h.b16 %v5364
  %v5438 = vunpack.c.l.b16 %v5365
  %v5439 = vunpack.c.h.b16 %v5365
  %v5440 = vunpack.c.l.b16 %v5366
  %v5441 = vunpack.c.h.b16 %v5366
  %v5442 = vunpack.c.l.b16 %v5367
  %v5443 = vunpack.c.h.b16 %v5367
  %v5444 = vunpack.c.l.b16 %v5368
  %v5445 = vunpack.c.h.b16 %v5368
  %v5446 = vunpack.c.l.b16 %v5369
  %v5447 = vunpack.c.h.b16 %v5369
  %v5448 = vunpack.c.l.b16 %v5370
  %v5449 = vunpack.c.h.b16 %v5370
  %v5450 = vunpack.c.l.b16 %v5371
  %v5451 = vunpack.c.h.b16 %v5371
  %v5452 = vunpack.c.l.b16 %v5372
  %v5453 = vunpack.c.h.b16 %v5372
  %v5454 = vunpack.c.l.b16 %v5373
  %v5455 = vunpack.c.h.b16 %v5373
  %v5456 = vunpack.c.l.b16 %v5374
  %v5457 = vunpack.c.h.b16 %v5374
  %v5458 = vunpack.c.l.b16 %v5375
  %v5459 = vunpack.c.h.b16 %v5375
  %v5460 = vunpack.c.l.b16 %v5376
  %v5461 = vunpack.c.h.b16 %v5376
  %v5462 = vunpack.c.l.b16 %v5377
  %v5463 = vunpack.c.h.b16 %v5377
  %v5464 = vunpack.c.l.b16 %v5378
  %v5465 = vunpack.c.h.b16 %v5378
  %v5466 = vunpack.c.l.b16 %v5379
  %v5467 = vunpack.c.h.b16 %v5379
  %v5468 = vunpack.c.l.b16 %v5380
  %v5469 = vunpack.c.h.b16 %v5380
  %v5470 = vunpack.c.l.b16 %v5381
  %v5471 = vunpack.c.h.b16 %v5381
  %v5472 = vunpack.c.l.b16 %v5382
  %v5473 = vunpack.c.h.b16 %v5382
  %v5474 = vunpack.c.l.b16 %v5383
  %v5475 = vunpack.c.h.b16 %v5383
  %v5476 = vunpack.c.l.b16 %v5384
  %v5477 = vunpack.c.h.b16 %v5384
  %v5478 = vunpack.c.l.b16 %v5385
  %v5479 = vunpack.c.h.b16 %v5385
  %v5480 = vunpack.c.l.b16 %v5386
  %v5481 = vunpack.c.h.b16 %v5386
  %v5482 = vunpack.c.l.b16 %v5387
  %v5483 = vunpack.c.h.b16 %v5387
  %v5484 = vpack.c.b16 %v5422, %v5420
  %v5485 = vpack.c.b16 %v5423, %v5421
  %v5486 = vpack.c.b16 %v5426, %v5424
  %v5487 = vpack.c.b16 %v5427, %v5425
  %v5488 = vpack.c.b16 %v5430, %v5428
  %v5489 = vpack.c.b16 %v5431, %v5429
  %v5490 = vpack.c.b16 %v5434, %v5432
  %v5491 = vpack.c.b16 %v5435, %v5433
  %v5492 = vpack.c.b16 %v5438, %v5436
  %v5493 = vpack.c.b16 %v5439, %v5437
  %v5494 = vpack.c.b16 %v5442, %v5440
  %v5495 = vpack.c.b16 %v5443, %v5441
  %v5496 = vpack.c.b16 %v5446, %v5444
  %v5497 = vpack.c.b16 %v5447, %v5445
  %v5498 = vpack.c.b16 %v5450, %v5448
  %v5499 = vpack.c.b16 %v5451, %v5449
  %v5500 = vpack.c.b16 %v5454, %v5452
  %v5501 = vpack.c.b16 %v5455, %v5453
  %v5502 = vpack.c.b16 %v5458, %v5456
  %v5503 = vpack.c.b16 %v5459, %v5457
  %v5504 = vpack.c.b16 %v5462, %v5460
  %v5505 = vpack.c.b16 %v5463, %v5461
  %v5506 = vpack.c.b16 %v5466, %v5464
  %v5507 = vpack.c.b16 %v5467, %v5465
  %v5508 = vpack.c.b16 %v5470, %v5468
  %v5509 = vpack.c.b16 %v5471, %v5469
  %v5510 = vpack.c.b16 %v5474, %v5472
  %v5511 = vpack.c.b16 %v5475, %v5473
  %v5512 = vpack.c.b16 %v5478, %v5476
  %v5513 = vpack.c.b16 %v5479, %v5477
  %v5514 = vpack.c.b16 %v5482, %v5480
  %v5515 = vpack.c.b16 %v5483, %v5481
  %5548 = vmatprep.subr.bf16.mxu0 %v5485
  %5549 = vmatpush1.bf16.msra.mxu0 %v5484
  %5550 = vmatprep.subr.bf16.mxu0 %v5487
  %5551 = vmatpush1.bf16.msra.mxu0 %v5486
  %5552 = vmatprep.subr.bf16.mxu0 %v5489
  %5553 = vmatpush1.bf16.msra.mxu0 %v5488
  %5554 = vmatprep.subr.bf16.mxu0 %v5491
  %5555 = vmatpush1.bf16.msra.mxu0 %v5490
  %5556 = vmatprep.subr.bf16.mxu0 %v5493
  %5557 = vmatpush1.bf16.msra.mxu0 %v5492
  %5558 = vmatprep.subr.bf16.mxu0 %v5495
  %5559 = vmatpush1.bf16.msra.mxu0 %v5494
  %5560 = vmatprep.subr.bf16.mxu0 %v5497
  %5561 = vmatpush1.bf16.msra.mxu0 %v5496
  %5562 = vmatprep.subr.bf16.mxu0 %v5499
  %5563 = vmatpush1.bf16.msra.mxu0 %v5498
  %5564 = vmatprep.subr.bf16.mxu0 %v5501
  %5565 = vmatpush1.bf16.msra.mxu0 %v5500
  %5566 = vmatprep.subr.bf16.mxu0 %v5503
  %5567 = vmatpush1.bf16.msra.mxu0 %v5502
  %5568 = vmatprep.subr.bf16.mxu0 %v5505
  %5569 = vmatpush1.bf16.msra.mxu0 %v5504
  %5570 = vmatprep.subr.bf16.mxu0 %v5507
  %5571 = vmatpush1.bf16.msra.mxu0 %v5506
  %5572 = vmatprep.subr.bf16.mxu0 %v5509
  %5573 = vmatpush1.bf16.msra.mxu0 %v5508
  %5574 = vmatprep.subr.bf16.mxu0 %v5511
  %5575 = vmatpush1.bf16.msra.mxu0 %v5510
  %5576 = vmatprep.subr.bf16.mxu0 %v5513
  %5577 = vmatpush1.bf16.msra.mxu0 %v5512
  %5578 = vmatprep.subr.bf16.mxu0 %v5515
  %5579 = vmatpush1.bf16.msra.mxu0 %v5514
  %5580 = vmatprep.mubr.bf16.mxu0 %v4717
  %5581 = vmatmul.mubr.bf16.gmra.mrb[0].mxu0 %v4716
  %v5582 = vpop.f32.mrb[0].mxu0
  %v5583 = vadd.f32 0.0, %v5582
  %v5584 = vpop.f32.mrb[0].mxu0
  %v5585 = vadd.f32 0.0, %v5584
  %v5586 = vpop.f32.mrb[0].mxu0
  %v5587 = vadd.f32 0.0, %v5586
  %v5588 = vpop.f32.mrb[0].mxu0
  %v5589 = vadd.f32 0.0, %v5588
  %5590 = vmatprep.mubr.bf16.mxu0 %v4719
  %5591 = vmatmul.mubr.bf16.gmra.mrb[0].mxu0 %v4718
  %v5592 = vpop.f32.mrb[0].mxu0
  %v5593 = vadd.f32 0.0, %v5592
  %v5594 = vpop.f32.mrb[0].mxu0
  %v5595 = vadd.f32 0.0, %v5594
  %v5596 = vpop.f32.mrb[0].mxu0
  %v5597 = vadd.f32 0.0, %v5596
  %v5598 = vpop.f32.mrb[0].mxu0
  %v5599 = vadd.f32 0.0, %v5598
  %5600 = vmatprep.mubr.bf16.mxu0 %v4721
  %5601 = vmatmul.mubr.bf16.gmra.mrb[0].mxu0 %v4720
  %v5602 = vpop.f32.mrb[0].mxu0
  %v5603 = vadd.f32 0.0, %v5602
  %v5604 = vpop.f32.mrb[0].mxu0
  %v5605 = vadd.f32 0.0, %v5604
  %v5606 = vpop.f32.mrb[0].mxu0
  %v5607 = vadd.f32 0.0, %v5606
  %v5608 = vpop.f32.mrb[0].mxu0
  %v5609 = vadd.f32 0.0, %v5608
  %5610 = vmatprep.mubr.bf16.mxu0 %v4723
  %5611 = vmatmul.mubr.bf16.gmra.mrb[0].mxu0 %v4722
  %v5612 = vpop.f32.mrb[0].mxu0
  %v5613 = vadd.f32 0.0, %v5612
  %v5614 = vpop.f32.mrb[0].mxu0
  %v5615 = vadd.f32 0.0, %v5614
  %v5616 = vpop.f32.mrb[0].mxu0
  %v5617 = vadd.f32 0.0, %v5616
  %v5618 = vpop.f32.mrb[0].mxu0
  %v5619 = vadd.f32 0.0, %v5618
  %5620 = vmatprep.mubr.bf16.mxu0 %v4725
  %5621 = vmatmul.mubr.bf16.gmra.mrb[0].mxu0 %v4724
  %v5622 = vpop.f32.mrb[0].mxu0
  %v5623 = vadd.f32 0.0, %v5622
  %v5624 = vpop.f32.mrb[0].mxu0
  %v5625 = vadd.f32 0.0, %v5624
  %v5626 = vpop.f32.mrb[0].mxu0
  %v5627 = vadd.f32 0.0, %v5626
  %v5628 = vpop.f32.mrb[0].mxu0
  %v5629 = vadd.f32 0.0, %v5628
  %5630 = vmatprep.mubr.bf16.mxu0 %v4727
  %5631 = vmatmul.mubr.bf16.gmra.mrb[0].mxu0 %v4726
  %v5632 = vpop.f32.mrb[0].mxu0
  %v5633 = vadd.f32 0.0, %v5632
  %v5634 = vpop.f32.mrb[0].mxu0
  %v5635 = vadd.f32 0.0, %v5634
  %v5636 = vpop.f32.mrb[0].mxu0
  %v5637 = vadd.f32 0.0, %v5636
  %v5638 = vpop.f32.mrb[0].mxu0
  %v5639 = vadd.f32 0.0, %v5638
  %5640 = vmatprep.mubr.bf16.mxu0 %v4729
  %5641 = vmatmul.mubr.bf16.gmra.mrb[0].mxu0 %v4728
  %v5642 = vpop.f32.mrb[0].mxu0
  %v5643 = vadd.f32 0.0, %v5642
  %v5644 = vpop.f32.mrb[0].mxu0
  %v5645 = vadd.f32 0.0, %v5644
  %v5646 = vpop.f32.mrb[0].mxu0
  %v5647 = vadd.f32 0.0, %v5646
  %v5648 = vpop.f32.mrb[0].mxu0
  %v5649 = vadd.f32 0.0, %v5648
  %5650 = vmatprep.mubr.bf16.mxu0 %v4731
  %5651 = vmatmul.mubr.bf16.gmra.mrb[0].mxu0 %v4730
  %v5652 = vpop.f32.mrb[0].mxu0
  %v5653 = vadd.f32 0.0, %v5652
  %v5654 = vpop.f32.mrb[0].mxu0
  %v5655 = vadd.f32 0.0, %v5654
  %v5656 = vpop.f32.mrb[0].mxu0
  %v5657 = vadd.f32 0.0, %v5656
  %v5658 = vpop.f32.mrb[0].mxu0
  %v5659 = vadd.f32 0.0, %v5658
  %5660 = vdwg.mxu0
  %v5661 = vadd.f32 %v5323, %v5583
  %v5662 = vadd.f32 %v5324, %v5585
  %v5663 = vadd.f32 %v5325, %v5587
  %v5664 = vadd.f32 %v5326, %v5589
  %v5665 = vadd.f32 %v5327, %v5593
  %v5666 = vadd.f32 %v5328, %v5595
  %v5667 = vadd.f32 %v5329, %v5597
  %v5668 = vadd.f32 %v5330, %v5599
  %v5669 = vadd.f32 %v5331, %v5603
  %v5670 = vadd.f32 %v5332, %v5605
  %v5671 = vadd.f32 %v5333, %v5607
  %v5672 = vadd.f32 %v5334, %v5609
  %v5673 = vadd.f32 %v5335, %v5613
  %v5674 = vadd.f32 %v5336, %v5615
  %v5675 = vadd.f32 %v5337, %v5617
  %v5676 = vadd.f32 %v5338, %v5619
  %v5677 = vadd.f32 %v5339, %v5623
  %v5678 = vadd.f32 %v5340, %v5625
  %v5679 = vadd.f32 %v5341, %v5627
  %v5680 = vadd.f32 %v5342, %v5629
  %v5681 = vadd.f32 %v5343, %v5633
  %v5682 = vadd.f32 %v5344, %v5635
  %v5683 = vadd.f32 %v5345, %v5637
  %v5684 = vadd.f32 %v5346, %v5639
  %v5685 = vadd.f32 %v5347, %v5643
  %v5686 = vadd.f32 %v5348, %v5645
  %v5687 = vadd.f32 %v5349, %v5647
  %v5688 = vadd.f32 %v5350, %v5649
  %v5689 = vadd.f32 %v5351, %v5653
  %v5690 = vadd.f32 %v5352, %v5655
  %v5691 = vadd.f32 %v5353, %v5657
  %v5692 = vadd.f32 %v5354, %v5659
  %5693 = vst [vmem:[#allocation2] sm:$0xff] %v5661
  %5694 = vst [vmem:[#allocation2 + $0x8] sm:$0xff] %v5662
  %5695 = vst [vmem:[#allocation2 + $0x10] sm:$0xff] %v5663
  %5696 = vst [vmem:[#allocation2 + $0x18] sm:$0xff] %v5664
  %5697 = vst [vmem:[#allocation2 + $0x20] sm:$0xff] %v5665
  %5698 = vst [vmem:[#allocation2 + $0x28] sm:$0xff] %v5666
  %5699 = vst [vmem:[#allocation2 + $0x30] sm:$0xff] %v5667
  %5700 = vst [vmem:[#allocation2 + $0x38] sm:$0xff] %v5668
  %5701 = vst [vmem:[#allocation2 + $0x40] sm:$0xff] %v5669
  %5702 = vst [vmem:[#allocation2 + $0x48] sm:$0xff] %v5670
  %5703 = vst [vmem:[#allocation2 + $0x50] sm:$0xff] %v5671
  %5704 = vst [vmem:[#allocation2 + $0x58] sm:$0xff] %v5672
  %5705 = vst [vmem:[#allocation2 + $0x60] sm:$0xff] %v5673
  %5706 = vst [vmem:[#allocation2 + $0x68] sm:$0xff] %v5674
  %5707 = vst [vmem:[#allocation2 + $0x70] sm:$0xff] %v5675
  %5708 = vst [vmem:[#allocation2 + $0x78] sm:$0xff] %v5676
  %5709 = vst [vmem:[#allocation2 + $0x80] sm:$0xff] %v5677
  %5710 = vst [vmem:[#allocation2 + $0x88] sm:$0xff] %v5678
  %5711 = vst [vmem:[#allocation2 + $0x90] sm:$0xff] %v5679
  %5712 = vst [vmem:[#allocation2 + $0x98] sm:$0xff] %v5680
  %5713 = vst [vmem:[#allocation2 + $0xa0] sm:$0xff] %v5681
  %5714 = vst [vmem:[#allocation2 + $0xa8] sm:$0xff] %v5682
  %5715 = vst [vmem:[#allocation2 + $0xb0] sm:$0xff] %v5683
  %5716 = vst [vmem:[#allocation2 + $0xb8] sm:$0xff] %v5684
  %5717 = vst [vmem:[#allocation2 + $0xc0] sm:$0xff] %v5685
  %5718 = vst [vmem:[#allocation2 + $0xc8] sm:$0xff] %v5686
  %5719 = vst [vmem:[#allocation2 + $0xd0] sm:$0xff] %v5687
  %5720 = vst [vmem:[#allocation2 + $0xd8] sm:$0xff] %v5688
  %5721 = vst [vmem:[#allocation2 + $0xe0] sm:$0xff] %v5689
  %5722 = vst [vmem:[#allocation2 + $0xe8] sm:$0xff] %v5690
  %5723 = vst [vmem:[#allocation2 + $0xf0] sm:$0xff] %v5691
  %5724 = vst [vmem:[#allocation2 + $0xf8] sm:$0xff] %v5692
  %v5725 = vld [vmem:[#allocation2] sm:$0xff]
  %v5726 = vld [vmem:[#allocation2 + $0x8] sm:$0xff]
  %v5727 = vld [vmem:[#allocation2 + $0x10] sm:$0xff]
  %v5728 = vld [vmem:[#allocation2 + $0x18] sm:$0xff]
  %v5729 = vld [vmem:[#allocation2 + $0x20] sm:$0xff]
  %v5730 = vld [vmem:[#allocation2 + $0x28] sm:$0xff]
  %v5731 = vld [vmem:[#allocation2 + $0x30] sm:$0xff]
  %v5732 = vld [vmem:[#allocation2 + $0x38] sm:$0xff]
  %v5733 = vld [vmem:[#allocation2 + $0x40] sm:$0xff]
  %v5734 = vld [vmem:[#allocation2 + $0x48] sm:$0xff]
  %v5735 = vld [vmem:[#allocation2 + $0x50] sm:$0xff]
  %v5736 = vld [vmem:[#allocation2 + $0x58] sm:$0xff]
  %v5737 = vld [vmem:[#allocation2 + $0x60] sm:$0xff]
  %v5738 = vld [vmem:[#allocation2 + $0x68] sm:$0xff]
  %v5739 = vld [vmem:[#allocation2 + $0x70] sm:$0xff]
  %v5740 = vld [vmem:[#allocation2 + $0x78] sm:$0xff]
  %v5741 = vld [vmem:[#allocation2 + $0x80] sm:$0xff]
  %v5742 = vld [vmem:[#allocation2 + $0x88] sm:$0xff]
  %v5743 = vld [vmem:[#allocation2 + $0x90] sm:$0xff]
  %v5744 = vld [vmem:[#allocation2 + $0x98] sm:$0xff]
  %v5745 = vld [vmem:[#allocation2 + $0xa0] sm:$0xff]
  %v5746 = vld [vmem:[#allocation2 + $0xa8] sm:$0xff]
  %v5747 = vld [vmem:[#allocation2 + $0xb0] sm:$0xff]
  %v5748 = vld [vmem:[#allocation2 + $0xb8] sm:$0xff]
  %v5749 = vld [vmem:[#allocation2 + $0xc0] sm:$0xff]
  %v5750 = vld [vmem:[#allocation2 + $0xc8] sm:$0xff]
  %v5751 = vld [vmem:[#allocation2 + $0xd0] sm:$0xff]
  %v5752 = vld [vmem:[#allocation2 + $0xd8] sm:$0xff]
  %v5753 = vld [vmem:[#allocation2 + $0xe0] sm:$0xff]
  %v5754 = vld [vmem:[#allocation2 + $0xe8] sm:$0xff]
  %v5755 = vld [vmem:[#allocation2 + $0xf0] sm:$0xff]
  %v5756 = vld [vmem:[#allocation2 + $0xf8] sm:$0xff]
  %v5757 = vrot.slane %v4813, 1
  %v5758 = vor.u32 %v4810, %v5757
  %v5759 = vrot.slane %v4820, 1
  %v5760 = vor.u32 %v4817, %v5759
  %v5761 = vrot.slane %v4827, 1
  %v5762 = vor.u32 %v4824, %v5761
  %v5763 = vrot.slane %v4834, 1
  %v5764 = vor.u32 %v4831, %v5763
  %v5765 = vrot.slane %v4841, 1
  %v5766 = vor.u32 %v4838, %v5765
  %v5767 = vrot.slane %v4848, 1
  %v5768 = vor.u32 %v4845, %v5767
  %v5769 = vrot.slane %v4855, 1
  %v5770 = vor.u32 %v4852, %v5769
  %v5771 = vrot.slane %v4862, 1
  %v5772 = vor.u32 %v4859, %v5771
  %v5773 = vrot.slane %v4869, 1
  %v5774 = vor.u32 %v4866, %v5773
  %v5775 = vrot.slane %v4876, 1
  %v5776 = vor.u32 %v4873, %v5775
  %v5777 = vrot.slane %v4883, 1
  %v5778 = vor.u32 %v4880, %v5777
  %v5779 = vrot.slane %v4890, 1
  %v5780 = vor.u32 %v4887, %v5779
  %v5781 = vrot.slane %v4897, 1
  %v5782 = vor.u32 %v4894, %v5781
  %v5783 = vrot.slane %v4904, 1
  %v5784 = vor.u32 %v4901, %v5783
  %v5785 = vrot.slane %v4911, 1
  %v5786 = vor.u32 %v4908, %v5785
  %v5787 = vrot.slane %v4918, 1
  %v5788 = vor.u32 %v4915, %v5787
  %v5805 = vsel %vm1187, %v5758, 0
  %v5806 = vsel %vm1187, %v5760, 0
  %v5807 = vsel %vm1187, %v5762, 0
  %v5808 = vsel %vm1187, %v5764, 0
  %v5809 = vsel %vm1187, %v5766, 0
  %v5810 = vsel %vm1187, %v5768, 0
  %v5811 = vsel %vm1187, %v5770, 0
  %v5812 = vsel %vm1187, %v5772, 0
  %v5813 = vsel %vm1187, %v5774, 0
  %v5814 = vsel %vm1187, %v5776, 0
  %v5815 = vsel %vm1187, %v5778, 0
  %v5816 = vsel %vm1187, %v5780, 0
  %v5817 = vsel %vm1187, %v5782, 0
  %v5818 = vsel %vm1187, %v5784, 0
  %v5819 = vsel %vm1187, %v5786, 0
  %v5820 = vsel %vm1187, %v5788, 0
  %s5821 = scalar_lea.vmem %s1, 2816
  %v5822 = vld [vmem:[%s5821] sm:$0xff]
  %v5823 = vld [vmem:[%s5821 + $0x8] sm:$0xff]
  %v5824 = vld [vmem:[%s5821 + $0x10] sm:$0xff]
  %v5825 = vld [vmem:[%s5821 + $0x18] sm:$0xff]
  %v5826 = vld [vmem:[%s5821 + $0x20] sm:$0xff]
  %v5827 = vld [vmem:[%s5821 + $0x28] sm:$0xff]
  %v5828 = vld [vmem:[%s5821 + $0x30] sm:$0xff]
  %v5829 = vld [vmem:[%s5821 + $0x38] sm:$0xff]
  %v5830 = vld [vmem:[%s5821 + $0x40] sm:$0xff]
  %v5831 = vld [vmem:[%s5821 + $0x48] sm:$0xff]
  %v5832 = vld [vmem:[%s5821 + $0x50] sm:$0xff]
  %v5833 = vld [vmem:[%s5821 + $0x58] sm:$0xff]
  %v5834 = vld [vmem:[%s5821 + $0x60] sm:$0xff]
  %v5835 = vld [vmem:[%s5821 + $0x68] sm:$0xff]
  %v5836 = vld [vmem:[%s5821 + $0x70] sm:$0xff]
  %v5837 = vld [vmem:[%s5821 + $0x78] sm:$0xff]
  %v5838 = vld [vmem:[%s5821 + $0x80] sm:$0xff]
  %v5839 = vld [vmem:[%s5821 + $0x88] sm:$0xff]
  %v5840 = vld [vmem:[%s5821 + $0x90] sm:$0xff]
  %v5841 = vld [vmem:[%s5821 + $0x98] sm:$0xff]
  %v5842 = vld [vmem:[%s5821 + $0xa0] sm:$0xff]
  %v5843 = vld [vmem:[%s5821 + $0xa8] sm:$0xff]
  %v5844 = vld [vmem:[%s5821 + $0xb0] sm:$0xff]
  %v5845 = vld [vmem:[%s5821 + $0xb8] sm:$0xff]
  %v5846 = vld [vmem:[%s5821 + $0xc0] sm:$0xff]
  %v5847 = vld [vmem:[%s5821 + $0xc8] sm:$0xff]
  %v5848 = vld [vmem:[%s5821 + $0xd0] sm:$0xff]
  %v5849 = vld [vmem:[%s5821 + $0xd8] sm:$0xff]
  %v5850 = vld [vmem:[%s5821 + $0xe0] sm:$0xff]
  %v5851 = vld [vmem:[%s5821 + $0xe8] sm:$0xff]
  %v5852 = vld [vmem:[%s5821 + $0xf0] sm:$0xff]
  %v5853 = vld [vmem:[%s5821 + $0xf8] sm:$0xff]
  %v5886 = vunpack.c.l.b16 %v5822
  %v5887 = vunpack.c.h.b16 %v5822
  %v5888 = vunpack.c.l.b16 %v5823
  %v5889 = vunpack.c.h.b16 %v5823
  %v5890 = vunpack.c.l.b16 %v5824
  %v5891 = vunpack.c.h.b16 %v5824
  %v5892 = vunpack.c.l.b16 %v5825
  %v5893 = vunpack.c.h.b16 %v5825
  %v5894 = vunpack.c.l.b16 %v5826
  %v5895 = vunpack.c.h.b16 %v5826
  %v5896 = vunpack.c.l.b16 %v5827
  %v5897 = vunpack.c.h.b16 %v5827
  %v5898 = vunpack.c.l.b16 %v5828
  %v5899 = vunpack.c.h.b16 %v5828
  %v5900 = vunpack.c.l.b16 %v5829
  %v5901 = vunpack.c.h.b16 %v5829
  %v5902 = vunpack.c.l.b16 %v5830
  %v5903 = vunpack.c.h.b16 %v5830
  %v5904 = vunpack.c.l.b16 %v5831
  %v5905 = vunpack.c.h.b16 %v5831
  %v5906 = vunpack.c.l.b16 %v5832
  %v5907 = vunpack.c.h.b16 %v5832
  %v5908 = vunpack.c.l.b16 %v5833
  %v5909 = vunpack.c.h.b16 %v5833
  %v5910 = vunpack.c.l.b16 %v5834
  %v5911 = vunpack.c.h.b16 %v5834
  %v5912 = vunpack.c.l.b16 %v5835
  %v5913 = vunpack.c.h.b16 %v5835
  %v5914 = vunpack.c.l.b16 %v5836
  %v5915 = vunpack.c.h.b16 %v5836
  %v5916 = vunpack.c.l.b16 %v5837
  %v5917 = vunpack.c.h.b16 %v5837
  %v5918 = vunpack.c.l.b16 %v5838
  %v5919 = vunpack.c.h.b16 %v5838
  %v5920 = vunpack.c.l.b16 %v5839
  %v5921 = vunpack.c.h.b16 %v5839
  %v5922 = vunpack.c.l.b16 %v5840
  %v5923 = vunpack.c.h.b16 %v5840
  %v5924 = vunpack.c.l.b16 %v5841
  %v5925 = vunpack.c.h.b16 %v5841
  %v5926 = vunpack.c.l.b16 %v5842
  %v5927 = vunpack.c.h.b16 %v5842
  %v5928 = vunpack.c.l.b16 %v5843
  %v5929 = vunpack.c.h.b16 %v5843
  %v5930 = vunpack.c.l.b16 %v5844
  %v5931 = vunpack.c.h.b16 %v5844
  %v5932 = vunpack.c.l.b16 %v5845
  %v5933 = vunpack.c.h.b16 %v5845
  %v5934 = vunpack.c.l.b16 %v5846
  %v5935 = vunpack.c.h.b16 %v5846
  %v5936 = vunpack.c.l.b16 %v5847
  %v5937 = vunpack.c.h.b16 %v5847
  %v5938 = vunpack.c.l.b16 %v5848
  %v5939 = vunpack.c.h.b16 %v5848
  %v5940 = vunpack.c.l.b16 %v5849
  %v5941 = vunpack.c.h.b16 %v5849
  %v5942 = vunpack.c.l.b16 %v5850
  %v5943 = vunpack.c.h.b16 %v5850
  %v5944 = vunpack.c.l.b16 %v5851
  %v5945 = vunpack.c.h.b16 %v5851
  %v5946 = vunpack.c.l.b16 %v5852
  %v5947 = vunpack.c.h.b16 %v5852
  %v5948 = vunpack.c.l.b16 %v5853
  %v5949 = vunpack.c.h.b16 %v5853
  %v5950 = vpack.c.b16 %v5888, %v5886
  %v5951 = vpack.c.b16 %v5889, %v5887
  %v5952 = vpack.c.b16 %v5892, %v5890
  %v5953 = vpack.c.b16 %v5893, %v5891
  %v5954 = vpack.c.b16 %v5896, %v5894
  %v5955 = vpack.c.b16 %v5897, %v5895
  %v5956 = vpack.c.b16 %v5900, %v5898
  %v5957 = vpack.c.b16 %v5901, %v5899
  %v5958 = vpack.c.b16 %v5904, %v5902
  %v5959 = vpack.c.b16 %v5905, %v5903
  %v5960 = vpack.c.b16 %v5908, %v5906
  %v5961 = vpack.c.b16 %v5909, %v5907
  %v5962 = vpack.c.b16 %v5912, %v5910
  %v5963 = vpack.c.b16 %v5913, %v5911
  %v5964 = vpack.c.b16 %v5916, %v5914
  %v5965 = vpack.c.b16 %v5917, %v5915
  %v5966 = vpack.c.b16 %v5920, %v5918
  %v5967 = vpack.c.b16 %v5921, %v5919
  %v5968 = vpack.c.b16 %v5924, %v5922
  %v5969 = vpack.c.b16 %v5925, %v5923
  %v5970 = vpack.c.b16 %v5928, %v5926
  %v5971 = vpack.c.b16 %v5929, %v5927
  %v5972 = vpack.c.b16 %v5932, %v5930
  %v5973 = vpack.c.b16 %v5933, %v5931
  %v5974 = vpack.c.b16 %v5936, %v5934
  %v5975 = vpack.c.b16 %v5937, %v5935
  %v5976 = vpack.c.b16 %v5940, %v5938
  %v5977 = vpack.c.b16 %v5941, %v5939
  %v5978 = vpack.c.b16 %v5944, %v5942
  %v5979 = vpack.c.b16 %v5945, %v5943
  %v5980 = vpack.c.b16 %v5948, %v5946
  %v5981 = vpack.c.b16 %v5949, %v5947
  %6014 = vmatprep.subr.bf16.mxu0 %v5951
  %6015 = vmatpush1.bf16.msra.mxu0 %v5950
  %6016 = vmatprep.subr.bf16.mxu0 %v5953
  %6017 = vmatpush1.bf16.msra.mxu0 %v5952
  %6018 = vmatprep.subr.bf16.mxu0 %v5955
  %6019 = vmatpush1.bf16.msra.mxu0 %v5954
  %6020 = vmatprep.subr.bf16.mxu0 %v5957
  %6021 = vmatpush1.bf16.msra.mxu0 %v5956
  %6022 = vmatprep.subr.bf16.mxu0 %v5959
  %6023 = vmatpush1.bf16.msra.mxu0 %v5958
  %6024 = vmatprep.subr.bf16.mxu0 %v5961
  %6025 = vmatpush1.bf16.msra.mxu0 %v5960
  %6026 = vmatprep.subr.bf16.mxu0 %v5963
  %6027 = vmatpush1.bf16.msra.mxu0 %v5962
  %6028 = vmatprep.subr.bf16.mxu0 %v5965
  %6029 = vmatpush1.bf16.msra.mxu0 %v5964
  %6030 = vmatprep.subr.bf16.mxu0 %v5967
  %6031 = vmatpush1.bf16.msra.mxu0 %v5966
  %6032 = vmatprep.subr.bf16.mxu0 %v5969
  %6033 = vmatpush1.bf16.msra.mxu0 %v5968
  %6034 = vmatprep.subr.bf16.mxu0 %v5971
  %6035 = vmatpush1.bf16.msra.mxu0 %v5970
  %6036 = vmatprep.subr.bf16.mxu0 %v5973
  %6037 = vmatpush1.bf16.msra.mxu0 %v5972
  %6038 = vmatprep.subr.bf16.mxu0 %v5975
  %6039 = vmatpush1.bf16.msra.mxu0 %v5974
  %6040 = vmatprep.subr.bf16.mxu0 %v5977
  %6041 = vmatpush1.bf16.msra.mxu0 %v5976
  %6042 = vmatprep.subr.bf16.mxu0 %v5979
  %6043 = vmatpush1.bf16.msra.mxu0 %v5978
  %6044 = vmatprep.subr.bf16.mxu0 %v5981
  %6045 = vmatpush1.bf16.msra.mxu0 %v5980
  %6046 = vmatprep.mubr.bf16.mxu0 %v5806
  %6047 = vmatmul.mubr.bf16.gmra.mrb[0].mxu0 %v5805
  %v6048 = vpop.f32.mrb[0].mxu0
  %v6049 = vadd.f32 0.0, %v6048
  %v6050 = vpop.f32.mrb[0].mxu0
  %v6051 = vadd.f32 0.0, %v6050
  %v6052 = vpop.f32.mrb[0].mxu0
  %v6053 = vadd.f32 0.0, %v6052
  %v6054 = vpop.f32.mrb[0].mxu0
  %v6055 = vadd.f32 0.0, %v6054
  %6056 = vmatprep.mubr.bf16.mxu0 %v5808
  %6057 = vmatmul.mubr.bf16.gmra.mrb[0].mxu0 %v5807
  %v6058 = vpop.f32.mrb[0].mxu0
  %v6059 = vadd.f32 0.0, %v6058
  %v6060 = vpop.f32.mrb[0].mxu0
  %v6061 = vadd.f32 0.0, %v6060
  %v6062 = vpop.f32.mrb[0].mxu0
  %v6063 = vadd.f32 0.0, %v6062
  %v6064 = vpop.f32.mrb[0].mxu0
  %v6065 = vadd.f32 0.0, %v6064
  %6066 = vmatprep.mubr.bf16.mxu0 %v5810
  %6067 = vmatmul.mubr.bf16.gmra.mrb[0].mxu0 %v5809
  %v6068 = vpop.f32.mrb[0].mxu0
  %v6069 = vadd.f32 0.0, %v6068
  %v6070 = vpop.f32.mrb[0].mxu0
  %v6071 = vadd.f32 0.0, %v6070
  %v6072 = vpop.f32.mrb[0].mxu0
  %v6073 = vadd.f32 0.0, %v6072
  %v6074 = vpop.f32.mrb[0].mxu0
  %v6075 = vadd.f32 0.0, %v6074
  %6076 = vmatprep.mubr.bf16.mxu0 %v5812
  %6077 = vmatmul.mubr.bf16.gmra.mrb[0].mxu0 %v5811
  %v6078 = vpop.f32.mrb[0].mxu0
  %v6079 = vadd.f32 0.0, %v6078
  %v6080 = vpop.f32.mrb[0].mxu0
  %v6081 = vadd.f32 0.0, %v6080
  %v6082 = vpop.f32.mrb[0].mxu0
  %v6083 = vadd.f32 0.0, %v6082
  %v6084 = vpop.f32.mrb[0].mxu0
  %v6085 = vadd.f32 0.0, %v6084
  %6086 = vmatprep.mubr.bf16.mxu0 %v5814
  %6087 = vmatmul.mubr.bf16.gmra.mrb[0].mxu0 %v5813
  %v6088 = vpop.f32.mrb[0].mxu0
  %v6089 = vadd.f32 0.0, %v6088
  %v6090 = vpop.f32.mrb[0].mxu0
  %v6091 = vadd.f32 0.0, %v6090
  %v6092 = vpop.f32.mrb[0].mxu0
  %v6093 = vadd.f32 0.0, %v6092
  %v6094 = vpop.f32.mrb[0].mxu0
  %v6095 = vadd.f32 0.0, %v6094
  %6096 = vmatprep.mubr.bf16.mxu0 %v5816
  %6097 = vmatmul.mubr.bf16.gmra.mrb[0].mxu0 %v5815
  %v6098 = vpop.f32.mrb[0].mxu0
  %v6099 = vadd.f32 0.0, %v6098
  %v6100 = vpop.f32.mrb[0].mxu0
  %v6101 = vadd.f32 0.0, %v6100
  %v6102 = vpop.f32.mrb[0].mxu0
  %v6103 = vadd.f32 0.0, %v6102
  %v6104 = vpop.f32.mrb[0].mxu0
  %v6105 = vadd.f32 0.0, %v6104
  %6106 = vmatprep.mubr.bf16.mxu0 %v5818
  %6107 = vmatmul.mubr.bf16.gmra.mrb[0].mxu0 %v5817
  %v6108 = vpop.f32.mrb[0].mxu0
  %v6109 = vadd.f32 0.0, %v6108
  %v6110 = vpop.f32.mrb[0].mxu0
  %v6111 = vadd.f32 0.0, %v6110
  %v6112 = vpop.f32.mrb[0].mxu0
  %v6113 = vadd.f32 0.0, %v6112
  %v6114 = vpop.f32.mrb[0].mxu0
  %v6115 = vadd.f32 0.0, %v6114
  %6116 = vmatprep.mubr.bf16.mxu0 %v5820
  %6117 = vmatmul.mubr.bf16.gmra.mrb[0].mxu0 %v5819
  %v6118 = vpop.f32.mrb[0].mxu0
  %v6119 = vadd.f32 0.0, %v6118
  %v6120 = vpop.f32.mrb[0].mxu0
  %v6121 = vadd.f32 0.0, %v6120
  %v6122 = vpop.f32.mrb[0].mxu0
  %v6123 = vadd.f32 0.0, %v6122
  %v6124 = vpop.f32.mrb[0].mxu0
  %v6125 = vadd.f32 0.0, %v6124
  %6126 = vdwg.mxu0
  %v6127 = vadd.f32 %v5725, %v6049
  %v6128 = vadd.f32 %v5726, %v6051
  %v6129 = vadd.f32 %v5727, %v6053
  %v6130 = vadd.f32 %v5728, %v6055
  %v6131 = vadd.f32 %v5729, %v6059
  %v6132 = vadd.f32 %v5730, %v6061
  %v6133 = vadd.f32 %v5731, %v6063
  %v6134 = vadd.f32 %v5732, %v6065
  %v6135 = vadd.f32 %v5733, %v6069
  %v6136 = vadd.f32 %v5734, %v6071
  %v6137 = vadd.f32 %v5735, %v6073
  %v6138 = vadd.f32 %v5736, %v6075
  %v6139 = vadd.f32 %v5737, %v6079
  %v6140 = vadd.f32 %v5738, %v6081
  %v6141 = vadd.f32 %v5739, %v6083
  %v6142 = vadd.f32 %v5740, %v6085
  %v6143 = vadd.f32 %v5741, %v6089
  %v6144 = vadd.f32 %v5742, %v6091
  %v6145 = vadd.f32 %v5743, %v6093
  %v6146 = vadd.f32 %v5744, %v6095
  %v6147 = vadd.f32 %v5745, %v6099
  %v6148 = vadd.f32 %v5746, %v6101
  %v6149 = vadd.f32 %v5747, %v6103
  %v6150 = vadd.f32 %v5748, %v6105
  %v6151 = vadd.f32 %v5749, %v6109
  %v6152 = vadd.f32 %v5750, %v6111
  %v6153 = vadd.f32 %v5751, %v6113
  %v6154 = vadd.f32 %v5752, %v6115
  %v6155 = vadd.f32 %v5753, %v6119
  %v6156 = vadd.f32 %v5754, %v6121
  %v6157 = vadd.f32 %v5755, %v6123
  %v6158 = vadd.f32 %v5756, %v6125
  %6159 = vst [vmem:[#allocation2] sm:$0xff] %v6127
  %6160 = vst [vmem:[#allocation2 + $0x8] sm:$0xff] %v6128
  %6161 = vst [vmem:[#allocation2 + $0x10] sm:$0xff] %v6129
  %6162 = vst [vmem:[#allocation2 + $0x18] sm:$0xff] %v6130
  %6163 = vst [vmem:[#allocation2 + $0x20] sm:$0xff] %v6131
  %6164 = vst [vmem:[#allocation2 + $0x28] sm:$0xff] %v6132
  %6165 = vst [vmem:[#allocation2 + $0x30] sm:$0xff] %v6133
  %6166 = vst [vmem:[#allocation2 + $0x38] sm:$0xff] %v6134
  %6167 = vst [vmem:[#allocation2 + $0x40] sm:$0xff] %v6135
  %6168 = vst [vmem:[#allocation2 + $0x48] sm:$0xff] %v6136
  %6169 = vst [vmem:[#allocation2 + $0x50] sm:$0xff] %v6137
  %6170 = vst [vmem:[#allocation2 + $0x58] sm:$0xff] %v6138
  %6171 = vst [vmem:[#allocation2 + $0x60] sm:$0xff] %v6139
  %6172 = vst [vmem:[#allocation2 + $0x68] sm:$0xff] %v6140
  %6173 = vst [vmem:[#allocation2 + $0x70] sm:$0xff] %v6141
  %6174 = vst [vmem:[#allocation2 + $0x78] sm:$0xff] %v6142
  %6175 = vst [vmem:[#allocation2 + $0x80] sm:$0xff] %v6143
  %6176 = vst [vmem:[#allocation2 + $0x88] sm:$0xff] %v6144
  %6177 = vst [vmem:[#allocation2 + $0x90] sm:$0xff] %v6145
  %6178 = vst [vmem:[#allocation2 + $0x98] sm:$0xff] %v6146
  %6179 = vst [vmem:[#allocation2 + $0xa0] sm:$0xff] %v6147
  %6180 = vst [vmem:[#allocation2 + $0xa8] sm:$0xff] %v6148
  %6181 = vst [vmem:[#allocation2 + $0xb0] sm:$0xff] %v6149
  %6182 = vst [vmem:[#allocation2 + $0xb8] sm:$0xff] %v6150
  %6183 = vst [vmem:[#allocation2 + $0xc0] sm:$0xff] %v6151
  %6184 = vst [vmem:[#allocation2 + $0xc8] sm:$0xff] %v6152
  %6185 = vst [vmem:[#allocation2 + $0xd0] sm:$0xff] %v6153
  %6186 = vst [vmem:[#allocation2 + $0xd8] sm:$0xff] %v6154
  %6187 = vst [vmem:[#allocation2 + $0xe0] sm:$0xff] %v6155
  %6188 = vst [vmem:[#allocation2 + $0xe8] sm:$0xff] %v6156
  %6189 = vst [vmem:[#allocation2 + $0xf0] sm:$0xff] %v6157
  %6190 = vst [vmem:[#allocation2 + $0xf8] sm:$0xff] %v6158
  %v6191 = vld [vmem:[#allocation2] sm:$0xff]
  %v6192 = vld [vmem:[#allocation2 + $0x8] sm:$0xff]
  %v6193 = vld [vmem:[#allocation2 + $0x10] sm:$0xff]
  %v6194 = vld [vmem:[#allocation2 + $0x18] sm:$0xff]
  %v6195 = vld [vmem:[#allocation2 + $0x20] sm:$0xff]
  %v6196 = vld [vmem:[#allocation2 + $0x28] sm:$0xff]
  %v6197 = vld [vmem:[#allocation2 + $0x30] sm:$0xff]
  %v6198 = vld [vmem:[#allocation2 + $0x38] sm:$0xff]
  %v6199 = vld [vmem:[#allocation2 + $0x40] sm:$0xff]
  %v6200 = vld [vmem:[#allocation2 + $0x48] sm:$0xff]
  %v6201 = vld [vmem:[#allocation2 + $0x50] sm:$0xff]
  %v6202 = vld [vmem:[#allocation2 + $0x58] sm:$0xff]
  %v6203 = vld [vmem:[#allocation2 + $0x60] sm:$0xff]
  %v6204 = vld [vmem:[#allocation2 + $0x68] sm:$0xff]
  %v6205 = vld [vmem:[#allocation2 + $0x70] sm:$0xff]
  %v6206 = vld [vmem:[#allocation2 + $0x78] sm:$0xff]
  %v6207 = vld [vmem:[#allocation2 + $0x80] sm:$0xff]
  %v6208 = vld [vmem:[#allocation2 + $0x88] sm:$0xff]
  %v6209 = vld [vmem:[#allocation2 + $0x90] sm:$0xff]
  %v6210 = vld [vmem:[#allocation2 + $0x98] sm:$0xff]
  %v6211 = vld [vmem:[#allocation2 + $0xa0] sm:$0xff]
  %v6212 = vld [vmem:[#allocation2 + $0xa8] sm:$0xff]
  %v6213 = vld [vmem:[#allocation2 + $0xb0] sm:$0xff]
  %v6214 = vld [vmem:[#allocation2 + $0xb8] sm:$0xff]
  %v6215 = vld [vmem:[#allocation2 + $0xc0] sm:$0xff]
  %v6216 = vld [vmem:[#allocation2 + $0xc8] sm:$0xff]
  %v6217 = vld [vmem:[#allocation2 + $0xd0] sm:$0xff]
  %v6218 = vld [vmem:[#allocation2 + $0xd8] sm:$0xff]
  %v6219 = vld [vmem:[#allocation2 + $0xe0] sm:$0xff]
  %v6220 = vld [vmem:[#allocation2 + $0xe8] sm:$0xff]
  %v6221 = vld [vmem:[#allocation2 + $0xf0] sm:$0xff]
  %v6222 = vld [vmem:[#allocation2 + $0xf8] sm:$0xff]
  %6223 = vst [vmem:[%s3] sm:$0xff] %v6191
  %6224 = vst [vmem:[%s3 + $0x8] sm:$0xff] %v6192
  %6225 = vst [vmem:[%s3 + $0x10] sm:$0xff] %v6193
  %6226 = vst [vmem:[%s3 + $0x18] sm:$0xff] %v6194
  %6227 = vst [vmem:[%s3 + $0x20] sm:$0xff] %v6195
  %6228 = vst [vmem:[%s3 + $0x28] sm:$0xff] %v6196
  %6229 = vst [vmem:[%s3 + $0x30] sm:$0xff] %v6197
  %6230 = vst [vmem:[%s3 + $0x38] sm:$0xff] %v6198
  %6231 = vst [vmem:[%s3 + $0x40] sm:$0xff] %v6199
  %6232 = vst [vmem:[%s3 + $0x48] sm:$0xff] %v6200
  %6233 = vst [vmem:[%s3 + $0x50] sm:$0xff] %v6201
  %6234 = vst [vmem:[%s3 + $0x58] sm:$0xff] %v6202
  %6235 = vst [vmem:[%s3 + $0x60] sm:$0xff] %v6203
  %6236 = vst [vmem:[%s3 + $0x68] sm:$0xff] %v6204
  %6237 = vst [vmem:[%s3 + $0x70] sm:$0xff] %v6205
  %6238 = vst [vmem:[%s3 + $0x78] sm:$0xff] %v6206
  %6239 = vst [vmem:[%s3 + $0x80] sm:$0xff] %v6207
  %6240 = vst [vmem:[%s3 + $0x88] sm:$0xff] %v6208
  %6241 = vst [vmem:[%s3 + $0x90] sm:$0xff] %v6209
  %6242 = vst [vmem:[%s3 + $0x98] sm:$0xff] %v6210
  %6243 = vst [vmem:[%s3 + $0xa0] sm:$0xff] %v6211
  %6244 = vst [vmem:[%s3 + $0xa8] sm:$0xff] %v6212
  %6245 = vst [vmem:[%s3 + $0xb0] sm:$0xff] %v6213
  %6246 = vst [vmem:[%s3 + $0xb8] sm:$0xff] %v6214
  %6247 = vst [vmem:[%s3 + $0xc0] sm:$0xff] %v6215
  %6248 = vst [vmem:[%s3 + $0xc8] sm:$0xff] %v6216
  %6249 = vst [vmem:[%s3 + $0xd0] sm:$0xff] %v6217
  %6250 = vst [vmem:[%s3 + $0xd8] sm:$0xff] %v6218
  %6251 = vst [vmem:[%s3 + $0xe0] sm:$0xff] %v6219
  %6252 = vst [vmem:[%s3 + $0xe8] sm:$0xff] %v6220
  %6253 = vst [vmem:[%s3 + $0xf0] sm:$0xff] %v6221
  %6254 = vst [vmem:[%s3 + $0xf8] sm:$0xff] %v6222
  // Predicated region
  $region14: #{_apply.1} parent=0 // pred_check
    _
  $region15: #{_apply.1} parent=0 // pred_check_branch
    %6256 = sbr.rel (0) target = $region17
  $region16: #{_apply.1} parent=0 // pred_region
    _
  $region17: #{_apply.1} parent=0 // pred_fallthru
    _
  // Predicated region
  $region18: #{_apply.1} parent=0 // pred_check
    _
  $region19: #{_apply.1} parent=0 // pred_check_branch
    %6258 = sbr.rel (0) target = $region21
  $region20: #{_apply.1} parent=0 // pred_region
    _
  $region21: #{_apply.1} parent=0 // pred_fallthru
    _

</llo_original>
